<compile_context>
chip_gen: v5e
topology: v5e:2x2
jax: 0.10.0
libtpu: 0.0.40
codegen_flags: <defaults>
</compile_context>

<pallas_src>
import math

import jax
import jax.numpy as jnp
from jax import lax
from jax.experimental import pallas as pl
from jax.experimental.pallas import tpu as pltpu


# ----------------------------- in-kernel math helpers -----------------------------

def _erf(x):
    # Abramowitz & Stegun 7.1.26 (|err| < 1.5e-7): matches torch.nn.GELU (erf-based) to ~f32 eps.
    a1, a2, a3, a4, a5 = 0.254829592, -0.284496736, 1.421413741, -1.453152027, 1.061405429
    p = 0.3275911
    sgn = jnp.where(x >= 0.0, 1.0, -1.0)
    ax = jnp.abs(x)
    t = 1.0 / (1.0 + p * ax)
    poly = t * (a1 + t * (a2 + t * (a3 + t * (a4 + t * a5))))
    return sgn * (1.0 - poly * jnp.exp(-ax * ax))


def _gelu(x):
    return 0.5 * x * (1.0 + _erf(x * 0.7071067811865476))


# ----------------------------- fused forward kernel -----------------------------

def build_lstmnet_kernel(T, B, E, H, L):
    """Full LSTMNet forward for static (T, B, E, H, L).  All row-major scratch is time-major:
    row index = t*B + b, columns of hidden slabs are [h_fwd | h_bwd] (PyTorch bi-LSTM layout)."""
    G1, G2, G3, G4, G8 = H, 2 * H, 3 * H, 4 * H, 8 * H
    N = T * B

    def kernel(*refs):
        x_ref = refs[0]                                            # (B*T, E), time-major rows
        layer_refs = [refs[1 + 3 * l: 1 + 3 * (l + 1)] for l in range(L)]
        o = 1 + 3 * L
        (ln_g_ref, ln_b_ref, w1_ref, b1_ref,
         w2_ref, b2_ref, w3_ref, b3_ref) = refs[o:o + 8]
        out_ref = refs[o + 8]                                      # (B*T, 1)
        gx_scr = refs[o + 9]                                       # (B*T, 8H) gate precompute
        hid_scr = (refs[o + 10], refs[o + 11])                     # 2 x (B*T, 2H) hidden slabs

        # g-gate lane mask on a (B, 4H) tile (hoisted; columns [2H,3H) hold the cell candidate).
        col = lax.broadcasted_iota(jnp.int32, (B, G4), 1)
        g_mask = (col >= G2) & (col < G3)

        for l in range(L):
            wih_ref, whh_ref, bias_ref = layer_refs[l]
            cur = hid_scr[l % 2]                                   # this layer's (B*T, 2H) output

            # (1) Hoisted input projection: one (B*T, Din) @ (Din, 8H) matmul, bias folded.
            src = x_ref[...] if l == 0 else hid_scr[(l - 1) % 2][...]
            gx_scr[...] = (jnp.dot(src, wih_ref[...],
                                   preferred_element_type=jnp.float32) + bias_ref[...])

            # (2) Fused fwd+bwd recurrence; per-direction (B,H)@(H,4H) dots on the serial path.
            whh = whh_ref[...]                                     # (2H, 4H), loaded once
            whh_f, whh_b = whh[0:H, :], whh[H:2 * H, :]

            def step(t, carry):
                h_f, h_b, c_f, c_b = carry                         # (B, H) each
                rt = T - 1 - t
                gin_f = gx_scr[pl.ds(t * B, B), 0:G4]              # fwd gates at time t
                gin_b = gx_scr[pl.ds(rt * B, B), G4:G8]            # bwd gates at time T-1-t
                pre_f = gin_f + jnp.dot(h_f, whh_f, preferred_element_type=jnp.float32)
                pre_b = gin_b + jnp.dot(h_b, whh_b, preferred_element_type=jnp.float32)
                s_f = jax.nn.sigmoid(pre_f)                        # whole (2,128) vreg on EUP
                s_b = jax.nn.sigmoid(pre_b)
                gv_f = jnp.where(g_mask, 2.0 * s_f - 1.0, s_f)     # tanh(g) = 2*sigmoid(2g) - 1
                gv_b = jnp.where(g_mask, 2.0 * s_b - 1.0, s_b)
                c_f_new = gv_f[:, G1:G2] * c_f + gv_f[:, 0:G1] * gv_f[:, G2:G3]
                c_b_new = gv_b[:, G1:G2] * c_b + gv_b[:, 0:G1] * gv_b[:, G2:G3]
                h_f_new = gv_f[:, G3:G4] * jnp.tanh(c_f_new)
                h_b_new = gv_b[:, G3:G4] * jnp.tanh(c_b_new)
                cur[pl.ds(t * B, B), 0:H] = h_f_new                # fwd hidden at time t
                cur[pl.ds(rt * B, B), H:2 * H] = h_b_new           # bwd hidden at time T-1-t
                return (h_f_new, h_b_new, c_f_new, c_b_new)

            z = jnp.zeros((B, H), jnp.float32)
            lax.fori_loop(0, T, step, (z, z, z, z), unroll=True)   # fully unrolled (T static)

        # (3) TD head, batched over all B*T rows:
        #     LayerNorm(2H) -> Linear(128)+GELU -> Linear(32)+GELU -> Linear(1)+Sigmoid.
        xh = hid_scr[(L - 1) % 2][...]                             # (B*T, 2H) = (16, 64)
        inv_feat = 1.0 / float(2 * H)
        mu = jnp.sum(xh, axis=-1, keepdims=True) * inv_feat
        d = xh - mu
        var = jnp.sum(d * d, axis=-1, keepdims=True) * inv_feat
        xn = d * lax.rsqrt(var + 1e-5) * ln_g_ref[...] + ln_b_ref[...]
        h1 = _gelu(jnp.dot(xn, w1_ref[...], preferred_element_type=jnp.float32)
                   + b1_ref[...])                                  # (B*T, 128)
        h2 = _gelu(jnp.dot(h1, w2_ref[...], preferred_element_type=jnp.float32)
                   + b2_ref[...])                                  # (B*T, 32)
        logit = jnp.sum(h2 * w3_ref[...], axis=-1, keepdims=True) + b3_ref[...]   # lane reduce
        out_ref[...] = jax.nn.sigmoid(logit)                       # single (B*T, 1) store

    return kernel


# ----------------------------- weight packing (one-time, plain JAX) -----------------------------

def pack_lstm_layer(layer, H):
    """PyTorch-layout weights -> kernel layout.

    Gate columns are direction-major:  [i_f, f_f, g_f, o_f | i_b, f_b, g_b, o_b]  (each H wide).
      wih : (Din, 8H)   whh : (2H, 4H) with rows [fwd H ; bwd H]   bias : (1, 8H)
    The g-gate columns of wih/whh/bias are pre-scaled by 2 (tanh(g) = 2*sigmoid(2g) - 1).
    NOTE: b_f / b_b must already be (b_ih + b_hh) summed when importing real PyTorch weights.
    """
    w_ih_f, w_hh_f, b_f = layer["w_ih_f"], layer["w_hh_f"], layer["b_f"]
    w_ih_b, w_hh_b, b_b = layer["w_ih_b"], layer["w_hh_b"], layer["b_b"]
    wih = jnp.concatenate([w_ih_f.T, w_ih_b.T], axis=1)            # (Din, 8H)
    whh = jnp.concatenate([w_hh_f.T, w_hh_b.T], axis=0)            # (2H, 4H)
    bias = jnp.concatenate([b_f, b_b], axis=0)                     # (8H,)
    scale4 = jnp.ones((4 * H,), jnp.float32).at[2 * H:3 * H].set(2.0)
    scale8 = jnp.concatenate([scale4, scale4], axis=0)
    return (wih * scale8[None, :]).astype(jnp.float32), \
           (whh * scale4[None, :]).astype(jnp.float32), \
           (bias * scale8).reshape(1, 8 * H).astype(jnp.float32)


def pack_params(lstm_params, td_params):
    H = lstm_params[0]["w_hh_f"].shape[1]
    layers = [pack_lstm_layer(lp, H) for lp in lstm_params]
    td = (td_params["gamma"].reshape(1, -1), td_params["beta"].reshape(1, -1),
          td_params["w1"], td_params["b1"].reshape(1, -1),
          td_params["w2"], td_params["b2"].reshape(1, -1),
          td_params["w3"].reshape(1, -1), td_params["b3"].reshape(1, 1))
    return {"H": H, "layers": layers, "td": td}


# ----------------------------- wrapper -----------------------------

def _cost_estimate(args, T, B, E, H, L):
    """Advisory flop/byte counts for the outer XLA scheduler."""
    N = T * B
    flops, din = 0, E
    for _ in range(L):
        flops += 2 * N * din * 8 * H                 # hoisted input projection
        flops += 2 * T * 2 * B * H * 4 * H           # per-direction recurrent dots
        din = 2 * H
    flops += 2 * N * 2 * H * 128 + 2 * N * 128 * 32 + 2 * N * 32   # TD head
    trans = L * T * 2 * B * (4 * H + H) + N * (128 + 32) + N       # sigmoid/tanh/gelu-exp
    bytes_acc = sum(int(a.size) * a.dtype.itemsize for a in args) + N * 4
    return pl.CostEstimate(flops=int(flops), transcendentals=int(trans),
                           bytes_accessed=int(bytes_acc))


def lstmnet_forward(inputs_bte, packed):
    """inputs_bte: (B, T, E) float32 -> (B, T), mirroring LSTMNet.forward (TD(x).squeeze())."""
    B, T, E = inputs_bte.shape
    H = packed["H"]
    L = len(packed["layers"])
    N = T * B
    kernel = build_lstmnet_kernel(T, B, E, H, L)

    # Time-major flatten (row = t*B + b) so the recurrence reads/writes contiguous row blocks
    # and the precompute / TD-head matmuls batch over all B*T rows.
    x_tm = inputs_bte.astype(jnp.float32).transpose(1, 0, 2).reshape(N, E)

    vmem = pl.BlockSpec(memory_space=pltpu.MemorySpace.VMEM)
    args = [x_tm]
    for (wih, whh, bias) in packed["layers"]:
        args += [wih, whh, bias]
    args += list(packed["td"])
    n_in = len(args)

    out = pl.pallas_call(
        kernel,
        out_shape=jax.ShapeDtypeStruct((N, 1), jnp.float32),
        in_specs=[vmem] * n_in,
        out_specs=vmem,
        scratch_shapes=[pltpu.VMEM((N, 8 * H), jnp.float32),       # hoisted gate precompute
                        pltpu.VMEM((N, 2 * H), jnp.float32),       # layer-even hidden [fwd|bwd]
                        pltpu.VMEM((N, 2 * H), jnp.float32)],      # layer-odd  hidden [fwd|bwd]
        cost_estimate=_cost_estimate(args, T, B, E, H, L),
    )(*args)
    return out.reshape(T, B).T                                     # (B, T) == TD(x).squeeze()


# ----------------------------- deterministic parameter init -----------------------------

def init_params(key, embedding_dim, hidden_dim, num_layers):
    H = hidden_dim
    std_lstm = 1.0 / math.sqrt(H)
    lstm_params = []
    for layer in range(num_layers):
        din = embedding_dim if layer == 0 else 2 * H
        keys = jax.random.split(key, 9)
        key = keys[0]
        lstm_params.append({
            "w_ih_f": jax.random.normal(keys[1], (4 * H, din), jnp.float32) * std_lstm,
            "w_hh_f": jax.random.normal(keys[2], (4 * H, H), jnp.float32) * std_lstm,
            "b_f":    jax.random.normal(keys[3], (4 * H,), jnp.float32) * std_lstm,  # b_ih + b_hh combined
            "w_ih_b": jax.random.normal(keys[4], (4 * H, din), jnp.float32) * std_lstm,
            "w_hh_b": jax.random.normal(keys[5], (4 * H, H), jnp.float32) * std_lstm,
            "b_b":    jax.random.normal(keys[6], (4 * H,), jnp.float32) * std_lstm,
        })

    keys = jax.random.split(key, 9)
    D2 = 2 * H
    td_params = {
        "gamma": jnp.ones((D2,), jnp.float32) + 0.01 * jax.random.normal(keys[1], (D2,), jnp.float32),
        "beta":  0.01 * jax.random.normal(keys[2], (D2,), jnp.float32),
        "w1": jax.random.normal(keys[3], (D2, 128), jnp.float32) / math.sqrt(D2),
        "b1": jax.random.normal(keys[4], (128,), jnp.float32) * 0.01,
        "w2": jax.random.normal(keys[5], (128, 32), jnp.float32) / math.sqrt(128),
        "b2": jax.random.normal(keys[6], (32,), jnp.float32) * 0.01,
        "w3": jax.random.normal(keys[7], (32, 1), jnp.float32) / math.sqrt(32),
        "b3": jax.random.normal(keys[8], (1,), jnp.float32) * 0.01,
    }
    return lstm_params, td_params


# ----------------------------- main -----------------------------

if __name__ == "__main__":
    B, T = 2, 8                  # batch, sequence length
    E, H, L = 16, 32, 2          # embedding_dim, hidden_dim, num_layers

    key = jax.random.PRNGKey(0)
    k_in, k_par = jax.random.split(key)
    inputs = jax.random.normal(k_in, (B, T, E), jnp.float32)      # batch_first like PyTorch

    lstm_params, td_params = init_params(k_par, E, H, L)
    packed = pack_params(lstm_params, td_params)                  # one-time weight repack

    out = lstmnet_forward(inputs, packed)
    out = jax.block_until_ready(out)
    assert out.shape == (B, T), out.shape
    assert bool(jnp.all(jnp.isfinite(out)))
    assert bool(jnp.all((out >= 0.0) & (out <= 1.0)))             # sigmoid output range
    print("KERNEL_OK")
</pallas_src>

<mosaic_0001>
module attributes {stable_mosaic.version = 11 : i64} {
  func.func @kernel(%arg0: memref<16x16xf32, #tpu.memory_space<vmem>>, %arg1: memref<16x256xf32, #tpu.memory_space<vmem>>, %arg2: memref<64x128xf32, #tpu.memory_space<vmem>>, %arg3: memref<1x256xf32, #tpu.memory_space<vmem>>, %arg4: memref<64x256xf32, #tpu.memory_space<vmem>>, %arg5: memref<64x128xf32, #tpu.memory_space<vmem>>, %arg6: memref<1x256xf32, #tpu.memory_space<vmem>>, %arg7: memref<1x64xf32, #tpu.memory_space<vmem>>, %arg8: memref<1x64xf32, #tpu.memory_space<vmem>>, %arg9: memref<64x128xf32, #tpu.memory_space<vmem>>, %arg10: memref<1x128xf32, #tpu.memory_space<vmem>>, %arg11: memref<128x32xf32, #tpu.memory_space<vmem>>, %arg12: memref<1x32xf32, #tpu.memory_space<vmem>>, %arg13: memref<1x32xf32, #tpu.memory_space<vmem>>, %arg14: memref<1x1xf32, #tpu.memory_space<vmem>>, %arg15: memref<16x1xf32, #tpu.memory_space<vmem>>, %arg16: memref<16x256xf32, #tpu.memory_space<vmem>>, %arg17: memref<16x64xf32, #tpu.memory_space<vmem>>, %arg18: memref<16x64xf32, #tpu.memory_space<vmem>>) attributes {dimension_semantics = [], scalar_prefetch = 0 : i64, scratch_operands = 3 : i64, tpu.core_type = #tpu.core_type<tc>} {
    %0 = tpu.iota {dimensions = array<i32: 1>} : vector<2x128xi32>
    %c64_i32 = arith.constant 64 : i32
    %1 = vector.broadcast %c64_i32 : i32 to vector<2x128xi32>
    %2 = arith.cmpi sge, %0, %1 : vector<2x128xi32>
    %c96_i32 = arith.constant 96 : i32
    %3 = vector.broadcast %c96_i32 : i32 to vector<2x128xi32>
    %4 = arith.cmpi slt, %0, %3 : vector<2x128xi32>
    %5 = arith.andi %2, %4 : vector<2x128xi1>
    %c0 = arith.constant 0 : index
    %c0_0 = arith.constant 0 : index
    %6 = vector.load %arg0[%c0, %c0_0] : memref<16x16xf32, #tpu.memory_space<vmem>>, vector<16x16xf32>
    %c0_1 = arith.constant 0 : index
    %c0_2 = arith.constant 0 : index
    %7 = vector.load %arg1[%c0_1, %c0_2] : memref<16x256xf32, #tpu.memory_space<vmem>>, vector<16x256xf32>
    %cst = arith.constant dense<0.000000e+00> : vector<16x256xf32>
    %8 = tpu.matmul %6, %7, %cst {dimension_numbers = #tpu.dot_dimension_numbers<[1], [0], [0], [1], [0, 0, 1, 1], [], []>} : vector<16x16xf32>, vector<16x256xf32>, vector<16x256xf32> -> vector<16x256xf32>
    %c0_3 = arith.constant 0 : index
    %c0_4 = arith.constant 0 : index
    %9 = vector.load %arg3[%c0_3, %c0_4] : memref<1x256xf32, #tpu.memory_space<vmem>>, vector<1x256xf32>
    %10 = vector.broadcast %9 : vector<1x256xf32> to vector<16x256xf32>
    %11 = arith.addf %8, %10 : vector<16x256xf32>
    %c0_5 = arith.constant 0 : index
    %c0_6 = arith.constant 0 : index
    %12 = vector.load %arg16[%c0_5, %c0_6] : memref<16x256xf32, #tpu.memory_space<vmem>>, vector<16x256xf32>
    tpu.vector_store %arg16[%c0_5, %c0_6], %11 {strides = array<i32>} : memref<16x256xf32, #tpu.memory_space<vmem>>, vector<16x256xf32>,
    %c0_7 = arith.constant 0 : index
    %c0_8 = arith.constant 0 : index
    %13 = vector.load %arg2[%c0_7, %c0_8] : memref<64x128xf32, #tpu.memory_space<vmem>>, vector<64x128xf32>
    %14 = vector.extract_strided_slice %13 {offsets = [0, 0], sizes = [32, 128], strides = [1, 1]} : vector<64x128xf32> to vector<32x128xf32>
    %15 = vector.extract_strided_slice %13 {offsets = [32, 0], sizes = [32, 128], strides = [1, 1]} : vector<64x128xf32> to vector<32x128xf32>
    %cst_9 = arith.constant 0.000000e+00 : f32
    %16 = vector.broadcast %cst_9 : f32 to vector<2x32xf32>
    %c0_i32 = arith.constant 0 : i32
    %c7_i32 = arith.constant 7 : i32
    %17 = arith.subi %c7_i32, %c0_i32 : i32
    %c2_i32 = arith.constant 2 : i32
    %18 = arith.muli %c0_i32, %c2_i32 : i32
    %19 = arith.index_cast %18 : i32 to index
    %c0_10 = arith.constant 0 : index
    %20 = vector.load %arg16[%19, %c0_10] : memref<16x256xf32, #tpu.memory_space<vmem>>, vector<2x128xf32>
    %c2_i32_11 = arith.constant 2 : i32
    %21 = arith.muli %17, %c2_i32_11 : i32
    %22 = arith.index_cast %21 : i32 to index
    %c128 = arith.constant 128 : index
    %23 = vector.load %arg16[%22, %c128] : memref<16x256xf32, #tpu.memory_space<vmem>>, vector<2x128xf32>
    %cst_12 = arith.constant dense<0.000000e+00> : vector<2x128xf32>
    %24 = tpu.matmul %16, %14, %cst_12 {dimension_numbers = #tpu.dot_dimension_numbers<[1], [0], [0], [1], [0, 0, 1, 1], [], []>} : vector<2x32xf32>, vector<32x128xf32>, vector<2x128xf32> -> vector<2x128xf32>
    %25 = arith.addf %20, %24 : vector<2x128xf32>
    %cst_13 = arith.constant dense<0.000000e+00> : vector<2x128xf32>
    %26 = tpu.matmul %16, %15, %cst_13 {dimension_numbers = #tpu.dot_dimension_numbers<[1], [0], [0], [1], [0, 0, 1, 1], [], []>} : vector<2x32xf32>, vector<32x128xf32>, vector<2x128xf32> -> vector<2x128xf32>
    %27 = arith.addf %23, %26 : vector<2x128xf32>
    %28 = arith.negf %25 : vector<2x128xf32>
    %29 = math.exp %28 : vector<2x128xf32>
    %cst_14 = arith.constant 1.000000e+00 : f32
    %30 = vector.broadcast %cst_14 : f32 to vector<2x128xf32>
    %31 = arith.addf %30, %29 : vector<2x128xf32>
    %32 = arith.divf %30, %31 : vector<2x128xf32>
    %33 = arith.negf %27 : vector<2x128xf32>
    %34 = math.exp %33 : vector<2x128xf32>
    %cst_15 = arith.constant 1.000000e+00 : f32
    %35 = vector.broadcast %cst_15 : f32 to vector<2x128xf32>
    %36 = arith.addf %35, %34 : vector<2x128xf32>
    %37 = arith.divf %35, %36 : vector<2x128xf32>
    %cst_16 = arith.constant 2.000000e+00 : f32
    %38 = vector.broadcast %cst_16 : f32 to vector<2x128xf32>
    %39 = arith.mulf %38, %32 : vector<2x128xf32>
    %cst_17 = arith.constant 1.000000e+00 : f32
    %40 = vector.broadcast %cst_17 : f32 to vector<2x128xf32>
    %41 = arith.subf %39, %40 : vector<2x128xf32>
    %42 = arith.select %5, %41, %32 : vector<2x128xi1>, vector<2x128xf32>
    %cst_18 = arith.constant 2.000000e+00 : f32
    %43 = vector.broadcast %cst_18 : f32 to vector<2x128xf32>
    %44 = arith.mulf %43, %37 : vector<2x128xf32>
    %cst_19 = arith.constant 1.000000e+00 : f32
    %45 = vector.broadcast %cst_19 : f32 to vector<2x128xf32>
    %46 = arith.subf %44, %45 : vector<2x128xf32>
    %47 = arith.select %5, %46, %37 : vector<2x128xi1>, vector<2x128xf32>
    %48 = vector.extract_strided_slice %42 {offsets = [0, 32], sizes = [2, 32], strides = [1, 1]} : vector<2x128xf32> to vector<2x32xf32>
    %49 = arith.mulf %48, %16 : vector<2x32xf32>
    %50 = vector.extract_strided_slice %42 {offsets = [0, 0], sizes = [2, 32], strides = [1, 1]} : vector<2x128xf32> to vector<2x32xf32>
    %51 = vector.extract_strided_slice %42 {offsets = [0, 64], sizes = [2, 32], strides = [1, 1]} : vector<2x128xf32> to vector<2x32xf32>
    %52 = arith.mulf %50, %51 : vector<2x32xf32>
    %53 = arith.addf %49, %52 : vector<2x32xf32>
    %54 = vector.extract_strided_slice %47 {offsets = [0, 32], sizes = [2, 32], strides = [1, 1]} : vector<2x128xf32> to vector<2x32xf32>
    %55 = arith.mulf %54, %16 : vector<2x32xf32>
    %56 = vector.extract_strided_slice %47 {offsets = [0, 0], sizes = [2, 32], strides = [1, 1]} : vector<2x128xf32> to vector<2x32xf32>
    %57 = vector.extract_strided_slice %47 {offsets = [0, 64], sizes = [2, 32], strides = [1, 1]} : vector<2x128xf32> to vector<2x32xf32>
    %58 = arith.mulf %56, %57 : vector<2x32xf32>
    %59 = arith.addf %55, %58 : vector<2x32xf32>
    %60 = vector.extract_strided_slice %42 {offsets = [0, 96], sizes = [2, 32], strides = [1, 1]} : vector<2x128xf32> to vector<2x32xf32>
    %61 = math.tanh %53 : vector<2x32xf32>
    %62 = arith.mulf %60, %61 : vector<2x32xf32>
    %63 = vector.extract_strided_slice %47 {offsets = [0, 96], sizes = [2, 32], strides = [1, 1]} : vector<2x128xf32> to vector<2x32xf32>
    %64 = math.tanh %59 : vector<2x32xf32>
    %65 = arith.mulf %63, %64 : vector<2x32xf32>
    %c2_i32_20 = arith.constant 2 : i32
    %66 = arith.muli %c0_i32, %c2_i32_20 : i32
    %67 = arith.index_cast %66 : i32 to index
    %c0_21 = arith.constant 0 : index
    %68 = vector.load %arg17[%67, %c0_21] : memref<16x64xf32, #tpu.memory_space<vmem>>, vector<2x32xf32>
    tpu.vector_store %arg17[%67, %c0_21], %62 {strides = array<i32>} : memref<16x64xf32, #tpu.memory_space<vmem>>, vector<2x32xf32>,
    %c2_i32_22 = arith.constant 2 : i32
    %69 = arith.muli %17, %c2_i32_22 : i32
    %70 = arith.index_cast %69 : i32 to index
    %c32 = arith.constant 32 : index
    %71 = vector.load %arg17[%70, %c32] : memref<16x64xf32, #tpu.memory_space<vmem>>, vector<2x32xf32>
    tpu.vector_store %arg17[%70, %c32], %65 {strides = array<i32>} : memref<16x64xf32, #tpu.memory_space<vmem>>, vector<2x32xf32>,
    %c1_i32 = arith.constant 1 : i32
    %c7_i32_23 = arith.constant 7 : i32
    %72 = arith.subi %c7_i32_23, %c1_i32 : i32
    %c2_i32_24 = arith.constant 2 : i32
    %73 = arith.muli %c1_i32, %c2_i32_24 : i32
    %74 = arith.index_cast %73 : i32 to index
    %c0_25 = arith.constant 0 : index
    %75 = vector.load %arg16[%74, %c0_25] : memref<16x256xf32, #tpu.memory_space<vmem>>, vector<2x128xf32>
    %c2_i32_26 = arith.constant 2 : i32
    %76 = arith.muli %72, %c2_i32_26 : i32
    %77 = arith.index_cast %76 : i32 to index
    %c128_27 = arith.constant 128 : index
    %78 = vector.load %arg16[%77, %c128_27] : memref<16x256xf32, #tpu.memory_space<vmem>>, vector<2x128xf32>
    %cst_28 = arith.constant dense<0.000000e+00> : vector<2x128xf32>
    %79 = tpu.matmul %62, %14, %cst_28 {dimension_numbers = #tpu.dot_dimension_numbers<[1], [0], [0], [1], [0, 0, 1, 1], [], []>} : vector<2x32xf32>, vector<32x128xf32>, vector<2x128xf32> -> vector<2x128xf32>
    %80 = arith.addf %75, %79 : vector<2x128xf32>
    %cst_29 = arith.constant dense<0.000000e+00> : vector<2x128xf32>
    %81 = tpu.matmul %65, %15, %cst_29 {dimension_numbers = #tpu.dot_dimension_numbers<[1], [0], [0], [1], [0, 0, 1, 1], [], []>} : vector<2x32xf32>, vector<32x128xf32>, vector<2x128xf32> -> vector<2x128xf32>
    %82 = arith.addf %78, %81 : vector<2x128xf32>
    %83 = arith.negf %80 : vector<2x128xf32>
    %84 = math.exp %83 : vector<2x128xf32>
    %cst_30 = arith.constant 1.000000e+00 : f32
    %85 = vector.broadcast %cst_30 : f32 to vector<2x128xf32>
    %86 = arith.addf %85, %84 : vector<2x128xf32>
    %87 = arith.divf %85, %86 : vector<2x128xf32>
    %88 = arith.negf %82 : vector<2x128xf32>
    %89 = math.exp %88 : vector<2x128xf32>
    %cst_31 = arith.constant 1.000000e+00 : f32
    %90 = vector.broadcast %cst_31 : f32 to vector<2x128xf32>
    %91 = arith.addf %90, %89 : vector<2x128xf32>
    %92 = arith.divf %90, %91 : vector<2x128xf32>
    %cst_32 = arith.constant 2.000000e+00 : f32
    %93 = vector.broadcast %cst_32 : f32 to vector<2x128xf32>
    %94 = arith.mulf %93, %87 : vector<2x128xf32>
    %cst_33 = arith.constant 1.000000e+00 : f32
    %95 = vector.broadcast %cst_33 : f32 to vector<2x128xf32>
    %96 = arith.subf %94, %95 : vector<2x128xf32>
    %97 = arith.select %5, %96, %87 : vector<2x128xi1>, vector<2x128xf32>
    %cst_34 = arith.constant 2.000000e+00 : f32
    %98 = vector.broadcast %cst_34 : f32 to vector<2x128xf32>
    %99 = arith.mulf %98, %92 : vector<2x128xf32>
    %cst_35 = arith.constant 1.000000e+00 : f32
    %100 = vector.broadcast %cst_35 : f32 to vector<2x128xf32>
    %101 = arith.subf %99, %100 : vector<2x128xf32>
    %102 = arith.select %5, %101, %92 : vector<2x128xi1>, vector<2x128xf32>
    %103 = vector.extract_strided_slice %97 {offsets = [0, 32], sizes = [2, 32], strides = [1, 1]} : vector<2x128xf32> to vector<2x32xf32>
    %104 = arith.mulf %103, %53 : vector<2x32xf32>
    %105 = vector.extract_strided_slice %97 {offsets = [0, 0], sizes = [2, 32], strides = [1, 1]} : vector<2x128xf32> to vector<2x32xf32>
    %106 = vector.extract_strided_slice %97 {offsets = [0, 64], sizes = [2, 32], strides = [1, 1]} : vector<2x128xf32> to vector<2x32xf32>
    %107 = arith.mulf %105, %106 : vector<2x32xf32>
    %108 = arith.addf %104, %107 : vector<2x32xf32>
    %109 = vector.extract_strided_slice %102 {offsets = [0, 32], sizes = [2, 32], strides = [1, 1]} : vector<2x128xf32> to vector<2x32xf32>
    %110 = arith.mulf %109, %59 : vector<2x32xf32>
    %111 = vector.extract_strided_slice %102 {offsets = [0, 0], sizes = [2, 32], strides = [1, 1]} : vector<2x128xf32> to vector<2x32xf32>
    %112 = vector.extract_strided_slice %102 {offsets = [0, 64], sizes = [2, 32], strides = [1, 1]} : vector<2x128xf32> to vector<2x32xf32>
    %113 = arith.mulf %111, %112 : vector<2x32xf32>
    %114 = arith.addf %110, %113 : vector<2x32xf32>
    %115 = vector.extract_strided_slice %97 {offsets = [0, 96], sizes = [2, 32], strides = [1, 1]} : vector<2x128xf32> to vector<2x32xf32>
    %116 = math.tanh %108 : vector<2x32xf32>
    %117 = arith.mulf %115, %116 : vector<2x32xf32>
    %118 = vector.extract_strided_slice %102 {offsets = [0, 96], sizes = [2, 32], strides = [1, 1]} : vector<2x128xf32> to vector<2x32xf32>
    %119 = math.tanh %114 : vector<2x32xf32>
    %120 = arith.mulf %118, %119 : vector<2x32xf32>
    %c2_i32_36 = arith.constant 2 : i32
    %121 = arith.muli %c1_i32, %c2_i32_36 : i32
    %122 = arith.index_cast %121 : i32 to index
    %c0_37 = arith.constant 0 : index
    %123 = vector.load %arg17[%122, %c0_37] : memref<16x64xf32, #tpu.memory_space<vmem>>, vector<2x32xf32>
    tpu.vector_store %arg17[%122, %c0_37], %117 {strides = array<i32>} : memref<16x64xf32, #tpu.memory_space<vmem>>, vector<2x32xf32>,
    %c2_i32_38 = arith.constant 2 : i32
    %124 = arith.muli %72, %c2_i32_38 : i32
    %125 = arith.index_cast %124 : i32 to index
    %c32_39 = arith.constant 32 : index
    %126 = vector.load %arg17[%125, %c32_39] : memref<16x64xf32, #tpu.memory_space<vmem>>, vector<2x32xf32>
    tpu.vector_store %arg17[%125, %c32_39], %120 {strides = array<i32>} : memref<16x64xf32, #tpu.memory_space<vmem>>, vector<2x32xf32>,
    %c2_i32_40 = arith.constant 2 : i32
    %c7_i32_41 = arith.constant 7 : i32
    %127 = arith.subi %c7_i32_41, %c2_i32_40 : i32
    %c2_i32_42 = arith.constant 2 : i32
    %128 = arith.muli %c2_i32_40, %c2_i32_42 : i32
    %129 = arith.index_cast %128 : i32 to index
    %c0_43 = arith.constant 0 : index
    %130 = vector.load %arg16[%129, %c0_43] : memref<16x256xf32, #tpu.memory_space<vmem>>, vector<2x128xf32>
    %c2_i32_44 = arith.constant 2 : i32
    %131 = arith.muli %127, %c2_i32_44 : i32
    %132 = arith.index_cast %131 : i32 to index
    %c128_45 = arith.constant 128 : index
    %133 = vector.load %arg16[%132, %c128_45] : memref<16x256xf32, #tpu.memory_space<vmem>>, vector<2x128xf32>
    %cst_46 = arith.constant dense<0.000000e+00> : vector<2x128xf32>
    %134 = tpu.matmul %117, %14, %cst_46 {dimension_numbers = #tpu.dot_dimension_numbers<[1], [0], [0], [1], [0, 0, 1, 1], [], []>} : vector<2x32xf32>, vector<32x128xf32>, vector<2x128xf32> -> vector<2x128xf32>
    %135 = arith.addf %130, %134 : vector<2x128xf32>
    %cst_47 = arith.constant dense<0.000000e+00> : vector<2x128xf32>
    %136 = tpu.matmul %120, %15, %cst_47 {dimension_numbers = #tpu.dot_dimension_numbers<[1], [0], [0], [1], [0, 0, 1, 1], [], []>} : vector<2x32xf32>, vector<32x128xf32>, vector<2x128xf32> -> vector<2x128xf32>
    %137 = arith.addf %133, %136 : vector<2x128xf32>
    %138 = arith.negf %135 : vector<2x128xf32>
    %139 = math.exp %138 : vector<2x128xf32>
    %cst_48 = arith.constant 1.000000e+00 : f32
    %140 = vector.broadcast %cst_48 : f32 to vector<2x128xf32>
    %141 = arith.addf %140, %139 : vector<2x128xf32>
    %142 = arith.divf %140, %141 : vector<2x128xf32>
    %143 = arith.negf %137 : vector<2x128xf32>
    %144 = math.exp %143 : vector<2x128xf32>
    %cst_49 = arith.constant 1.000000e+00 : f32
    %145 = vector.broadcast %cst_49 : f32 to vector<2x128xf32>
    %146 = arith.addf %145, %144 : vector<2x128xf32>
    %147 = arith.divf %145, %146 : vector<2x128xf32>
    %cst_50 = arith.constant 2.000000e+00 : f32
    %148 = vector.broadcast %cst_50 : f32 to vector<2x128xf32>
    %149 = arith.mulf %148, %142 : vector<2x128xf32>
    %cst_51 = arith.constant 1.000000e+00 : f32
    %150 = vector.broadcast %cst_51 : f32 to vector<2x128xf32>
    %151 = arith.subf %149, %150 : vector<2x128xf32>
    %152 = arith.select %5, %151, %142 : vector<2x128xi1>, vector<2x128xf32>
    %cst_52 = arith.constant 2.000000e+00 : f32
    %153 = vector.broadcast %cst_52 : f32 to vector<2x128xf32>
    %154 = arith.mulf %153, %147 : vector<2x128xf32>
    %cst_53 = arith.constant 1.000000e+00 : f32
    %155 = vector.broadcast %cst_53 : f32 to vector<2x128xf32>
    %156 = arith.subf %154, %155 : vector<2x128xf32>
    %157 = arith.select %5, %156, %147 : vector<2x128xi1>, vector<2x128xf32>
    %158 = vector.extract_strided_slice %152 {offsets = [0, 32], sizes = [2, 32], strides = [1, 1]} : vector<2x128xf32> to vector<2x32xf32>
    %159 = arith.mulf %158, %108 : vector<2x32xf32>
    %160 = vector.extract_strided_slice %152 {offsets = [0, 0], sizes = [2, 32], strides = [1, 1]} : vector<2x128xf32> to vector<2x32xf32>
    %161 = vector.extract_strided_slice %152 {offsets = [0, 64], sizes = [2, 32], strides = [1, 1]} : vector<2x128xf32> to vector<2x32xf32>
    %162 = arith.mulf %160, %161 : vector<2x32xf32>
    %163 = arith.addf %159, %162 : vector<2x32xf32>
    %164 = vector.extract_strided_slice %157 {offsets = [0, 32], sizes = [2, 32], strides = [1, 1]} : vector<2x128xf32> to vector<2x32xf32>
    %165 = arith.mulf %164, %114 : vector<2x32xf32>
    %166 = vector.extract_strided_slice %157 {offsets = [0, 0], sizes = [2, 32], strides = [1, 1]} : vector<2x128xf32> to vector<2x32xf32>
    %167 = vector.extract_strided_slice %157 {offsets = [0, 64], sizes = [2, 32], strides = [1, 1]} : vector<2x128xf32> to vector<2x32xf32>
    %168 = arith.mulf %166, %167 : vector<2x32xf32>
    %169 = arith.addf %165, %168 : vector<2x32xf32>
    %170 = vector.extract_strided_slice %152 {offsets = [0, 96], sizes = [2, 32], strides = [1, 1]} : vector<2x128xf32> to vector<2x32xf32>
    %171 = math.tanh %163 : vector<2x32xf32>
    %172 = arith.mulf %170, %171 : vector<2x32xf32>
    %173 = vector.extract_strided_slice %157 {offsets = [0, 96], sizes = [2, 32], strides = [1, 1]} : vector<2x128xf32> to vector<2x32xf32>
    %174 = math.tanh %169 : vector<2x32xf32>
    %175 = arith.mulf %173, %174 : vector<2x32xf32>
    %c2_i32_54 = arith.constant 2 : i32
    %176 = arith.muli %c2_i32_40, %c2_i32_54 : i32
    %177 = arith.index_cast %176 : i32 to index
    %c0_55 = arith.constant 0 : index
    %178 = vector.load %arg17[%177, %c0_55] : memref<16x64xf32, #tpu.memory_space<vmem>>, vector<2x32xf32>
    tpu.vector_store %arg17[%177, %c0_55], %172 {strides = array<i32>} : memref<16x64xf32, #tpu.memory_space<vmem>>, vector<2x32xf32>,
    %c2_i32_56 = arith.constant 2 : i32
    %179 = arith.muli %127, %c2_i32_56 : i32
    %180 = arith.index_cast %179 : i32 to index
    %c32_57 = arith.constant 32 : index
    %181 = vector.load %arg17[%180, %c32_57] : memref<16x64xf32, #tpu.memory_space<vmem>>, vector<2x32xf32>
    tpu.vector_store %arg17[%180, %c32_57], %175 {strides = array<i32>} : memref<16x64xf32, #tpu.memory_space<vmem>>, vector<2x32xf32>,
    %c3_i32 = arith.constant 3 : i32
    %c7_i32_58 = arith.constant 7 : i32
    %182 = arith.subi %c7_i32_58, %c3_i32 : i32
    %c2_i32_59 = arith.constant 2 : i32
    %183 = arith.muli %c3_i32, %c2_i32_59 : i32
    %184 = arith.index_cast %183 : i32 to index
    %c0_60 = arith.constant 0 : index
    %185 = vector.load %arg16[%184, %c0_60] : memref<16x256xf32, #tpu.memory_space<vmem>>, vector<2x128xf32>
    %c2_i32_61 = arith.constant 2 : i32
    %186 = arith.muli %182, %c2_i32_61 : i32
    %187 = arith.index_cast %186 : i32 to index
    %c128_62 = arith.constant 128 : index
    %188 = vector.load %arg16[%187, %c128_62] : memref<16x256xf32, #tpu.memory_space<vmem>>, vector<2x128xf32>
    %cst_63 = arith.constant dense<0.000000e+00> : vector<2x128xf32>
    %189 = tpu.matmul %172, %14, %cst_63 {dimension_numbers = #tpu.dot_dimension_numbers<[1], [0], [0], [1], [0, 0, 1, 1], [], []>} : vector<2x32xf32>, vector<32x128xf32>, vector<2x128xf32> -> vector<2x128xf32>
    %190 = arith.addf %185, %189 : vector<2x128xf32>
    %cst_64 = arith.constant dense<0.000000e+00> : vector<2x128xf32>
    %191 = tpu.matmul %175, %15, %cst_64 {dimension_numbers = #tpu.dot_dimension_numbers<[1], [0], [0], [1], [0, 0, 1, 1], [], []>} : vector<2x32xf32>, vector<32x128xf32>, vector<2x128xf32> -> vector<2x128xf32>
    %192 = arith.addf %188, %191 : vector<2x128xf32>
    %193 = arith.negf %190 : vector<2x128xf32>
    %194 = math.exp %193 : vector<2x128xf32>
    %cst_65 = arith.constant 1.000000e+00 : f32
    %195 = vector.broadcast %cst_65 : f32 to vector<2x128xf32>
    %196 = arith.addf %195, %194 : vector<2x128xf32>
    %197 = arith.divf %195, %196 : vector<2x128xf32>
    %198 = arith.negf %192 : vector<2x128xf32>
    %199 = math.exp %198 : vector<2x128xf32>
    %cst_66 = arith.constant 1.000000e+00 : f32
    %200 = vector.broadcast %cst_66 : f32 to vector<2x128xf32>
    %201 = arith.addf %200, %199 : vector<2x128xf32>
    %202 = arith.divf %200, %201 : vector<2x128xf32>
    %cst_67 = arith.constant 2.000000e+00 : f32
    %203 = vector.broadcast %cst_67 : f32 to vector<2x128xf32>
    %204 = arith.mulf %203, %197 : vector<2x128xf32>
    %cst_68 = arith.constant 1.000000e+00 : f32
    %205 = vector.broadcast %cst_68 : f32 to vector<2x128xf32>
    %206 = arith.subf %204, %205 : vector<2x128xf32>
    %207 = arith.select %5, %206, %197 : vector<2x128xi1>, vector<2x128xf32>
    %cst_69 = arith.constant 2.000000e+00 : f32
    %208 = vector.broadcast %cst_69 : f32 to vector<2x128xf32>
    %209 = arith.mulf %208, %202 : vector<2x128xf32>
    %cst_70 = arith.constant 1.000000e+00 : f32
    %210 = vector.broadcast %cst_70 : f32 to vector<2x128xf32>
    %211 = arith.subf %209, %210 : vector<2x128xf32>
    %212 = arith.select %5, %211, %202 : vector<2x128xi1>, vector<2x128xf32>
    %213 = vector.extract_strided_slice %207 {offsets = [0, 32], sizes = [2, 32], strides = [1, 1]} : vector<2x128xf32> to vector<2x32xf32>
    %214 = arith.mulf %213, %163 : vector<2x32xf32>
    %215 = vector.extract_strided_slice %207 {offsets = [0, 0], sizes = [2, 32], strides = [1, 1]} : vector<2x128xf32> to vector<2x32xf32>
    %216 = vector.extract_strided_slice %207 {offsets = [0, 64], sizes = [2, 32], strides = [1, 1]} : vector<2x128xf32> to vector<2x32xf32>
    %217 = arith.mulf %215, %216 : vector<2x32xf32>
    %218 = arith.addf %214, %217 : vector<2x32xf32>
    %219 = vector.extract_strided_slice %212 {offsets = [0, 32], sizes = [2, 32], strides = [1, 1]} : vector<2x128xf32> to vector<2x32xf32>
    %220 = arith.mulf %219, %169 : vector<2x32xf32>
    %221 = vector.extract_strided_slice %212 {offsets = [0, 0], sizes = [2, 32], strides = [1, 1]} : vector<2x128xf32> to vector<2x32xf32>
    %222 = vector.extract_strided_slice %212 {offsets = [0, 64], sizes = [2, 32], strides = [1, 1]} : vector<2x128xf32> to vector<2x32xf32>
    %223 = arith.mulf %221, %222 : vector<2x32xf32>
    %224 = arith.addf %220, %223 : vector<2x32xf32>
    %225 = vector.extract_strided_slice %207 {offsets = [0, 96], sizes = [2, 32], strides = [1, 1]} : vector<2x128xf32> to vector<2x32xf32>
    %226 = math.tanh %218 : vector<2x32xf32>
    %227 = arith.mulf %225, %226 : vector<2x32xf32>
    %228 = vector.extract_strided_slice %212 {offsets = [0, 96], sizes = [2, 32], strides = [1, 1]} : vector<2x128xf32> to vector<2x32xf32>
    %229 = math.tanh %224 : vector<2x32xf32>
    %230 = arith.mulf %228, %229 : vector<2x32xf32>
    %c2_i32_71 = arith.constant 2 : i32
    %231 = arith.muli %c3_i32, %c2_i32_71 : i32
    %232 = arith.index_cast %231 : i32 to index
    %c0_72 = arith.constant 0 : index
    %233 = vector.load %arg17[%232, %c0_72] : memref<16x64xf32, #tpu.memory_space<vmem>>, vector<2x32xf32>
    tpu.vector_store %arg17[%232, %c0_72], %227 {strides = array<i32>} : memref<16x64xf32, #tpu.memory_space<vmem>>, vector<2x32xf32>,
    %c2_i32_73 = arith.constant 2 : i32
    %234 = arith.muli %182, %c2_i32_73 : i32
    %235 = arith.index_cast %234 : i32 to index
    %c32_74 = arith.constant 32 : index
    %236 = vector.load %arg17[%235, %c32_74] : memref<16x64xf32, #tpu.memory_space<vmem>>, vector<2x32xf32>
    tpu.vector_store %arg17[%235, %c32_74], %230 {strides = array<i32>} : memref<16x64xf32, #tpu.memory_space<vmem>>, vector<2x32xf32>,
    %c4_i32 = arith.constant 4 : i32
    %c7_i32_75 = arith.constant 7 : i32
    %237 = arith.subi %c7_i32_75, %c4_i32 : i32
    %c2_i32_76 = arith.constant 2 : i32
    %238 = arith.muli %c4_i32, %c2_i32_76 : i32
    %239 = arith.index_cast %238 : i32 to index
    %c0_77 = arith.constant 0 : index
    %240 = vector.load %arg16[%239, %c0_77] : memref<16x256xf32, #tpu.memory_space<vmem>>, vector<2x128xf32>
    %c2_i32_78 = arith.constant 2 : i32
    %241 = arith.muli %237, %c2_i32_78 : i32
    %242 = arith.index_cast %241 : i32 to index
    %c128_79 = arith.constant 128 : index
    %243 = vector.load %arg16[%242, %c128_79] : memref<16x256xf32, #tpu.memory_space<vmem>>, vector<2x128xf32>
    %cst_80 = arith.constant dense<0.000000e+00> : vector<2x128xf32>
    %244 = tpu.matmul %227, %14, %cst_80 {dimension_numbers = #tpu.dot_dimension_numbers<[1], [0], [0], [1], [0, 0, 1, 1], [], []>} : vector<2x32xf32>, vector<32x128xf32>, vector<2x128xf32> -> vector<2x128xf32>
    %245 = arith.addf %240, %244 : vector<2x128xf32>
    %cst_81 = arith.constant dense<0.000000e+00> : vector<2x128xf32>
    %246 = tpu.matmul %230, %15, %cst_81 {dimension_numbers = #tpu.dot_dimension_numbers<[1], [0], [0], [1], [0, 0, 1, 1], [], []>} : vector<2x32xf32>, vector<32x128xf32>, vector<2x128xf32> -> vector<2x128xf32>
    %247 = arith.addf %243, %246 : vector<2x128xf32>
    %248 = arith.negf %245 : vector<2x128xf32>
    %249 = math.exp %248 : vector<2x128xf32>
    %cst_82 = arith.constant 1.000000e+00 : f32
    %250 = vector.broadcast %cst_82 : f32 to vector<2x128xf32>
    %251 = arith.addf %250, %249 : vector<2x128xf32>
    %252 = arith.divf %250, %251 : vector<2x128xf32>
    %253 = arith.negf %247 : vector<2x128xf32>
    %254 = math.exp %253 : vector<2x128xf32>
    %cst_83 = arith.constant 1.000000e+00 : f32
    %255 = vector.broadcast %cst_83 : f32 to vector<2x128xf32>
    %256 = arith.addf %255, %254 : vector<2x128xf32>
    %257 = arith.divf %255, %256 : vector<2x128xf32>
    %cst_84 = arith.constant 2.000000e+00 : f32
    %258 = vector.broadcast %cst_84 : f32 to vector<2x128xf32>
    %259 = arith.mulf %258, %252 : vector<2x128xf32>
    %cst_85 = arith.constant 1.000000e+00 : f32
    %260 = vector.broadcast %cst_85 : f32 to vector<2x128xf32>
    %261 = arith.subf %259, %260 : vector<2x128xf32>
    %262 = arith.select %5, %261, %252 : vector<2x128xi1>, vector<2x128xf32>
    %cst_86 = arith.constant 2.000000e+00 : f32
    %263 = vector.broadcast %cst_86 : f32 to vector<2x128xf32>
    %264 = arith.mulf %263, %257 : vector<2x128xf32>
    %cst_87 = arith.constant 1.000000e+00 : f32
    %265 = vector.broadcast %cst_87 : f32 to vector<2x128xf32>
    %266 = arith.subf %264, %265 : vector<2x128xf32>
    %267 = arith.select %5, %266, %257 : vector<2x128xi1>, vector<2x128xf32>
    %268 = vector.extract_strided_slice %262 {offsets = [0, 32], sizes = [2, 32], strides = [1, 1]} : vector<2x128xf32> to vector<2x32xf32>
    %269 = arith.mulf %268, %218 : vector<2x32xf32>
    %270 = vector.extract_strided_slice %262 {offsets = [0, 0], sizes = [2, 32], strides = [1, 1]} : vector<2x128xf32> to vector<2x32xf32>
    %271 = vector.extract_strided_slice %262 {offsets = [0, 64], sizes = [2, 32], strides = [1, 1]} : vector<2x128xf32> to vector<2x32xf32>
    %272 = arith.mulf %270, %271 : vector<2x32xf32>
    %273 = arith.addf %269, %272 : vector<2x32xf32>
    %274 = vector.extract_strided_slice %267 {offsets = [0, 32], sizes = [2, 32], strides = [1, 1]} : vector<2x128xf32> to vector<2x32xf32>
    %275 = arith.mulf %274, %224 : vector<2x32xf32>
    %276 = vector.extract_strided_slice %267 {offsets = [0, 0], sizes = [2, 32], strides = [1, 1]} : vector<2x128xf32> to vector<2x32xf32>
    %277 = vector.extract_strided_slice %267 {offsets = [0, 64], sizes = [2, 32], strides = [1, 1]} : vector<2x128xf32> to vector<2x32xf32>
    %278 = arith.mulf %276, %277 : vector<2x32xf32>
    %279 = arith.addf %275, %278 : vector<2x32xf32>
    %280 = vector.extract_strided_slice %262 {offsets = [0, 96], sizes = [2, 32], strides = [1, 1]} : vector<2x128xf32> to vector<2x32xf32>
    %281 = math.tanh %273 : vector<2x32xf32>
    %282 = arith.mulf %280, %281 : vector<2x32xf32>
    %283 = vector.extract_strided_slice %267 {offsets = [0, 96], sizes = [2, 32], strides = [1, 1]} : vector<2x128xf32> to vector<2x32xf32>
    %284 = math.tanh %279 : vector<2x32xf32>
    %285 = arith.mulf %283, %284 : vector<2x32xf32>
    %c2_i32_88 = arith.constant 2 : i32
    %286 = arith.muli %c4_i32, %c2_i32_88 : i32
    %287 = arith.index_cast %286 : i32 to index
    %c0_89 = arith.constant 0 : index
    %288 = vector.load %arg17[%287, %c0_89] : memref<16x64xf32, #tpu.memory_space<vmem>>, vector<2x32xf32>
    tpu.vector_store %arg17[%287, %c0_89], %282 {strides = array<i32>} : memref<16x64xf32, #tpu.memory_space<vmem>>, vector<2x32xf32>,
    %c2_i32_90 = arith.constant 2 : i32
    %289 = arith.muli %237, %c2_i32_90 : i32
    %290 = arith.index_cast %289 : i32 to index
    %c32_91 = arith.constant 32 : index
    %291 = vector.load %arg17[%290, %c32_91] : memref<16x64xf32, #tpu.memory_space<vmem>>, vector<2x32xf32>
    tpu.vector_store %arg17[%290, %c32_91], %285 {strides = array<i32>} : memref<16x64xf32, #tpu.memory_space<vmem>>, vector<2x32xf32>,
    %c5_i32 = arith.constant 5 : i32
    %c7_i32_92 = arith.constant 7 : i32
    %292 = arith.subi %c7_i32_92, %c5_i32 : i32
    %c2_i32_93 = arith.constant 2 : i32
    %293 = arith.muli %c5_i32, %c2_i32_93 : i32
    %294 = arith.index_cast %293 : i32 to index
    %c0_94 = arith.constant 0 : index
    %295 = vector.load %arg16[%294, %c0_94] : memref<16x256xf32, #tpu.memory_space<vmem>>, vector<2x128xf32>
    %c2_i32_95 = arith.constant 2 : i32
    %296 = arith.muli %292, %c2_i32_95 : i32
    %297 = arith.index_cast %296 : i32 to index
    %c128_96 = arith.constant 128 : index
    %298 = vector.load %arg16[%297, %c128_96] : memref<16x256xf32, #tpu.memory_space<vmem>>, vector<2x128xf32>
    %cst_97 = arith.constant dense<0.000000e+00> : vector<2x128xf32>
    %299 = tpu.matmul %282, %14, %cst_97 {dimension_numbers = #tpu.dot_dimension_numbers<[1], [0], [0], [1], [0, 0, 1, 1], [], []>} : vector<2x32xf32>, vector<32x128xf32>, vector<2x128xf32> -> vector<2x128xf32>
    %300 = arith.addf %295, %299 : vector<2x128xf32>
    %cst_98 = arith.constant dense<0.000000e+00> : vector<2x128xf32>
    %301 = tpu.matmul %285, %15, %cst_98 {dimension_numbers = #tpu.dot_dimension_numbers<[1], [0], [0], [1], [0, 0, 1, 1], [], []>} : vector<2x32xf32>, vector<32x128xf32>, vector<2x128xf32> -> vector<2x128xf32>
    %302 = arith.addf %298, %301 : vector<2x128xf32>
    %303 = arith.negf %300 : vector<2x128xf32>
    %304 = math.exp %303 : vector<2x128xf32>
    %cst_99 = arith.constant 1.000000e+00 : f32
    %305 = vector.broadcast %cst_99 : f32 to vector<2x128xf32>
    %306 = arith.addf %305, %304 : vector<2x128xf32>
    %307 = arith.divf %305, %306 : vector<2x128xf32>
    %308 = arith.negf %302 : vector<2x128xf32>
    %309 = math.exp %308 : vector<2x128xf32>
    %cst_100 = arith.constant 1.000000e+00 : f32
    %310 = vector.broadcast %cst_100 : f32 to vector<2x128xf32>
    %311 = arith.addf %310, %309 : vector<2x128xf32>
    %312 = arith.divf %310, %311 : vector<2x128xf32>
    %cst_101 = arith.constant 2.000000e+00 : f32
    %313 = vector.broadcast %cst_101 : f32 to vector<2x128xf32>
    %314 = arith.mulf %313, %307 : vector<2x128xf32>
    %cst_102 = arith.constant 1.000000e+00 : f32
    %315 = vector.broadcast %cst_102 : f32 to vector<2x128xf32>
    %316 = arith.subf %314, %315 : vector<2x128xf32>
    %317 = arith.select %5, %316, %307 : vector<2x128xi1>, vector<2x128xf32>
    %cst_103 = arith.constant 2.000000e+00 : f32
    %318 = vector.broadcast %cst_103 : f32 to vector<2x128xf32>
    %319 = arith.mulf %318, %312 : vector<2x128xf32>
    %cst_104 = arith.constant 1.000000e+00 : f32
    %320 = vector.broadcast %cst_104 : f32 to vector<2x128xf32>
    %321 = arith.subf %319, %320 : vector<2x128xf32>
    %322 = arith.select %5, %321, %312 : vector<2x128xi1>, vector<2x128xf32>
    %323 = vector.extract_strided_slice %317 {offsets = [0, 32], sizes = [2, 32], strides = [1, 1]} : vector<2x128xf32> to vector<2x32xf32>
    %324 = arith.mulf %323, %273 : vector<2x32xf32>
    %325 = vector.extract_strided_slice %317 {offsets = [0, 0], sizes = [2, 32], strides = [1, 1]} : vector<2x128xf32> to vector<2x32xf32>
    %326 = vector.extract_strided_slice %317 {offsets = [0, 64], sizes = [2, 32], strides = [1, 1]} : vector<2x128xf32> to vector<2x32xf32>
    %327 = arith.mulf %325, %326 : vector<2x32xf32>
    %328 = arith.addf %324, %327 : vector<2x32xf32>
    %329 = vector.extract_strided_slice %322 {offsets = [0, 32], sizes = [2, 32], strides = [1, 1]} : vector<2x128xf32> to vector<2x32xf32>
    %330 = arith.mulf %329, %279 : vector<2x32xf32>
    %331 = vector.extract_strided_slice %322 {offsets = [0, 0], sizes = [2, 32], strides = [1, 1]} : vector<2x128xf32> to vector<2x32xf32>
    %332 = vector.extract_strided_slice %322 {offsets = [0, 64], sizes = [2, 32], strides = [1, 1]} : vector<2x128xf32> to vector<2x32xf32>
    %333 = arith.mulf %331, %332 : vector<2x32xf32>
    %334 = arith.addf %330, %333 : vector<2x32xf32>
    %335 = vector.extract_strided_slice %317 {offsets = [0, 96], sizes = [2, 32], strides = [1, 1]} : vector<2x128xf32> to vector<2x32xf32>
    %336 = math.tanh %328 : vector<2x32xf32>
    %337 = arith.mulf %335, %336 : vector<2x32xf32>
    %338 = vector.extract_strided_slice %322 {offsets = [0, 96], sizes = [2, 32], strides = [1, 1]} : vector<2x128xf32> to vector<2x32xf32>
    %339 = math.tanh %334 : vector<2x32xf32>
    %340 = arith.mulf %338, %339 : vector<2x32xf32>
    %c2_i32_105 = arith.constant 2 : i32
    %341 = arith.muli %c5_i32, %c2_i32_105 : i32
    %342 = arith.index_cast %341 : i32 to index
    %c0_106 = arith.constant 0 : index
    %343 = vector.load %arg17[%342, %c0_106] : memref<16x64xf32, #tpu.memory_space<vmem>>, vector<2x32xf32>
    tpu.vector_store %arg17[%342, %c0_106], %337 {strides = array<i32>} : memref<16x64xf32, #tpu.memory_space<vmem>>, vector<2x32xf32>,
    %c2_i32_107 = arith.constant 2 : i32
    %344 = arith.muli %292, %c2_i32_107 : i32
    %345 = arith.index_cast %344 : i32 to index
    %c32_108 = arith.constant 32 : index
    %346 = vector.load %arg17[%345, %c32_108] : memref<16x64xf32, #tpu.memory_space<vmem>>, vector<2x32xf32>
    tpu.vector_store %arg17[%345, %c32_108], %340 {strides = array<i32>} : memref<16x64xf32, #tpu.memory_space<vmem>>, vector<2x32xf32>,
    %c6_i32 = arith.constant 6 : i32
    %c7_i32_109 = arith.constant 7 : i32
    %347 = arith.subi %c7_i32_109, %c6_i32 : i32
    %c2_i32_110 = arith.constant 2 : i32
    %348 = arith.muli %c6_i32, %c2_i32_110 : i32
    %349 = arith.index_cast %348 : i32 to index
    %c0_111 = arith.constant 0 : index
    %350 = vector.load %arg16[%349, %c0_111] : memref<16x256xf32, #tpu.memory_space<vmem>>, vector<2x128xf32>
    %c2_i32_112 = arith.constant 2 : i32
    %351 = arith.muli %347, %c2_i32_112 : i32
    %352 = arith.index_cast %351 : i32 to index
    %c128_113 = arith.constant 128 : index
    %353 = vector.load %arg16[%352, %c128_113] : memref<16x256xf32, #tpu.memory_space<vmem>>, vector<2x128xf32>
    %cst_114 = arith.constant dense<0.000000e+00> : vector<2x128xf32>
    %354 = tpu.matmul %337, %14, %cst_114 {dimension_numbers = #tpu.dot_dimension_numbers<[1], [0], [0], [1], [0, 0, 1, 1], [], []>} : vector<2x32xf32>, vector<32x128xf32>, vector<2x128xf32> -> vector<2x128xf32>
    %355 = arith.addf %350, %354 : vector<2x128xf32>
    %cst_115 = arith.constant dense<0.000000e+00> : vector<2x128xf32>
    %356 = tpu.matmul %340, %15, %cst_115 {dimension_numbers = #tpu.dot_dimension_numbers<[1], [0], [0], [1], [0, 0, 1, 1], [], []>} : vector<2x32xf32>, vector<32x128xf32>, vector<2x128xf32> -> vector<2x128xf32>
    %357 = arith.addf %353, %356 : vector<2x128xf32>
    %358 = arith.negf %355 : vector<2x128xf32>
    %359 = math.exp %358 : vector<2x128xf32>
    %cst_116 = arith.constant 1.000000e+00 : f32
    %360 = vector.broadcast %cst_116 : f32 to vector<2x128xf32>
    %361 = arith.addf %360, %359 : vector<2x128xf32>
    %362 = arith.divf %360, %361 : vector<2x128xf32>
    %363 = arith.negf %357 : vector<2x128xf32>
    %364 = math.exp %363 : vector<2x128xf32>
    %cst_117 = arith.constant 1.000000e+00 : f32
    %365 = vector.broadcast %cst_117 : f32 to vector<2x128xf32>
    %366 = arith.addf %365, %364 : vector<2x128xf32>
    %367 = arith.divf %365, %366 : vector<2x128xf32>
    %cst_118 = arith.constant 2.000000e+00 : f32
    %368 = vector.broadcast %cst_118 : f32 to vector<2x128xf32>
    %369 = arith.mulf %368, %362 : vector<2x128xf32>
    %cst_119 = arith.constant 1.000000e+00 : f32
    %370 = vector.broadcast %cst_119 : f32 to vector<2x128xf32>
    %371 = arith.subf %369, %370 : vector<2x128xf32>
    %372 = arith.select %5, %371, %362 : vector<2x128xi1>, vector<2x128xf32>
    %cst_120 = arith.constant 2.000000e+00 : f32
    %373 = vector.broadcast %cst_120 : f32 to vector<2x128xf32>
    %374 = arith.mulf %373, %367 : vector<2x128xf32>
    %cst_121 = arith.constant 1.000000e+00 : f32
    %375 = vector.broadcast %cst_121 : f32 to vector<2x128xf32>
    %376 = arith.subf %374, %375 : vector<2x128xf32>
    %377 = arith.select %5, %376, %367 : vector<2x128xi1>, vector<2x128xf32>
    %378 = vector.extract_strided_slice %372 {offsets = [0, 32], sizes = [2, 32], strides = [1, 1]} : vector<2x128xf32> to vector<2x32xf32>
    %379 = arith.mulf %378, %328 : vector<2x32xf32>
    %380 = vector.extract_strided_slice %372 {offsets = [0, 0], sizes = [2, 32], strides = [1, 1]} : vector<2x128xf32> to vector<2x32xf32>
    %381 = vector.extract_strided_slice %372 {offsets = [0, 64], sizes = [2, 32], strides = [1, 1]} : vector<2x128xf32> to vector<2x32xf32>
    %382 = arith.mulf %380, %381 : vector<2x32xf32>
    %383 = arith.addf %379, %382 : vector<2x32xf32>
    %384 = vector.extract_strided_slice %377 {offsets = [0, 32], sizes = [2, 32], strides = [1, 1]} : vector<2x128xf32> to vector<2x32xf32>
    %385 = arith.mulf %384, %334 : vector<2x32xf32>
    %386 = vector.extract_strided_slice %377 {offsets = [0, 0], sizes = [2, 32], strides = [1, 1]} : vector<2x128xf32> to vector<2x32xf32>
    %387 = vector.extract_strided_slice %377 {offsets = [0, 64], sizes = [2, 32], strides = [1, 1]} : vector<2x128xf32> to vector<2x32xf32>
    %388 = arith.mulf %386, %387 : vector<2x32xf32>
    %389 = arith.addf %385, %388 : vector<2x32xf32>
    %390 = vector.extract_strided_slice %372 {offsets = [0, 96], sizes = [2, 32], strides = [1, 1]} : vector<2x128xf32> to vector<2x32xf32>
    %391 = math.tanh %383 : vector<2x32xf32>
    %392 = arith.mulf %390, %391 : vector<2x32xf32>
    %393 = vector.extract_strided_slice %377 {offsets = [0, 96], sizes = [2, 32], strides = [1, 1]} : vector<2x128xf32> to vector<2x32xf32>
    %394 = math.tanh %389 : vector<2x32xf32>
    %395 = arith.mulf %393, %394 : vector<2x32xf32>
    %c2_i32_122 = arith.constant 2 : i32
    %396 = arith.muli %c6_i32, %c2_i32_122 : i32
    %397 = arith.index_cast %396 : i32 to index
    %c0_123 = arith.constant 0 : index
    %398 = vector.load %arg17[%397, %c0_123] : memref<16x64xf32, #tpu.memory_space<vmem>>, vector<2x32xf32>
    tpu.vector_store %arg17[%397, %c0_123], %392 {strides = array<i32>} : memref<16x64xf32, #tpu.memory_space<vmem>>, vector<2x32xf32>,
    %c2_i32_124 = arith.constant 2 : i32
    %399 = arith.muli %347, %c2_i32_124 : i32
    %400 = arith.index_cast %399 : i32 to index
    %c32_125 = arith.constant 32 : index
    %401 = vector.load %arg17[%400, %c32_125] : memref<16x64xf32, #tpu.memory_space<vmem>>, vector<2x32xf32>
    tpu.vector_store %arg17[%400, %c32_125], %395 {strides = array<i32>} : memref<16x64xf32, #tpu.memory_space<vmem>>, vector<2x32xf32>,
    %c7_i32_126 = arith.constant 7 : i32
    %c7_i32_127 = arith.constant 7 : i32
    %402 = arith.subi %c7_i32_127, %c7_i32_126 : i32
    %c2_i32_128 = arith.constant 2 : i32
    %403 = arith.muli %c7_i32_126, %c2_i32_128 : i32
    %404 = arith.index_cast %403 : i32 to index
    %c0_129 = arith.constant 0 : index
    %405 = vector.load %arg16[%404, %c0_129] : memref<16x256xf32, #tpu.memory_space<vmem>>, vector<2x128xf32>
    %c2_i32_130 = arith.constant 2 : i32
    %406 = arith.muli %402, %c2_i32_130 : i32
    %407 = arith.index_cast %406 : i32 to index
    %c128_131 = arith.constant 128 : index
    %408 = vector.load %arg16[%407, %c128_131] : memref<16x256xf32, #tpu.memory_space<vmem>>, vector<2x128xf32>
    %cst_132 = arith.constant dense<0.000000e+00> : vector<2x128xf32>
    %409 = tpu.matmul %392, %14, %cst_132 {dimension_numbers = #tpu.dot_dimension_numbers<[1], [0], [0], [1], [0, 0, 1, 1], [], []>} : vector<2x32xf32>, vector<32x128xf32>, vector<2x128xf32> -> vector<2x128xf32>
    %410 = arith.addf %405, %409 : vector<2x128xf32>
    %cst_133 = arith.constant dense<0.000000e+00> : vector<2x128xf32>
    %411 = tpu.matmul %395, %15, %cst_133 {dimension_numbers = #tpu.dot_dimension_numbers<[1], [0], [0], [1], [0, 0, 1, 1], [], []>} : vector<2x32xf32>, vector<32x128xf32>, vector<2x128xf32> -> vector<2x128xf32>
    %412 = arith.addf %408, %411 : vector<2x128xf32>
    %413 = arith.negf %410 : vector<2x128xf32>
    %414 = math.exp %413 : vector<2x128xf32>
    %cst_134 = arith.constant 1.000000e+00 : f32
    %415 = vector.broadcast %cst_134 : f32 to vector<2x128xf32>
    %416 = arith.addf %415, %414 : vector<2x128xf32>
    %417 = arith.divf %415, %416 : vector<2x128xf32>
    %418 = arith.negf %412 : vector<2x128xf32>
    %419 = math.exp %418 : vector<2x128xf32>
    %cst_135 = arith.constant 1.000000e+00 : f32
    %420 = vector.broadcast %cst_135 : f32 to vector<2x128xf32>
    %421 = arith.addf %420, %419 : vector<2x128xf32>
    %422 = arith.divf %420, %421 : vector<2x128xf32>
    %cst_136 = arith.constant 2.000000e+00 : f32
    %423 = vector.broadcast %cst_136 : f32 to vector<2x128xf32>
    %424 = arith.mulf %423, %417 : vector<2x128xf32>
    %cst_137 = arith.constant 1.000000e+00 : f32
    %425 = vector.broadcast %cst_137 : f32 to vector<2x128xf32>
    %426 = arith.subf %424, %425 : vector<2x128xf32>
    %427 = arith.select %5, %426, %417 : vector<2x128xi1>, vector<2x128xf32>
    %cst_138 = arith.constant 2.000000e+00 : f32
    %428 = vector.broadcast %cst_138 : f32 to vector<2x128xf32>
    %429 = arith.mulf %428, %422 : vector<2x128xf32>
    %cst_139 = arith.constant 1.000000e+00 : f32
    %430 = vector.broadcast %cst_139 : f32 to vector<2x128xf32>
    %431 = arith.subf %429, %430 : vector<2x128xf32>
    %432 = arith.select %5, %431, %422 : vector<2x128xi1>, vector<2x128xf32>
    %433 = vector.extract_strided_slice %427 {offsets = [0, 32], sizes = [2, 32], strides = [1, 1]} : vector<2x128xf32> to vector<2x32xf32>
    %434 = arith.mulf %433, %383 : vector<2x32xf32>
    %435 = vector.extract_strided_slice %427 {offsets = [0, 0], sizes = [2, 32], strides = [1, 1]} : vector<2x128xf32> to vector<2x32xf32>
    %436 = vector.extract_strided_slice %427 {offsets = [0, 64], sizes = [2, 32], strides = [1, 1]} : vector<2x128xf32> to vector<2x32xf32>
    %437 = arith.mulf %435, %436 : vector<2x32xf32>
    %438 = arith.addf %434, %437 : vector<2x32xf32>
    %439 = vector.extract_strided_slice %432 {offsets = [0, 32], sizes = [2, 32], strides = [1, 1]} : vector<2x128xf32> to vector<2x32xf32>
    %440 = arith.mulf %439, %389 : vector<2x32xf32>
    %441 = vector.extract_strided_slice %432 {offsets = [0, 0], sizes = [2, 32], strides = [1, 1]} : vector<2x128xf32> to vector<2x32xf32>
    %442 = vector.extract_strided_slice %432 {offsets = [0, 64], sizes = [2, 32], strides = [1, 1]} : vector<2x128xf32> to vector<2x32xf32>
    %443 = arith.mulf %441, %442 : vector<2x32xf32>
    %444 = arith.addf %440, %443 : vector<2x32xf32>
    %445 = vector.extract_strided_slice %427 {offsets = [0, 96], sizes = [2, 32], strides = [1, 1]} : vector<2x128xf32> to vector<2x32xf32>
    %446 = math.tanh %438 : vector<2x32xf32>
    %447 = arith.mulf %445, %446 : vector<2x32xf32>
    %448 = vector.extract_strided_slice %432 {offsets = [0, 96], sizes = [2, 32], strides = [1, 1]} : vector<2x128xf32> to vector<2x32xf32>
    %449 = math.tanh %444 : vector<2x32xf32>
    %450 = arith.mulf %448, %449 : vector<2x32xf32>
    %c2_i32_140 = arith.constant 2 : i32
    %451 = arith.muli %c7_i32_126, %c2_i32_140 : i32
    %452 = arith.index_cast %451 : i32 to index
    %c0_141 = arith.constant 0 : index
    %453 = vector.load %arg17[%452, %c0_141] : memref<16x64xf32, #tpu.memory_space<vmem>>, vector<2x32xf32>
    tpu.vector_store %arg17[%452, %c0_141], %447 {strides = array<i32>} : memref<16x64xf32, #tpu.memory_space<vmem>>, vector<2x32xf32>,
    %c2_i32_142 = arith.constant 2 : i32
    %454 = arith.muli %402, %c2_i32_142 : i32
    %455 = arith.index_cast %454 : i32 to index
    %c32_143 = arith.constant 32 : index
    %456 = vector.load %arg17[%455, %c32_143] : memref<16x64xf32, #tpu.memory_space<vmem>>, vector<2x32xf32>
    tpu.vector_store %arg17[%455, %c32_143], %450 {strides = array<i32>} : memref<16x64xf32, #tpu.memory_space<vmem>>, vector<2x32xf32>,
    %c8_i32 = arith.constant 8 : i32
    %c0_144 = arith.constant 0 : index
    %c0_145 = arith.constant 0 : index
    %457 = vector.load %arg17[%c0_144, %c0_145] : memref<16x64xf32, #tpu.memory_space<vmem>>, vector<16x64xf32>
    %c0_146 = arith.constant 0 : index
    %c0_147 = arith.constant 0 : index
    %458 = vector.load %arg4[%c0_146, %c0_147] : memref<64x256xf32, #tpu.memory_space<vmem>>, vector<64x256xf32>
    %cst_148 = arith.constant dense<0.000000e+00> : vector<16x256xf32>
    %459 = tpu.matmul %457, %458, %cst_148 {dimension_numbers = #tpu.dot_dimension_numbers<[1], [0], [0], [1], [0, 0, 1, 1], [], []>} : vector<16x64xf32>, vector<64x256xf32>, vector<16x256xf32> -> vector<16x256xf32>
    %c0_149 = arith.constant 0 : index
    %c0_150 = arith.constant 0 : index
    %460 = vector.load %arg6[%c0_149, %c0_150] : memref<1x256xf32, #tpu.memory_space<vmem>>, vector<1x256xf32>
    %461 = vector.broadcast %460 : vector<1x256xf32> to vector<16x256xf32>
    %462 = arith.addf %459, %461 : vector<16x256xf32>
    %c0_151 = arith.constant 0 : index
    %c0_152 = arith.constant 0 : index
    %463 = vector.load %arg16[%c0_151, %c0_152] : memref<16x256xf32, #tpu.memory_space<vmem>>, vector<16x256xf32>
    tpu.vector_store %arg16[%c0_151, %c0_152], %462 {strides = array<i32>} : memref<16x256xf32, #tpu.memory_space<vmem>>, vector<16x256xf32>,
    %c0_153 = arith.constant 0 : index
    %c0_154 = arith.constant 0 : index
    %464 = vector.load %arg5[%c0_153, %c0_154] : memref<64x128xf32, #tpu.memory_space<vmem>>, vector<64x128xf32>
    %465 = vector.extract_strided_slice %464 {offsets = [0, 0], sizes = [32, 128], strides = [1, 1]} : vector<64x128xf32> to vector<32x128xf32>
    %466 = vector.extract_strided_slice %464 {offsets = [32, 0], sizes = [32, 128], strides = [1, 1]} : vector<64x128xf32> to vector<32x128xf32>
    %cst_155 = arith.constant 0.000000e+00 : f32
    %467 = vector.broadcast %cst_155 : f32 to vector<2x32xf32>
    %c0_i32_156 = arith.constant 0 : i32
    %c7_i32_157 = arith.constant 7 : i32
    %468 = arith.subi %c7_i32_157, %c0_i32_156 : i32
    %c2_i32_158 = arith.constant 2 : i32
    %469 = arith.muli %c0_i32_156, %c2_i32_158 : i32
    %470 = arith.index_cast %469 : i32 to index
    %c0_159 = arith.constant 0 : index
    %471 = vector.load %arg16[%470, %c0_159] : memref<16x256xf32, #tpu.memory_space<vmem>>, vector<2x128xf32>
    %c2_i32_160 = arith.constant 2 : i32
    %472 = arith.muli %468, %c2_i32_160 : i32
    %473 = arith.index_cast %472 : i32 to index
    %c128_161 = arith.constant 128 : index
    %474 = vector.load %arg16[%473, %c128_161] : memref<16x256xf32, #tpu.memory_space<vmem>>, vector<2x128xf32>
    %cst_162 = arith.constant dense<0.000000e+00> : vector<2x128xf32>
    %475 = tpu.matmul %467, %465, %cst_162 {dimension_numbers = #tpu.dot_dimension_numbers<[1], [0], [0], [1], [0, 0, 1, 1], [], []>} : vector<2x32xf32>, vector<32x128xf32>, vector<2x128xf32> -> vector<2x128xf32>
    %476 = arith.addf %471, %475 : vector<2x128xf32>
    %cst_163 = arith.constant dense<0.000000e+00> : vector<2x128xf32>
    %477 = tpu.matmul %467, %466, %cst_163 {dimension_numbers = #tpu.dot_dimension_numbers<[1], [0], [0], [1], [0, 0, 1, 1], [], []>} : vector<2x32xf32>, vector<32x128xf32>, vector<2x128xf32> -> vector<2x128xf32>
    %478 = arith.addf %474, %477 : vector<2x128xf32>
    %479 = arith.negf %476 : vector<2x128xf32>
    %480 = math.exp %479 : vector<2x128xf32>
    %cst_164 = arith.constant 1.000000e+00 : f32
    %481 = vector.broadcast %cst_164 : f32 to vector<2x128xf32>
    %482 = arith.addf %481, %480 : vector<2x128xf32>
    %483 = arith.divf %481, %482 : vector<2x128xf32>
    %484 = arith.negf %478 : vector<2x128xf32>
    %485 = math.exp %484 : vector<2x128xf32>
    %cst_165 = arith.constant 1.000000e+00 : f32
    %486 = vector.broadcast %cst_165 : f32 to vector<2x128xf32>
    %487 = arith.addf %486, %485 : vector<2x128xf32>
    %488 = arith.divf %486, %487 : vector<2x128xf32>
    %cst_166 = arith.constant 2.000000e+00 : f32
    %489 = vector.broadcast %cst_166 : f32 to vector<2x128xf32>
    %490 = arith.mulf %489, %483 : vector<2x128xf32>
    %cst_167 = arith.constant 1.000000e+00 : f32
    %491 = vector.broadcast %cst_167 : f32 to vector<2x128xf32>
    %492 = arith.subf %490, %491 : vector<2x128xf32>
    %493 = arith.select %5, %492, %483 : vector<2x128xi1>, vector<2x128xf32>
    %cst_168 = arith.constant 2.000000e+00 : f32
    %494 = vector.broadcast %cst_168 : f32 to vector<2x128xf32>
    %495 = arith.mulf %494, %488 : vector<2x128xf32>
    %cst_169 = arith.constant 1.000000e+00 : f32
    %496 = vector.broadcast %cst_169 : f32 to vector<2x128xf32>
    %497 = arith.subf %495, %496 : vector<2x128xf32>
    %498 = arith.select %5, %497, %488 : vector<2x128xi1>, vector<2x128xf32>
    %499 = vector.extract_strided_slice %493 {offsets = [0, 32], sizes = [2, 32], strides = [1, 1]} : vector<2x128xf32> to vector<2x32xf32>
    %500 = arith.mulf %499, %467 : vector<2x32xf32>
    %501 = vector.extract_strided_slice %493 {offsets = [0, 0], sizes = [2, 32], strides = [1, 1]} : vector<2x128xf32> to vector<2x32xf32>
    %502 = vector.extract_strided_slice %493 {offsets = [0, 64], sizes = [2, 32], strides = [1, 1]} : vector<2x128xf32> to vector<2x32xf32>
    %503 = arith.mulf %501, %502 : vector<2x32xf32>
    %504 = arith.addf %500, %503 : vector<2x32xf32>
    %505 = vector.extract_strided_slice %498 {offsets = [0, 32], sizes = [2, 32], strides = [1, 1]} : vector<2x128xf32> to vector<2x32xf32>
    %506 = arith.mulf %505, %467 : vector<2x32xf32>
    %507 = vector.extract_strided_slice %498 {offsets = [0, 0], sizes = [2, 32], strides = [1, 1]} : vector<2x128xf32> to vector<2x32xf32>
    %508 = vector.extract_strided_slice %498 {offsets = [0, 64], sizes = [2, 32], strides = [1, 1]} : vector<2x128xf32> to vector<2x32xf32>
    %509 = arith.mulf %507, %508 : vector<2x32xf32>
    %510 = arith.addf %506, %509 : vector<2x32xf32>
    %511 = vector.extract_strided_slice %493 {offsets = [0, 96], sizes = [2, 32], strides = [1, 1]} : vector<2x128xf32> to vector<2x32xf32>
    %512 = math.tanh %504 : vector<2x32xf32>
    %513 = arith.mulf %511, %512 : vector<2x32xf32>
    %514 = vector.extract_strided_slice %498 {offsets = [0, 96], sizes = [2, 32], strides = [1, 1]} : vector<2x128xf32> to vector<2x32xf32>
    %515 = math.tanh %510 : vector<2x32xf32>
    %516 = arith.mulf %514, %515 : vector<2x32xf32>
    %c2_i32_170 = arith.constant 2 : i32
    %517 = arith.muli %c0_i32_156, %c2_i32_170 : i32
    %518 = arith.index_cast %517 : i32 to index
    %c0_171 = arith.constant 0 : index
    %519 = vector.load %arg18[%518, %c0_171] : memref<16x64xf32, #tpu.memory_space<vmem>>, vector<2x32xf32>
    tpu.vector_store %arg18[%518, %c0_171], %513 {strides = array<i32>} : memref<16x64xf32, #tpu.memory_space<vmem>>, vector<2x32xf32>,
    %c2_i32_172 = arith.constant 2 : i32
    %520 = arith.muli %468, %c2_i32_172 : i32
    %521 = arith.index_cast %520 : i32 to index
    %c32_173 = arith.constant 32 : index
    %522 = vector.load %arg18[%521, %c32_173] : memref<16x64xf32, #tpu.memory_space<vmem>>, vector<2x32xf32>
    tpu.vector_store %arg18[%521, %c32_173], %516 {strides = array<i32>} : memref<16x64xf32, #tpu.memory_space<vmem>>, vector<2x32xf32>,
    %c1_i32_174 = arith.constant 1 : i32
    %c7_i32_175 = arith.constant 7 : i32
    %523 = arith.subi %c7_i32_175, %c1_i32_174 : i32
    %c2_i32_176 = arith.constant 2 : i32
    %524 = arith.muli %c1_i32_174, %c2_i32_176 : i32
    %525 = arith.index_cast %524 : i32 to index
    %c0_177 = arith.constant 0 : index
    %526 = vector.load %arg16[%525, %c0_177] : memref<16x256xf32, #tpu.memory_space<vmem>>, vector<2x128xf32>
    %c2_i32_178 = arith.constant 2 : i32
    %527 = arith.muli %523, %c2_i32_178 : i32
    %528 = arith.index_cast %527 : i32 to index
    %c128_179 = arith.constant 128 : index
    %529 = vector.load %arg16[%528, %c128_179] : memref<16x256xf32, #tpu.memory_space<vmem>>, vector<2x128xf32>
    %cst_180 = arith.constant dense<0.000000e+00> : vector<2x128xf32>
    %530 = tpu.matmul %513, %465, %cst_180 {dimension_numbers = #tpu.dot_dimension_numbers<[1], [0], [0], [1], [0, 0, 1, 1], [], []>} : vector<2x32xf32>, vector<32x128xf32>, vector<2x128xf32> -> vector<2x128xf32>
    %531 = arith.addf %526, %530 : vector<2x128xf32>
    %cst_181 = arith.constant dense<0.000000e+00> : vector<2x128xf32>
    %532 = tpu.matmul %516, %466, %cst_181 {dimension_numbers = #tpu.dot_dimension_numbers<[1], [0], [0], [1], [0, 0, 1, 1], [], []>} : vector<2x32xf32>, vector<32x128xf32>, vector<2x128xf32> -> vector<2x128xf32>
    %533 = arith.addf %529, %532 : vector<2x128xf32>
    %534 = arith.negf %531 : vector<2x128xf32>
    %535 = math.exp %534 : vector<2x128xf32>
    %cst_182 = arith.constant 1.000000e+00 : f32
    %536 = vector.broadcast %cst_182 : f32 to vector<2x128xf32>
    %537 = arith.addf %536, %535 : vector<2x128xf32>
    %538 = arith.divf %536, %537 : vector<2x128xf32>
    %539 = arith.negf %533 : vector<2x128xf32>
    %540 = math.exp %539 : vector<2x128xf32>
    %cst_183 = arith.constant 1.000000e+00 : f32
    %541 = vector.broadcast %cst_183 : f32 to vector<2x128xf32>
    %542 = arith.addf %541, %540 : vector<2x128xf32>
    %543 = arith.divf %541, %542 : vector<2x128xf32>
    %cst_184 = arith.constant 2.000000e+00 : f32
    %544 = vector.broadcast %cst_184 : f32 to vector<2x128xf32>
    %545 = arith.mulf %544, %538 : vector<2x128xf32>
    %cst_185 = arith.constant 1.000000e+00 : f32
    %546 = vector.broadcast %cst_185 : f32 to vector<2x128xf32>
    %547 = arith.subf %545, %546 : vector<2x128xf32>
    %548 = arith.select %5, %547, %538 : vector<2x128xi1>, vector<2x128xf32>
    %cst_186 = arith.constant 2.000000e+00 : f32
    %549 = vector.broadcast %cst_186 : f32 to vector<2x128xf32>
    %550 = arith.mulf %549, %543 : vector<2x128xf32>
    %cst_187 = arith.constant 1.000000e+00 : f32
    %551 = vector.broadcast %cst_187 : f32 to vector<2x128xf32>
    %552 = arith.subf %550, %551 : vector<2x128xf32>
    %553 = arith.select %5, %552, %543 : vector<2x128xi1>, vector<2x128xf32>
    %554 = vector.extract_strided_slice %548 {offsets = [0, 32], sizes = [2, 32], strides = [1, 1]} : vector<2x128xf32> to vector<2x32xf32>
    %555 = arith.mulf %554, %504 : vector<2x32xf32>
    %556 = vector.extract_strided_slice %548 {offsets = [0, 0], sizes = [2, 32], strides = [1, 1]} : vector<2x128xf32> to vector<2x32xf32>
    %557 = vector.extract_strided_slice %548 {offsets = [0, 64], sizes = [2, 32], strides = [1, 1]} : vector<2x128xf32> to vector<2x32xf32>
    %558 = arith.mulf %556, %557 : vector<2x32xf32>
    %559 = arith.addf %555, %558 : vector<2x32xf32>
    %560 = vector.extract_strided_slice %553 {offsets = [0, 32], sizes = [2, 32], strides = [1, 1]} : vector<2x128xf32> to vector<2x32xf32>
    %561 = arith.mulf %560, %510 : vector<2x32xf32>
    %562 = vector.extract_strided_slice %553 {offsets = [0, 0], sizes = [2, 32], strides = [1, 1]} : vector<2x128xf32> to vector<2x32xf32>
    %563 = vector.extract_strided_slice %553 {offsets = [0, 64], sizes = [2, 32], strides = [1, 1]} : vector<2x128xf32> to vector<2x32xf32>
    %564 = arith.mulf %562, %563 : vector<2x32xf32>
    %565 = arith.addf %561, %564 : vector<2x32xf32>
    %566 = vector.extract_strided_slice %548 {offsets = [0, 96], sizes = [2, 32], strides = [1, 1]} : vector<2x128xf32> to vector<2x32xf32>
    %567 = math.tanh %559 : vector<2x32xf32>
    %568 = arith.mulf %566, %567 : vector<2x32xf32>
    %569 = vector.extract_strided_slice %553 {offsets = [0, 96], sizes = [2, 32], strides = [1, 1]} : vector<2x128xf32> to vector<2x32xf32>
    %570 = math.tanh %565 : vector<2x32xf32>
    %571 = arith.mulf %569, %570 : vector<2x32xf32>
    %c2_i32_188 = arith.constant 2 : i32
    %572 = arith.muli %c1_i32_174, %c2_i32_188 : i32
    %573 = arith.index_cast %572 : i32 to index
    %c0_189 = arith.constant 0 : index
    %574 = vector.load %arg18[%573, %c0_189] : memref<16x64xf32, #tpu.memory_space<vmem>>, vector<2x32xf32>
    tpu.vector_store %arg18[%573, %c0_189], %568 {strides = array<i32>} : memref<16x64xf32, #tpu.memory_space<vmem>>, vector<2x32xf32>,
    %c2_i32_190 = arith.constant 2 : i32
    %575 = arith.muli %523, %c2_i32_190 : i32
    %576 = arith.index_cast %575 : i32 to index
    %c32_191 = arith.constant 32 : index
    %577 = vector.load %arg18[%576, %c32_191] : memref<16x64xf32, #tpu.memory_space<vmem>>, vector<2x32xf32>
    tpu.vector_store %arg18[%576, %c32_191], %571 {strides = array<i32>} : memref<16x64xf32, #tpu.memory_space<vmem>>, vector<2x32xf32>,
    %c2_i32_192 = arith.constant 2 : i32
    %c7_i32_193 = arith.constant 7 : i32
    %578 = arith.subi %c7_i32_193, %c2_i32_192 : i32
    %c2_i32_194 = arith.constant 2 : i32
    %579 = arith.muli %c2_i32_192, %c2_i32_194 : i32
    %580 = arith.index_cast %579 : i32 to index
    %c0_195 = arith.constant 0 : index
    %581 = vector.load %arg16[%580, %c0_195] : memref<16x256xf32, #tpu.memory_space<vmem>>, vector<2x128xf32>
    %c2_i32_196 = arith.constant 2 : i32
    %582 = arith.muli %578, %c2_i32_196 : i32
    %583 = arith.index_cast %582 : i32 to index
    %c128_197 = arith.constant 128 : index
    %584 = vector.load %arg16[%583, %c128_197] : memref<16x256xf32, #tpu.memory_space<vmem>>, vector<2x128xf32>
    %cst_198 = arith.constant dense<0.000000e+00> : vector<2x128xf32>
    %585 = tpu.matmul %568, %465, %cst_198 {dimension_numbers = #tpu.dot_dimension_numbers<[1], [0], [0], [1], [0, 0, 1, 1], [], []>} : vector<2x32xf32>, vector<32x128xf32>, vector<2x128xf32> -> vector<2x128xf32>
    %586 = arith.addf %581, %585 : vector<2x128xf32>
    %cst_199 = arith.constant dense<0.000000e+00> : vector<2x128xf32>
    %587 = tpu.matmul %571, %466, %cst_199 {dimension_numbers = #tpu.dot_dimension_numbers<[1], [0], [0], [1], [0, 0, 1, 1], [], []>} : vector<2x32xf32>, vector<32x128xf32>, vector<2x128xf32> -> vector<2x128xf32>
    %588 = arith.addf %584, %587 : vector<2x128xf32>
    %589 = arith.negf %586 : vector<2x128xf32>
    %590 = math.exp %589 : vector<2x128xf32>
    %cst_200 = arith.constant 1.000000e+00 : f32
    %591 = vector.broadcast %cst_200 : f32 to vector<2x128xf32>
    %592 = arith.addf %591, %590 : vector<2x128xf32>
    %593 = arith.divf %591, %592 : vector<2x128xf32>
    %594 = arith.negf %588 : vector<2x128xf32>
    %595 = math.exp %594 : vector<2x128xf32>
    %cst_201 = arith.constant 1.000000e+00 : f32
    %596 = vector.broadcast %cst_201 : f32 to vector<2x128xf32>
    %597 = arith.addf %596, %595 : vector<2x128xf32>
    %598 = arith.divf %596, %597 : vector<2x128xf32>
    %cst_202 = arith.constant 2.000000e+00 : f32
    %599 = vector.broadcast %cst_202 : f32 to vector<2x128xf32>
    %600 = arith.mulf %599, %593 : vector<2x128xf32>
    %cst_203 = arith.constant 1.000000e+00 : f32
    %601 = vector.broadcast %cst_203 : f32 to vector<2x128xf32>
    %602 = arith.subf %600, %601 : vector<2x128xf32>
    %603 = arith.select %5, %602, %593 : vector<2x128xi1>, vector<2x128xf32>
    %cst_204 = arith.constant 2.000000e+00 : f32
    %604 = vector.broadcast %cst_204 : f32 to vector<2x128xf32>
    %605 = arith.mulf %604, %598 : vector<2x128xf32>
    %cst_205 = arith.constant 1.000000e+00 : f32
    %606 = vector.broadcast %cst_205 : f32 to vector<2x128xf32>
    %607 = arith.subf %605, %606 : vector<2x128xf32>
    %608 = arith.select %5, %607, %598 : vector<2x128xi1>, vector<2x128xf32>
    %609 = vector.extract_strided_slice %603 {offsets = [0, 32], sizes = [2, 32], strides = [1, 1]} : vector<2x128xf32> to vector<2x32xf32>
    %610 = arith.mulf %609, %559 : vector<2x32xf32>
    %611 = vector.extract_strided_slice %603 {offsets = [0, 0], sizes = [2, 32], strides = [1, 1]} : vector<2x128xf32> to vector<2x32xf32>
    %612 = vector.extract_strided_slice %603 {offsets = [0, 64], sizes = [2, 32], strides = [1, 1]} : vector<2x128xf32> to vector<2x32xf32>
    %613 = arith.mulf %611, %612 : vector<2x32xf32>
    %614 = arith.addf %610, %613 : vector<2x32xf32>
    %615 = vector.extract_strided_slice %608 {offsets = [0, 32], sizes = [2, 32], strides = [1, 1]} : vector<2x128xf32> to vector<2x32xf32>
    %616 = arith.mulf %615, %565 : vector<2x32xf32>
    %617 = vector.extract_strided_slice %608 {offsets = [0, 0], sizes = [2, 32], strides = [1, 1]} : vector<2x128xf32> to vector<2x32xf32>
    %618 = vector.extract_strided_slice %608 {offsets = [0, 64], sizes = [2, 32], strides = [1, 1]} : vector<2x128xf32> to vector<2x32xf32>
    %619 = arith.mulf %617, %618 : vector<2x32xf32>
    %620 = arith.addf %616, %619 : vector<2x32xf32>
    %621 = vector.extract_strided_slice %603 {offsets = [0, 96], sizes = [2, 32], strides = [1, 1]} : vector<2x128xf32> to vector<2x32xf32>
    %622 = math.tanh %614 : vector<2x32xf32>
    %623 = arith.mulf %621, %622 : vector<2x32xf32>
    %624 = vector.extract_strided_slice %608 {offsets = [0, 96], sizes = [2, 32], strides = [1, 1]} : vector<2x128xf32> to vector<2x32xf32>
    %625 = math.tanh %620 : vector<2x32xf32>
    %626 = arith.mulf %624, %625 : vector<2x32xf32>
    %c2_i32_206 = arith.constant 2 : i32
    %627 = arith.muli %c2_i32_192, %c2_i32_206 : i32
    %628 = arith.index_cast %627 : i32 to index
    %c0_207 = arith.constant 0 : index
    %629 = vector.load %arg18[%628, %c0_207] : memref<16x64xf32, #tpu.memory_space<vmem>>, vector<2x32xf32>
    tpu.vector_store %arg18[%628, %c0_207], %623 {strides = array<i32>} : memref<16x64xf32, #tpu.memory_space<vmem>>, vector<2x32xf32>,
    %c2_i32_208 = arith.constant 2 : i32
    %630 = arith.muli %578, %c2_i32_208 : i32
    %631 = arith.index_cast %630 : i32 to index
    %c32_209 = arith.constant 32 : index
    %632 = vector.load %arg18[%631, %c32_209] : memref<16x64xf32, #tpu.memory_space<vmem>>, vector<2x32xf32>
    tpu.vector_store %arg18[%631, %c32_209], %626 {strides = array<i32>} : memref<16x64xf32, #tpu.memory_space<vmem>>, vector<2x32xf32>,
    %c3_i32_210 = arith.constant 3 : i32
    %c7_i32_211 = arith.constant 7 : i32
    %633 = arith.subi %c7_i32_211, %c3_i32_210 : i32
    %c2_i32_212 = arith.constant 2 : i32
    %634 = arith.muli %c3_i32_210, %c2_i32_212 : i32
    %635 = arith.index_cast %634 : i32 to index
    %c0_213 = arith.constant 0 : index
    %636 = vector.load %arg16[%635, %c0_213] : memref<16x256xf32, #tpu.memory_space<vmem>>, vector<2x128xf32>
    %c2_i32_214 = arith.constant 2 : i32
    %637 = arith.muli %633, %c2_i32_214 : i32
    %638 = arith.index_cast %637 : i32 to index
    %c128_215 = arith.constant 128 : index
    %639 = vector.load %arg16[%638, %c128_215] : memref<16x256xf32, #tpu.memory_space<vmem>>, vector<2x128xf32>
    %cst_216 = arith.constant dense<0.000000e+00> : vector<2x128xf32>
    %640 = tpu.matmul %623, %465, %cst_216 {dimension_numbers = #tpu.dot_dimension_numbers<[1], [0], [0], [1], [0, 0, 1, 1], [], []>} : vector<2x32xf32>, vector<32x128xf32>, vector<2x128xf32> -> vector<2x128xf32>
    %641 = arith.addf %636, %640 : vector<2x128xf32>
    %cst_217 = arith.constant dense<0.000000e+00> : vector<2x128xf32>
    %642 = tpu.matmul %626, %466, %cst_217 {dimension_numbers = #tpu.dot_dimension_numbers<[1], [0], [0], [1], [0, 0, 1, 1], [], []>} : vector<2x32xf32>, vector<32x128xf32>, vector<2x128xf32> -> vector<2x128xf32>
    %643 = arith.addf %639, %642 : vector<2x128xf32>
    %644 = arith.negf %641 : vector<2x128xf32>
    %645 = math.exp %644 : vector<2x128xf32>
    %cst_218 = arith.constant 1.000000e+00 : f32
    %646 = vector.broadcast %cst_218 : f32 to vector<2x128xf32>
    %647 = arith.addf %646, %645 : vector<2x128xf32>
    %648 = arith.divf %646, %647 : vector<2x128xf32>
    %649 = arith.negf %643 : vector<2x128xf32>
    %650 = math.exp %649 : vector<2x128xf32>
    %cst_219 = arith.constant 1.000000e+00 : f32
    %651 = vector.broadcast %cst_219 : f32 to vector<2x128xf32>
    %652 = arith.addf %651, %650 : vector<2x128xf32>
    %653 = arith.divf %651, %652 : vector<2x128xf32>
    %cst_220 = arith.constant 2.000000e+00 : f32
    %654 = vector.broadcast %cst_220 : f32 to vector<2x128xf32>
    %655 = arith.mulf %654, %648 : vector<2x128xf32>
    %cst_221 = arith.constant 1.000000e+00 : f32
    %656 = vector.broadcast %cst_221 : f32 to vector<2x128xf32>
    %657 = arith.subf %655, %656 : vector<2x128xf32>
    %658 = arith.select %5, %657, %648 : vector<2x128xi1>, vector<2x128xf32>
    %cst_222 = arith.constant 2.000000e+00 : f32
    %659 = vector.broadcast %cst_222 : f32 to vector<2x128xf32>
    %660 = arith.mulf %659, %653 : vector<2x128xf32>
    %cst_223 = arith.constant 1.000000e+00 : f32
    %661 = vector.broadcast %cst_223 : f32 to vector<2x128xf32>
    %662 = arith.subf %660, %661 : vector<2x128xf32>
    %663 = arith.select %5, %662, %653 : vector<2x128xi1>, vector<2x128xf32>
    %664 = vector.extract_strided_slice %658 {offsets = [0, 32], sizes = [2, 32], strides = [1, 1]} : vector<2x128xf32> to vector<2x32xf32>
    %665 = arith.mulf %664, %614 : vector<2x32xf32>
    %666 = vector.extract_strided_slice %658 {offsets = [0, 0], sizes = [2, 32], strides = [1, 1]} : vector<2x128xf32> to vector<2x32xf32>
    %667 = vector.extract_strided_slice %658 {offsets = [0, 64], sizes = [2, 32], strides = [1, 1]} : vector<2x128xf32> to vector<2x32xf32>
    %668 = arith.mulf %666, %667 : vector<2x32xf32>
    %669 = arith.addf %665, %668 : vector<2x32xf32>
    %670 = vector.extract_strided_slice %663 {offsets = [0, 32], sizes = [2, 32], strides = [1, 1]} : vector<2x128xf32> to vector<2x32xf32>
    %671 = arith.mulf %670, %620 : vector<2x32xf32>
    %672 = vector.extract_strided_slice %663 {offsets = [0, 0], sizes = [2, 32], strides = [1, 1]} : vector<2x128xf32> to vector<2x32xf32>
    %673 = vector.extract_strided_slice %663 {offsets = [0, 64], sizes = [2, 32], strides = [1, 1]} : vector<2x128xf32> to vector<2x32xf32>
    %674 = arith.mulf %672, %673 : vector<2x32xf32>
    %675 = arith.addf %671, %674 : vector<2x32xf32>
    %676 = vector.extract_strided_slice %658 {offsets = [0, 96], sizes = [2, 32], strides = [1, 1]} : vector<2x128xf32> to vector<2x32xf32>
    %677 = math.tanh %669 : vector<2x32xf32>
    %678 = arith.mulf %676, %677 : vector<2x32xf32>
    %679 = vector.extract_strided_slice %663 {offsets = [0, 96], sizes = [2, 32], strides = [1, 1]} : vector<2x128xf32> to vector<2x32xf32>
    %680 = math.tanh %675 : vector<2x32xf32>
    %681 = arith.mulf %679, %680 : vector<2x32xf32>
    %c2_i32_224 = arith.constant 2 : i32
    %682 = arith.muli %c3_i32_210, %c2_i32_224 : i32
    %683 = arith.index_cast %682 : i32 to index
    %c0_225 = arith.constant 0 : index
    %684 = vector.load %arg18[%683, %c0_225] : memref<16x64xf32, #tpu.memory_space<vmem>>, vector<2x32xf32>
    tpu.vector_store %arg18[%683, %c0_225], %678 {strides = array<i32>} : memref<16x64xf32, #tpu.memory_space<vmem>>, vector<2x32xf32>,
    %c2_i32_226 = arith.constant 2 : i32
    %685 = arith.muli %633, %c2_i32_226 : i32
    %686 = arith.index_cast %685 : i32 to index
    %c32_227 = arith.constant 32 : index
    %687 = vector.load %arg18[%686, %c32_227] : memref<16x64xf32, #tpu.memory_space<vmem>>, vector<2x32xf32>
    tpu.vector_store %arg18[%686, %c32_227], %681 {strides = array<i32>} : memref<16x64xf32, #tpu.memory_space<vmem>>, vector<2x32xf32>,
    %c4_i32_228 = arith.constant 4 : i32
    %c7_i32_229 = arith.constant 7 : i32
    %688 = arith.subi %c7_i32_229, %c4_i32_228 : i32
    %c2_i32_230 = arith.constant 2 : i32
    %689 = arith.muli %c4_i32_228, %c2_i32_230 : i32
    %690 = arith.index_cast %689 : i32 to index
    %c0_231 = arith.constant 0 : index
    %691 = vector.load %arg16[%690, %c0_231] : memref<16x256xf32, #tpu.memory_space<vmem>>, vector<2x128xf32>
    %c2_i32_232 = arith.constant 2 : i32
    %692 = arith.muli %688, %c2_i32_232 : i32
    %693 = arith.index_cast %692 : i32 to index
    %c128_233 = arith.constant 128 : index
    %694 = vector.load %arg16[%693, %c128_233] : memref<16x256xf32, #tpu.memory_space<vmem>>, vector<2x128xf32>
    %cst_234 = arith.constant dense<0.000000e+00> : vector<2x128xf32>
    %695 = tpu.matmul %678, %465, %cst_234 {dimension_numbers = #tpu.dot_dimension_numbers<[1], [0], [0], [1], [0, 0, 1, 1], [], []>} : vector<2x32xf32>, vector<32x128xf32>, vector<2x128xf32> -> vector<2x128xf32>
    %696 = arith.addf %691, %695 : vector<2x128xf32>
    %cst_235 = arith.constant dense<0.000000e+00> : vector<2x128xf32>
    %697 = tpu.matmul %681, %466, %cst_235 {dimension_numbers = #tpu.dot_dimension_numbers<[1], [0], [0], [1], [0, 0, 1, 1], [], []>} : vector<2x32xf32>, vector<32x128xf32>, vector<2x128xf32> -> vector<2x128xf32>
    %698 = arith.addf %694, %697 : vector<2x128xf32>
    %699 = arith.negf %696 : vector<2x128xf32>
    %700 = math.exp %699 : vector<2x128xf32>
    %cst_236 = arith.constant 1.000000e+00 : f32
    %701 = vector.broadcast %cst_236 : f32 to vector<2x128xf32>
    %702 = arith.addf %701, %700 : vector<2x128xf32>
    %703 = arith.divf %701, %702 : vector<2x128xf32>
    %704 = arith.negf %698 : vector<2x128xf32>
    %705 = math.exp %704 : vector<2x128xf32>
    %cst_237 = arith.constant 1.000000e+00 : f32
    %706 = vector.broadcast %cst_237 : f32 to vector<2x128xf32>
    %707 = arith.addf %706, %705 : vector<2x128xf32>
    %708 = arith.divf %706, %707 : vector<2x128xf32>
    %cst_238 = arith.constant 2.000000e+00 : f32
    %709 = vector.broadcast %cst_238 : f32 to vector<2x128xf32>
    %710 = arith.mulf %709, %703 : vector<2x128xf32>
    %cst_239 = arith.constant 1.000000e+00 : f32
    %711 = vector.broadcast %cst_239 : f32 to vector<2x128xf32>
    %712 = arith.subf %710, %711 : vector<2x128xf32>
    %713 = arith.select %5, %712, %703 : vector<2x128xi1>, vector<2x128xf32>
    %cst_240 = arith.constant 2.000000e+00 : f32
    %714 = vector.broadcast %cst_240 : f32 to vector<2x128xf32>
    %715 = arith.mulf %714, %708 : vector<2x128xf32>
    %cst_241 = arith.constant 1.000000e+00 : f32
    %716 = vector.broadcast %cst_241 : f32 to vector<2x128xf32>
    %717 = arith.subf %715, %716 : vector<2x128xf32>
    %718 = arith.select %5, %717, %708 : vector<2x128xi1>, vector<2x128xf32>
    %719 = vector.extract_strided_slice %713 {offsets = [0, 32], sizes = [2, 32], strides = [1, 1]} : vector<2x128xf32> to vector<2x32xf32>
    %720 = arith.mulf %719, %669 : vector<2x32xf32>
    %721 = vector.extract_strided_slice %713 {offsets = [0, 0], sizes = [2, 32], strides = [1, 1]} : vector<2x128xf32> to vector<2x32xf32>
    %722 = vector.extract_strided_slice %713 {offsets = [0, 64], sizes = [2, 32], strides = [1, 1]} : vector<2x128xf32> to vector<2x32xf32>
    %723 = arith.mulf %721, %722 : vector<2x32xf32>
    %724 = arith.addf %720, %723 : vector<2x32xf32>
    %725 = vector.extract_strided_slice %718 {offsets = [0, 32], sizes = [2, 32], strides = [1, 1]} : vector<2x128xf32> to vector<2x32xf32>
    %726 = arith.mulf %725, %675 : vector<2x32xf32>
    %727 = vector.extract_strided_slice %718 {offsets = [0, 0], sizes = [2, 32], strides = [1, 1]} : vector<2x128xf32> to vector<2x32xf32>
    %728 = vector.extract_strided_slice %718 {offsets = [0, 64], sizes = [2, 32], strides = [1, 1]} : vector<2x128xf32> to vector<2x32xf32>
    %729 = arith.mulf %727, %728 : vector<2x32xf32>
    %730 = arith.addf %726, %729 : vector<2x32xf32>
    %731 = vector.extract_strided_slice %713 {offsets = [0, 96], sizes = [2, 32], strides = [1, 1]} : vector<2x128xf32> to vector<2x32xf32>
    %732 = math.tanh %724 : vector<2x32xf32>
    %733 = arith.mulf %731, %732 : vector<2x32xf32>
    %734 = vector.extract_strided_slice %718 {offsets = [0, 96], sizes = [2, 32], strides = [1, 1]} : vector<2x128xf32> to vector<2x32xf32>
    %735 = math.tanh %730 : vector<2x32xf32>
    %736 = arith.mulf %734, %735 : vector<2x32xf32>
    %c2_i32_242 = arith.constant 2 : i32
    %737 = arith.muli %c4_i32_228, %c2_i32_242 : i32
    %738 = arith.index_cast %737 : i32 to index
    %c0_243 = arith.constant 0 : index
    %739 = vector.load %arg18[%738, %c0_243] : memref<16x64xf32, #tpu.memory_space<vmem>>, vector<2x32xf32>
    tpu.vector_store %arg18[%738, %c0_243], %733 {strides = array<i32>} : memref<16x64xf32, #tpu.memory_space<vmem>>, vector<2x32xf32>,
    %c2_i32_244 = arith.constant 2 : i32
    %740 = arith.muli %688, %c2_i32_244 : i32
    %741 = arith.index_cast %740 : i32 to index
    %c32_245 = arith.constant 32 : index
    %742 = vector.load %arg18[%741, %c32_245] : memref<16x64xf32, #tpu.memory_space<vmem>>, vector<2x32xf32>
    tpu.vector_store %arg18[%741, %c32_245], %736 {strides = array<i32>} : memref<16x64xf32, #tpu.memory_space<vmem>>, vector<2x32xf32>,
    %c5_i32_246 = arith.constant 5 : i32
    %c7_i32_247 = arith.constant 7 : i32
    %743 = arith.subi %c7_i32_247, %c5_i32_246 : i32
    %c2_i32_248 = arith.constant 2 : i32
    %744 = arith.muli %c5_i32_246, %c2_i32_248 : i32
    %745 = arith.index_cast %744 : i32 to index
    %c0_249 = arith.constant 0 : index
    %746 = vector.load %arg16[%745, %c0_249] : memref<16x256xf32, #tpu.memory_space<vmem>>, vector<2x128xf32>
    %c2_i32_250 = arith.constant 2 : i32
    %747 = arith.muli %743, %c2_i32_250 : i32
    %748 = arith.index_cast %747 : i32 to index
    %c128_251 = arith.constant 128 : index
    %749 = vector.load %arg16[%748, %c128_251] : memref<16x256xf32, #tpu.memory_space<vmem>>, vector<2x128xf32>
    %cst_252 = arith.constant dense<0.000000e+00> : vector<2x128xf32>
    %750 = tpu.matmul %733, %465, %cst_252 {dimension_numbers = #tpu.dot_dimension_numbers<[1], [0], [0], [1], [0, 0, 1, 1], [], []>} : vector<2x32xf32>, vector<32x128xf32>, vector<2x128xf32> -> vector<2x128xf32>
    %751 = arith.addf %746, %750 : vector<2x128xf32>
    %cst_253 = arith.constant dense<0.000000e+00> : vector<2x128xf32>
    %752 = tpu.matmul %736, %466, %cst_253 {dimension_numbers = #tpu.dot_dimension_numbers<[1], [0], [0], [1], [0, 0, 1, 1], [], []>} : vector<2x32xf32>, vector<32x128xf32>, vector<2x128xf32> -> vector<2x128xf32>
    %753 = arith.addf %749, %752 : vector<2x128xf32>
    %754 = arith.negf %751 : vector<2x128xf32>
    %755 = math.exp %754 : vector<2x128xf32>
    %cst_254 = arith.constant 1.000000e+00 : f32
    %756 = vector.broadcast %cst_254 : f32 to vector<2x128xf32>
    %757 = arith.addf %756, %755 : vector<2x128xf32>
    %758 = arith.divf %756, %757 : vector<2x128xf32>
    %759 = arith.negf %753 : vector<2x128xf32>
    %760 = math.exp %759 : vector<2x128xf32>
    %cst_255 = arith.constant 1.000000e+00 : f32
    %761 = vector.broadcast %cst_255 : f32 to vector<2x128xf32>
    %762 = arith.addf %761, %760 : vector<2x128xf32>
    %763 = arith.divf %761, %762 : vector<2x128xf32>
    %cst_256 = arith.constant 2.000000e+00 : f32
    %764 = vector.broadcast %cst_256 : f32 to vector<2x128xf32>
    %765 = arith.mulf %764, %758 : vector<2x128xf32>
    %cst_257 = arith.constant 1.000000e+00 : f32
    %766 = vector.broadcast %cst_257 : f32 to vector<2x128xf32>
    %767 = arith.subf %765, %766 : vector<2x128xf32>
    %768 = arith.select %5, %767, %758 : vector<2x128xi1>, vector<2x128xf32>
    %cst_258 = arith.constant 2.000000e+00 : f32
    %769 = vector.broadcast %cst_258 : f32 to vector<2x128xf32>
    %770 = arith.mulf %769, %763 : vector<2x128xf32>
    %cst_259 = arith.constant 1.000000e+00 : f32
    %771 = vector.broadcast %cst_259 : f32 to vector<2x128xf32>
    %772 = arith.subf %770, %771 : vector<2x128xf32>
    %773 = arith.select %5, %772, %763 : vector<2x128xi1>, vector<2x128xf32>
    %774 = vector.extract_strided_slice %768 {offsets = [0, 32], sizes = [2, 32], strides = [1, 1]} : vector<2x128xf32> to vector<2x32xf32>
    %775 = arith.mulf %774, %724 : vector<2x32xf32>
    %776 = vector.extract_strided_slice %768 {offsets = [0, 0], sizes = [2, 32], strides = [1, 1]} : vector<2x128xf32> to vector<2x32xf32>
    %777 = vector.extract_strided_slice %768 {offsets = [0, 64], sizes = [2, 32], strides = [1, 1]} : vector<2x128xf32> to vector<2x32xf32>
    %778 = arith.mulf %776, %777 : vector<2x32xf32>
    %779 = arith.addf %775, %778 : vector<2x32xf32>
    %780 = vector.extract_strided_slice %773 {offsets = [0, 32], sizes = [2, 32], strides = [1, 1]} : vector<2x128xf32> to vector<2x32xf32>
    %781 = arith.mulf %780, %730 : vector<2x32xf32>
    %782 = vector.extract_strided_slice %773 {offsets = [0, 0], sizes = [2, 32], strides = [1, 1]} : vector<2x128xf32> to vector<2x32xf32>
    %783 = vector.extract_strided_slice %773 {offsets = [0, 64], sizes = [2, 32], strides = [1, 1]} : vector<2x128xf32> to vector<2x32xf32>
    %784 = arith.mulf %782, %783 : vector<2x32xf32>
    %785 = arith.addf %781, %784 : vector<2x32xf32>
    %786 = vector.extract_strided_slice %768 {offsets = [0, 96], sizes = [2, 32], strides = [1, 1]} : vector<2x128xf32> to vector<2x32xf32>
    %787 = math.tanh %779 : vector<2x32xf32>
    %788 = arith.mulf %786, %787 : vector<2x32xf32>
    %789 = vector.extract_strided_slice %773 {offsets = [0, 96], sizes = [2, 32], strides = [1, 1]} : vector<2x128xf32> to vector<2x32xf32>
    %790 = math.tanh %785 : vector<2x32xf32>
    %791 = arith.mulf %789, %790 : vector<2x32xf32>
    %c2_i32_260 = arith.constant 2 : i32
    %792 = arith.muli %c5_i32_246, %c2_i32_260 : i32
    %793 = arith.index_cast %792 : i32 to index
    %c0_261 = arith.constant 0 : index
    %794 = vector.load %arg18[%793, %c0_261] : memref<16x64xf32, #tpu.memory_space<vmem>>, vector<2x32xf32>
    tpu.vector_store %arg18[%793, %c0_261], %788 {strides = array<i32>} : memref<16x64xf32, #tpu.memory_space<vmem>>, vector<2x32xf32>,
    %c2_i32_262 = arith.constant 2 : i32
    %795 = arith.muli %743, %c2_i32_262 : i32
    %796 = arith.index_cast %795 : i32 to index
    %c32_263 = arith.constant 32 : index
    %797 = vector.load %arg18[%796, %c32_263] : memref<16x64xf32, #tpu.memory_space<vmem>>, vector<2x32xf32>
    tpu.vector_store %arg18[%796, %c32_263], %791 {strides = array<i32>} : memref<16x64xf32, #tpu.memory_space<vmem>>, vector<2x32xf32>,
    %c6_i32_264 = arith.constant 6 : i32
    %c7_i32_265 = arith.constant 7 : i32
    %798 = arith.subi %c7_i32_265, %c6_i32_264 : i32
    %c2_i32_266 = arith.constant 2 : i32
    %799 = arith.muli %c6_i32_264, %c2_i32_266 : i32
    %800 = arith.index_cast %799 : i32 to index
    %c0_267 = arith.constant 0 : index
    %801 = vector.load %arg16[%800, %c0_267] : memref<16x256xf32, #tpu.memory_space<vmem>>, vector<2x128xf32>
    %c2_i32_268 = arith.constant 2 : i32
    %802 = arith.muli %798, %c2_i32_268 : i32
    %803 = arith.index_cast %802 : i32 to index
    %c128_269 = arith.constant 128 : index
    %804 = vector.load %arg16[%803, %c128_269] : memref<16x256xf32, #tpu.memory_space<vmem>>, vector<2x128xf32>
    %cst_270 = arith.constant dense<0.000000e+00> : vector<2x128xf32>
    %805 = tpu.matmul %788, %465, %cst_270 {dimension_numbers = #tpu.dot_dimension_numbers<[1], [0], [0], [1], [0, 0, 1, 1], [], []>} : vector<2x32xf32>, vector<32x128xf32>, vector<2x128xf32> -> vector<2x128xf32>
    %806 = arith.addf %801, %805 : vector<2x128xf32>
    %cst_271 = arith.constant dense<0.000000e+00> : vector<2x128xf32>
    %807 = tpu.matmul %791, %466, %cst_271 {dimension_numbers = #tpu.dot_dimension_numbers<[1], [0], [0], [1], [0, 0, 1, 1], [], []>} : vector<2x32xf32>, vector<32x128xf32>, vector<2x128xf32> -> vector<2x128xf32>
    %808 = arith.addf %804, %807 : vector<2x128xf32>
    %809 = arith.negf %806 : vector<2x128xf32>
    %810 = math.exp %809 : vector<2x128xf32>
    %cst_272 = arith.constant 1.000000e+00 : f32
    %811 = vector.broadcast %cst_272 : f32 to vector<2x128xf32>
    %812 = arith.addf %811, %810 : vector<2x128xf32>
    %813 = arith.divf %811, %812 : vector<2x128xf32>
    %814 = arith.negf %808 : vector<2x128xf32>
    %815 = math.exp %814 : vector<2x128xf32>
    %cst_273 = arith.constant 1.000000e+00 : f32
    %816 = vector.broadcast %cst_273 : f32 to vector<2x128xf32>
    %817 = arith.addf %816, %815 : vector<2x128xf32>
    %818 = arith.divf %816, %817 : vector<2x128xf32>
    %cst_274 = arith.constant 2.000000e+00 : f32
    %819 = vector.broadcast %cst_274 : f32 to vector<2x128xf32>
    %820 = arith.mulf %819, %813 : vector<2x128xf32>
    %cst_275 = arith.constant 1.000000e+00 : f32
    %821 = vector.broadcast %cst_275 : f32 to vector<2x128xf32>
    %822 = arith.subf %820, %821 : vector<2x128xf32>
    %823 = arith.select %5, %822, %813 : vector<2x128xi1>, vector<2x128xf32>
    %cst_276 = arith.constant 2.000000e+00 : f32
    %824 = vector.broadcast %cst_276 : f32 to vector<2x128xf32>
    %825 = arith.mulf %824, %818 : vector<2x128xf32>
    %cst_277 = arith.constant 1.000000e+00 : f32
    %826 = vector.broadcast %cst_277 : f32 to vector<2x128xf32>
    %827 = arith.subf %825, %826 : vector<2x128xf32>
    %828 = arith.select %5, %827, %818 : vector<2x128xi1>, vector<2x128xf32>
    %829 = vector.extract_strided_slice %823 {offsets = [0, 32], sizes = [2, 32], strides = [1, 1]} : vector<2x128xf32> to vector<2x32xf32>
    %830 = arith.mulf %829, %779 : vector<2x32xf32>
    %831 = vector.extract_strided_slice %823 {offsets = [0, 0], sizes = [2, 32], strides = [1, 1]} : vector<2x128xf32> to vector<2x32xf32>
    %832 = vector.extract_strided_slice %823 {offsets = [0, 64], sizes = [2, 32], strides = [1, 1]} : vector<2x128xf32> to vector<2x32xf32>
    %833 = arith.mulf %831, %832 : vector<2x32xf32>
    %834 = arith.addf %830, %833 : vector<2x32xf32>
    %835 = vector.extract_strided_slice %828 {offsets = [0, 32], sizes = [2, 32], strides = [1, 1]} : vector<2x128xf32> to vector<2x32xf32>
    %836 = arith.mulf %835, %785 : vector<2x32xf32>
    %837 = vector.extract_strided_slice %828 {offsets = [0, 0], sizes = [2, 32], strides = [1, 1]} : vector<2x128xf32> to vector<2x32xf32>
    %838 = vector.extract_strided_slice %828 {offsets = [0, 64], sizes = [2, 32], strides = [1, 1]} : vector<2x128xf32> to vector<2x32xf32>
    %839 = arith.mulf %837, %838 : vector<2x32xf32>
    %840 = arith.addf %836, %839 : vector<2x32xf32>
    %841 = vector.extract_strided_slice %823 {offsets = [0, 96], sizes = [2, 32], strides = [1, 1]} : vector<2x128xf32> to vector<2x32xf32>
    %842 = math.tanh %834 : vector<2x32xf32>
    %843 = arith.mulf %841, %842 : vector<2x32xf32>
    %844 = vector.extract_strided_slice %828 {offsets = [0, 96], sizes = [2, 32], strides = [1, 1]} : vector<2x128xf32> to vector<2x32xf32>
    %845 = math.tanh %840 : vector<2x32xf32>
    %846 = arith.mulf %844, %845 : vector<2x32xf32>
    %c2_i32_278 = arith.constant 2 : i32
    %847 = arith.muli %c6_i32_264, %c2_i32_278 : i32
    %848 = arith.index_cast %847 : i32 to index
    %c0_279 = arith.constant 0 : index
    %849 = vector.load %arg18[%848, %c0_279] : memref<16x64xf32, #tpu.memory_space<vmem>>, vector<2x32xf32>
    tpu.vector_store %arg18[%848, %c0_279], %843 {strides = array<i32>} : memref<16x64xf32, #tpu.memory_space<vmem>>, vector<2x32xf32>,
    %c2_i32_280 = arith.constant 2 : i32
    %850 = arith.muli %798, %c2_i32_280 : i32
    %851 = arith.index_cast %850 : i32 to index
    %c32_281 = arith.constant 32 : index
    %852 = vector.load %arg18[%851, %c32_281] : memref<16x64xf32, #tpu.memory_space<vmem>>, vector<2x32xf32>
    tpu.vector_store %arg18[%851, %c32_281], %846 {strides = array<i32>} : memref<16x64xf32, #tpu.memory_space<vmem>>, vector<2x32xf32>,
    %c7_i32_282 = arith.constant 7 : i32
    %c7_i32_283 = arith.constant 7 : i32
    %853 = arith.subi %c7_i32_283, %c7_i32_282 : i32
    %c2_i32_284 = arith.constant 2 : i32
    %854 = arith.muli %c7_i32_282, %c2_i32_284 : i32
    %855 = arith.index_cast %854 : i32 to index
    %c0_285 = arith.constant 0 : index
    %856 = vector.load %arg16[%855, %c0_285] : memref<16x256xf32, #tpu.memory_space<vmem>>, vector<2x128xf32>
    %c2_i32_286 = arith.constant 2 : i32
    %857 = arith.muli %853, %c2_i32_286 : i32
    %858 = arith.index_cast %857 : i32 to index
    %c128_287 = arith.constant 128 : index
    %859 = vector.load %arg16[%858, %c128_287] : memref<16x256xf32, #tpu.memory_space<vmem>>, vector<2x128xf32>
    %cst_288 = arith.constant dense<0.000000e+00> : vector<2x128xf32>
    %860 = tpu.matmul %843, %465, %cst_288 {dimension_numbers = #tpu.dot_dimension_numbers<[1], [0], [0], [1], [0, 0, 1, 1], [], []>} : vector<2x32xf32>, vector<32x128xf32>, vector<2x128xf32> -> vector<2x128xf32>
    %861 = arith.addf %856, %860 : vector<2x128xf32>
    %cst_289 = arith.constant dense<0.000000e+00> : vector<2x128xf32>
    %862 = tpu.matmul %846, %466, %cst_289 {dimension_numbers = #tpu.dot_dimension_numbers<[1], [0], [0], [1], [0, 0, 1, 1], [], []>} : vector<2x32xf32>, vector<32x128xf32>, vector<2x128xf32> -> vector<2x128xf32>
    %863 = arith.addf %859, %862 : vector<2x128xf32>
    %864 = arith.negf %861 : vector<2x128xf32>
    %865 = math.exp %864 : vector<2x128xf32>
    %cst_290 = arith.constant 1.000000e+00 : f32
    %866 = vector.broadcast %cst_290 : f32 to vector<2x128xf32>
    %867 = arith.addf %866, %865 : vector<2x128xf32>
    %868 = arith.divf %866, %867 : vector<2x128xf32>
    %869 = arith.negf %863 : vector<2x128xf32>
    %870 = math.exp %869 : vector<2x128xf32>
    %cst_291 = arith.constant 1.000000e+00 : f32
    %871 = vector.broadcast %cst_291 : f32 to vector<2x128xf32>
    %872 = arith.addf %871, %870 : vector<2x128xf32>
    %873 = arith.divf %871, %872 : vector<2x128xf32>
    %cst_292 = arith.constant 2.000000e+00 : f32
    %874 = vector.broadcast %cst_292 : f32 to vector<2x128xf32>
    %875 = arith.mulf %874, %868 : vector<2x128xf32>
    %cst_293 = arith.constant 1.000000e+00 : f32
    %876 = vector.broadcast %cst_293 : f32 to vector<2x128xf32>
    %877 = arith.subf %875, %876 : vector<2x128xf32>
    %878 = arith.select %5, %877, %868 : vector<2x128xi1>, vector<2x128xf32>
    %cst_294 = arith.constant 2.000000e+00 : f32
    %879 = vector.broadcast %cst_294 : f32 to vector<2x128xf32>
    %880 = arith.mulf %879, %873 : vector<2x128xf32>
    %cst_295 = arith.constant 1.000000e+00 : f32
    %881 = vector.broadcast %cst_295 : f32 to vector<2x128xf32>
    %882 = arith.subf %880, %881 : vector<2x128xf32>
    %883 = arith.select %5, %882, %873 : vector<2x128xi1>, vector<2x128xf32>
    %884 = vector.extract_strided_slice %878 {offsets = [0, 32], sizes = [2, 32], strides = [1, 1]} : vector<2x128xf32> to vector<2x32xf32>
    %885 = arith.mulf %884, %834 : vector<2x32xf32>
    %886 = vector.extract_strided_slice %878 {offsets = [0, 0], sizes = [2, 32], strides = [1, 1]} : vector<2x128xf32> to vector<2x32xf32>
    %887 = vector.extract_strided_slice %878 {offsets = [0, 64], sizes = [2, 32], strides = [1, 1]} : vector<2x128xf32> to vector<2x32xf32>
    %888 = arith.mulf %886, %887 : vector<2x32xf32>
    %889 = arith.addf %885, %888 : vector<2x32xf32>
    %890 = vector.extract_strided_slice %883 {offsets = [0, 32], sizes = [2, 32], strides = [1, 1]} : vector<2x128xf32> to vector<2x32xf32>
    %891 = arith.mulf %890, %840 : vector<2x32xf32>
    %892 = vector.extract_strided_slice %883 {offsets = [0, 0], sizes = [2, 32], strides = [1, 1]} : vector<2x128xf32> to vector<2x32xf32>
    %893 = vector.extract_strided_slice %883 {offsets = [0, 64], sizes = [2, 32], strides = [1, 1]} : vector<2x128xf32> to vector<2x32xf32>
    %894 = arith.mulf %892, %893 : vector<2x32xf32>
    %895 = arith.addf %891, %894 : vector<2x32xf32>
    %896 = vector.extract_strided_slice %878 {offsets = [0, 96], sizes = [2, 32], strides = [1, 1]} : vector<2x128xf32> to vector<2x32xf32>
    %897 = math.tanh %889 : vector<2x32xf32>
    %898 = arith.mulf %896, %897 : vector<2x32xf32>
    %899 = vector.extract_strided_slice %883 {offsets = [0, 96], sizes = [2, 32], strides = [1, 1]} : vector<2x128xf32> to vector<2x32xf32>
    %900 = math.tanh %895 : vector<2x32xf32>
    %901 = arith.mulf %899, %900 : vector<2x32xf32>
    %c2_i32_296 = arith.constant 2 : i32
    %902 = arith.muli %c7_i32_282, %c2_i32_296 : i32
    %903 = arith.index_cast %902 : i32 to index
    %c0_297 = arith.constant 0 : index
    %904 = vector.load %arg18[%903, %c0_297] : memref<16x64xf32, #tpu.memory_space<vmem>>, vector<2x32xf32>
    tpu.vector_store %arg18[%903, %c0_297], %898 {strides = array<i32>} : memref<16x64xf32, #tpu.memory_space<vmem>>, vector<2x32xf32>,
    %c2_i32_298 = arith.constant 2 : i32
    %905 = arith.muli %853, %c2_i32_298 : i32
    %906 = arith.index_cast %905 : i32 to index
    %c32_299 = arith.constant 32 : index
    %907 = vector.load %arg18[%906, %c32_299] : memref<16x64xf32, #tpu.memory_space<vmem>>, vector<2x32xf32>
    tpu.vector_store %arg18[%906, %c32_299], %901 {strides = array<i32>} : memref<16x64xf32, #tpu.memory_space<vmem>>, vector<2x32xf32>,
    %c8_i32_300 = arith.constant 8 : i32
    %c0_301 = arith.constant 0 : index
    %c0_302 = arith.constant 0 : index
    %908 = vector.load %arg18[%c0_301, %c0_302] : memref<16x64xf32, #tpu.memory_space<vmem>>, vector<16x64xf32>
    %cst_303 = arith.constant dense<0.000000e+00> : vector<16xf32>
    %909 = vector.multi_reduction <add>, %908, %cst_303 [1] : vector<16x64xf32> to vector<16xf32>
    %910 = vector.shape_cast %909 : vector<16xf32> to vector<16x1xf32>
    %cst_304 = arith.constant 1.562500e-02 : f32
    %911 = vector.broadcast %cst_304 : f32 to vector<16x1xf32>
    %912 = arith.mulf %910, %911 : vector<16x1xf32>
    %913 = vector.broadcast %912 : vector<16x1xf32> to vector<16x64xf32>
    %914 = arith.subf %908, %913 : vector<16x64xf32>
    %915 = arith.mulf %914, %914 : vector<16x64xf32>
    %cst_305 = arith.constant dense<0.000000e+00> : vector<16xf32>
    %916 = vector.multi_reduction <add>, %915, %cst_305 [1] : vector<16x64xf32> to vector<16xf32>
    %917 = vector.shape_cast %916 : vector<16xf32> to vector<16x1xf32>
    %cst_306 = arith.constant 1.562500e-02 : f32
    %918 = vector.broadcast %cst_306 : f32 to vector<16x1xf32>
    %919 = arith.mulf %917, %918 : vector<16x1xf32>
    %cst_307 = arith.constant 9.99999974E-6 : f32
    %920 = vector.broadcast %cst_307 : f32 to vector<16x1xf32>
    %921 = arith.addf %919, %920 : vector<16x1xf32>
    %922 = math.rsqrt %921 : vector<16x1xf32>
    %923 = vector.broadcast %922 : vector<16x1xf32> to vector<16x64xf32>
    %924 = arith.mulf %914, %923 : vector<16x64xf32>
    %c0_308 = arith.constant 0 : index
    %c0_309 = arith.constant 0 : index
    %925 = vector.load %arg7[%c0_308, %c0_309] : memref<1x64xf32, #tpu.memory_space<vmem>>, vector<1x64xf32>
    %926 = vector.broadcast %925 : vector<1x64xf32> to vector<16x64xf32>
    %927 = arith.mulf %924, %926 : vector<16x64xf32>
    %c0_310 = arith.constant 0 : index
    %c0_311 = arith.constant 0 : index
    %928 = vector.load %arg8[%c0_310, %c0_311] : memref<1x64xf32, #tpu.memory_space<vmem>>, vector<1x64xf32>
    %929 = vector.broadcast %928 : vector<1x64xf32> to vector<16x64xf32>
    %930 = arith.addf %927, %929 : vector<16x64xf32>
    %c0_312 = arith.constant 0 : index
    %c0_313 = arith.constant 0 : index
    %931 = vector.load %arg9[%c0_312, %c0_313] : memref<64x128xf32, #tpu.memory_space<vmem>>, vector<64x128xf32>
    %cst_314 = arith.constant dense<0.000000e+00> : vector<16x128xf32>
    %932 = tpu.matmul %930, %931, %cst_314 {dimension_numbers = #tpu.dot_dimension_numbers<[1], [0], [0], [1], [0, 0, 1, 1], [], []>} : vector<16x64xf32>, vector<64x128xf32>, vector<16x128xf32> -> vector<16x128xf32>
    %c0_315 = arith.constant 0 : index
    %c0_316 = arith.constant 0 : index
    %933 = vector.load %arg10[%c0_315, %c0_316] : memref<1x128xf32, #tpu.memory_space<vmem>>, vector<1x128xf32>
    %934 = vector.broadcast %933 : vector<1x128xf32> to vector<16x128xf32>
    %935 = arith.addf %932, %934 : vector<16x128xf32>
    %cst_317 = arith.constant 5.000000e-01 : f32
    %936 = vector.broadcast %cst_317 : f32 to vector<16x128xf32>
    %937 = arith.mulf %936, %935 : vector<16x128xf32>
    %cst_318 = arith.constant 0.707106769 : f32
    %938 = vector.broadcast %cst_318 : f32 to vector<16x128xf32>
    %939 = arith.mulf %935, %938 : vector<16x128xf32>
    %cst_319 = arith.constant 0.000000e+00 : f32
    %940 = vector.broadcast %cst_319 : f32 to vector<16x128xf32>
    %941 = arith.cmpf oge, %939, %940 : vector<16x128xf32>
    %cst_320 = arith.constant 1.000000e+00 : f32
    %cst_321 = arith.constant -1.000000e+00 : f32
    %942 = vector.broadcast %cst_320 : f32 to vector<16x128xf32>
    %943 = vector.broadcast %cst_321 : f32 to vector<16x128xf32>
    %944 = arith.select %941, %942, %943 : vector<16x128xi1>, vector<16x128xf32>
    %945 = math.absf %939 : vector<16x128xf32>
    %cst_322 = arith.constant 0.327591091 : f32
    %946 = vector.broadcast %cst_322 : f32 to vector<16x128xf32>
    %947 = arith.mulf %946, %945 : vector<16x128xf32>
    %cst_323 = arith.constant 1.000000e+00 : f32
    %948 = vector.broadcast %cst_323 : f32 to vector<16x128xf32>
    %949 = arith.addf %948, %947 : vector<16x128xf32>
    %cst_324 = arith.constant 1.000000e+00 : f32
    %950 = vector.broadcast %cst_324 : f32 to vector<16x128xf32>
    %951 = arith.divf %950, %949 : vector<16x128xf32>
    %cst_325 = arith.constant 1.06140542 : f32
    %952 = vector.broadcast %cst_325 : f32 to vector<16x128xf32>
    %953 = arith.mulf %951, %952 : vector<16x128xf32>
    %cst_326 = arith.constant -1.45315206 : f32
    %954 = vector.broadcast %cst_326 : f32 to vector<16x128xf32>
    %955 = arith.addf %954, %953 : vector<16x128xf32>
    %956 = arith.mulf %951, %955 : vector<16x128xf32>
    %cst_327 = arith.constant 1.42141378 : f32
    %957 = vector.broadcast %cst_327 : f32 to vector<16x128xf32>
    %958 = arith.addf %957, %956 : vector<16x128xf32>
    %959 = arith.mulf %951, %958 : vector<16x128xf32>
    %cst_328 = arith.constant -0.284496725 : f32
    %960 = vector.broadcast %cst_328 : f32 to vector<16x128xf32>
    %961 = arith.addf %960, %959 : vector<16x128xf32>
    %962 = arith.mulf %951, %961 : vector<16x128xf32>
    %cst_329 = arith.constant 0.254829586 : f32
    %963 = vector.broadcast %cst_329 : f32 to vector<16x128xf32>
    %964 = arith.addf %963, %962 : vector<16x128xf32>
    %965 = arith.mulf %951, %964 : vector<16x128xf32>
    %cst_330 = arith.constant 0.000000e+00 : f32
    %966 = vector.broadcast %cst_330 : f32 to vector<16x128xf32>
    %967 = arith.subf %966, %945 : vector<16x128xf32>
    %968 = arith.mulf %967, %945 : vector<16x128xf32>
    %969 = math.exp %968 : vector<16x128xf32>
    %970 = arith.mulf %965, %969 : vector<16x128xf32>
    %cst_331 = arith.constant 1.000000e+00 : f32
    %971 = vector.broadcast %cst_331 : f32 to vector<16x128xf32>
    %972 = arith.subf %971, %970 : vector<16x128xf32>
    %973 = arith.mulf %944, %972 : vector<16x128xf32>
    %cst_332 = arith.constant 1.000000e+00 : f32
    %974 = vector.broadcast %cst_332 : f32 to vector<16x128xf32>
    %975 = arith.addf %974, %973 : vector<16x128xf32>
    %976 = arith.mulf %937, %975 : vector<16x128xf32>
    %c0_333 = arith.constant 0 : index
    %c0_334 = arith.constant 0 : index
    %977 = vector.load %arg11[%c0_333, %c0_334] : memref<128x32xf32, #tpu.memory_space<vmem>>, vector<128x32xf32>
    %cst_335 = arith.constant dense<0.000000e+00> : vector<16x32xf32>
    %978 = tpu.matmul %976, %977, %cst_335 {dimension_numbers = #tpu.dot_dimension_numbers<[1], [0], [0], [1], [0, 0, 1, 1], [], []>} : vector<16x128xf32>, vector<128x32xf32>, vector<16x32xf32> -> vector<16x32xf32>
    %c0_336 = arith.constant 0 : index
    %c0_337 = arith.constant 0 : index
    %979 = vector.load %arg12[%c0_336, %c0_337] : memref<1x32xf32, #tpu.memory_space<vmem>>, vector<1x32xf32>
    %980 = vector.broadcast %979 : vector<1x32xf32> to vector<16x32xf32>
    %981 = arith.addf %978, %980 : vector<16x32xf32>
    %cst_338 = arith.constant 5.000000e-01 : f32
    %982 = vector.broadcast %cst_338 : f32 to vector<16x32xf32>
    %983 = arith.mulf %982, %981 : vector<16x32xf32>
    %cst_339 = arith.constant 0.707106769 : f32
    %984 = vector.broadcast %cst_339 : f32 to vector<16x32xf32>
    %985 = arith.mulf %981, %984 : vector<16x32xf32>
    %cst_340 = arith.constant 0.000000e+00 : f32
    %986 = vector.broadcast %cst_340 : f32 to vector<16x32xf32>
    %987 = arith.cmpf oge, %985, %986 : vector<16x32xf32>
    %cst_341 = arith.constant 1.000000e+00 : f32
    %cst_342 = arith.constant -1.000000e+00 : f32
    %988 = vector.broadcast %cst_341 : f32 to vector<16x32xf32>
    %989 = vector.broadcast %cst_342 : f32 to vector<16x32xf32>
    %990 = arith.select %987, %988, %989 : vector<16x32xi1>, vector<16x32xf32>
    %991 = math.absf %985 : vector<16x32xf32>
    %cst_343 = arith.constant 0.327591091 : f32
    %992 = vector.broadcast %cst_343 : f32 to vector<16x32xf32>
    %993 = arith.mulf %992, %991 : vector<16x32xf32>
    %cst_344 = arith.constant 1.000000e+00 : f32
    %994 = vector.broadcast %cst_344 : f32 to vector<16x32xf32>
    %995 = arith.addf %994, %993 : vector<16x32xf32>
    %cst_345 = arith.constant 1.000000e+00 : f32
    %996 = vector.broadcast %cst_345 : f32 to vector<16x32xf32>
    %997 = arith.divf %996, %995 : vector<16x32xf32>
    %cst_346 = arith.constant 1.06140542 : f32
    %998 = vector.broadcast %cst_346 : f32 to vector<16x32xf32>
    %999 = arith.mulf %997, %998 : vector<16x32xf32>
    %cst_347 = arith.constant -1.45315206 : f32
    %1000 = vector.broadcast %cst_347 : f32 to vector<16x32xf32>
    %1001 = arith.addf %1000, %999 : vector<16x32xf32>
    %1002 = arith.mulf %997, %1001 : vector<16x32xf32>
    %cst_348 = arith.constant 1.42141378 : f32
    %1003 = vector.broadcast %cst_348 : f32 to vector<16x32xf32>
    %1004 = arith.addf %1003, %1002 : vector<16x32xf32>
    %1005 = arith.mulf %997, %1004 : vector<16x32xf32>
    %cst_349 = arith.constant -0.284496725 : f32
    %1006 = vector.broadcast %cst_349 : f32 to vector<16x32xf32>
    %1007 = arith.addf %1006, %1005 : vector<16x32xf32>
    %1008 = arith.mulf %997, %1007 : vector<16x32xf32>
    %cst_350 = arith.constant 0.254829586 : f32
    %1009 = vector.broadcast %cst_350 : f32 to vector<16x32xf32>
    %1010 = arith.addf %1009, %1008 : vector<16x32xf32>
    %1011 = arith.mulf %997, %1010 : vector<16x32xf32>
    %cst_351 = arith.constant 0.000000e+00 : f32
    %1012 = vector.broadcast %cst_351 : f32 to vector<16x32xf32>
    %1013 = arith.subf %1012, %991 : vector<16x32xf32>
    %1014 = arith.mulf %1013, %991 : vector<16x32xf32>
    %1015 = math.exp %1014 : vector<16x32xf32>
    %1016 = arith.mulf %1011, %1015 : vector<16x32xf32>
    %cst_352 = arith.constant 1.000000e+00 : f32
    %1017 = vector.broadcast %cst_352 : f32 to vector<16x32xf32>
    %1018 = arith.subf %1017, %1016 : vector<16x32xf32>
    %1019 = arith.mulf %990, %1018 : vector<16x32xf32>
    %cst_353 = arith.constant 1.000000e+00 : f32
    %1020 = vector.broadcast %cst_353 : f32 to vector<16x32xf32>
    %1021 = arith.addf %1020, %1019 : vector<16x32xf32>
    %1022 = arith.mulf %983, %1021 : vector<16x32xf32>
    %c0_354 = arith.constant 0 : index
    %c0_355 = arith.constant 0 : index
    %1023 = vector.load %arg13[%c0_354, %c0_355] : memref<1x32xf32, #tpu.memory_space<vmem>>, vector<1x32xf32>
    %1024 = vector.broadcast %1023 : vector<1x32xf32> to vector<16x32xf32>
    %1025 = arith.mulf %1022, %1024 : vector<16x32xf32>
    %cst_356 = arith.constant dense<0.000000e+00> : vector<16xf32>
    %1026 = vector.multi_reduction <add>, %1025, %cst_356 [1] : vector<16x32xf32> to vector<16xf32>
    %1027 = vector.shape_cast %1026 : vector<16xf32> to vector<16x1xf32>
    %c0_357 = arith.constant 0 : index
    %c0_358 = arith.constant 0 : index
    %1028 = vector.load %arg14[%c0_357, %c0_358] : memref<1x1xf32, #tpu.memory_space<vmem>>, vector<1x1xf32>
    %1029 = vector.broadcast %1028 : vector<1x1xf32> to vector<16x1xf32>
    %1030 = arith.addf %1027, %1029 : vector<16x1xf32>
    %1031 = arith.negf %1030 : vector<16x1xf32>
    %1032 = math.exp %1031 : vector<16x1xf32>
    %cst_359 = arith.constant 1.000000e+00 : f32
    %1033 = vector.broadcast %cst_359 : f32 to vector<16x1xf32>
    %1034 = arith.addf %1033, %1032 : vector<16x1xf32>
    %1035 = arith.divf %1033, %1034 : vector<16x1xf32>
    %c0_360 = arith.constant 0 : index
    %c0_361 = arith.constant 0 : index
    %1036 = vector.load %arg15[%c0_360, %c0_361] : memref<16x1xf32, #tpu.memory_space<vmem>>, vector<16x1xf32>
    tpu.vector_store %arg15[%c0_360, %c0_361], %1035 {strides = array<i32>} : memref<16x1xf32, #tpu.memory_space<vmem>>, vector<16x1xf32>,
    return
  }
}

</mosaic_0001>

<llo_original>
// kernel: tpu_custom_call.1
$region0: #{tpu_custom_call.1}
  #allocation0 [shape = 'u32[]', space=smem, size = 0x4, offset = 0x4, fixed_abs, tag = 'smem constant byte address 0x4 - core index']
  #allocation1 [shape = 'u32[72,128]{1,0:T(1,128)}', space=vmem, size = 0x9000, scoped, tag = 'internal scratch']
  #allocation2 [shape = 'f32[16,256]{1,0:T(8,128)}', space=vmem, size = 0x4000, scoped, tag = 'scratch operand']
  #allocation3 [shape = 'f32[16,64]{1,0:T(8,128)}', space=vmem, size = 0x2000, scoped, tag = 'scratch operand']
  #allocation4 [shape = 'f32[16,64]{1,0:T(8,128)}', space=vmem, size = 0x2000, scoped, tag = 'scratch operand']
  #allocation5 [shape = 'f32[1,1]{1,0:T(1,128)S(1)}', space=vmem, size = 0x200, scoped, tag = 'scoped memory for tpu_custom_call.1']
  %s0 = inlined_call_operand.hbm [shape: f32[16,16], index: 0, kind: input, shape index: {}]
  %s1 = inlined_call_operand.vmem [shape: f32[16,256], index: 1, kind: input, shape index: {}]
  %s2 = inlined_call_operand.hbm [shape: f32[64,128], index: 2, kind: input, shape index: {}]
  %s3 = inlined_call_operand.vmem [shape: f32[1,256], index: 3, kind: input, shape index: {}]
  %s4 = inlined_call_operand.vmem [shape: f32[64,256], index: 4, kind: input, shape index: {}]
  %s5 = inlined_call_operand.hbm [shape: f32[64,128], index: 5, kind: input, shape index: {}]
  %s6 = inlined_call_operand.vmem [shape: f32[1,256], index: 6, kind: input, shape index: {}]
  %s7 = inlined_call_operand.vmem [shape: f32[1,64], index: 7, kind: input, shape index: {}]
  %s8 = inlined_call_operand.vmem [shape: f32[1,64], index: 8, kind: input, shape index: {}]
  %s9 = inlined_call_operand.hbm [shape: f32[64,128], index: 9, kind: input, shape index: {}]
  %s10 = inlined_call_operand.vmem [shape: f32[1,128], index: 10, kind: input, shape index: {}]
  %s11 = inlined_call_operand.vmem [shape: f32[128,32], index: 11, kind: input, shape index: {}]
  %s12 = inlined_call_operand.vmem [shape: f32[1,32], index: 12, kind: input, shape index: {}]
  %s13 = inlined_call_operand.vmem [shape: f32[1,32], index: 13, kind: input, shape index: {}]
  %s14 = inlined_call_operand.<no memory space> [shape: f32[1,1], index: 14, kind: input, shape index: {}]
  %s15 = inlined_call_operand.vmem [shape: f32[16,1], index: 15, kind: output, shape index: {}]
  %s16 = sld [smem:[#allocation0]]
  $region86: #{tpu_custom_call.1} parent=0
    _
  %s18 = ssub.s32 1, %s16
  %s19 = scalar_select 0, %s18, %s16
  %v20 = vstv %s14
  %21 = vst [vmem:[#allocation5] sm:$0x1] %v20
  $region1: #{tpu_custom_call.1} parent=0
    #allocation6 [shape = 'u8[8192]{0}', space=vmem, size = 0x2000, scoped, tag = 'input window, operand 0, single buffered']
    #allocation7 [shape = 's32[1]{0}', space=sflag, size = 0x4, scoped, tag = 'scoped memory for tpu_custom_call.1']
    #allocation8 [shape = 'u8[32768]{0}', space=vmem, size = 0x8000, scoped, tag = 'input window, operand 2, single buffered']
    #allocation9 [shape = 's32[1]{0}', space=sflag, size = 0x4, scoped, tag = 'scoped memory for tpu_custom_call.1']
    #allocation10 [shape = 'u8[32768]{0}', space=vmem, size = 0x8000, scoped, tag = 'input window, operand 5, single buffered']
    #allocation11 [shape = 'u8[32768]{0}', space=vmem, size = 0x8000, scoped, tag = 'input window, operand 9, single buffered']
    #allocation12 [shape = 's32[1]{0}', space=sflag, size = 0x4, scoped, tag = 'scoped memory for tpu_custom_call.1']
    %22 = vsyncpa [#allocation7], 0
    %23 = vsyncpa [#allocation9], 0
    %24 = vsyncpa [#allocation12], 0
    // Predicated region
    $region2: #{tpu_custom_call.1} parent=1 // pred_check
      _
    $region3: #{tpu_custom_call.1} parent=1 // pred_check_branch
      %26 = sbr.rel (0) target = $region5
    $region4: #{tpu_custom_call.1} parent=1 // pred_region
      %28 = vsyncadd [#allocation7], 0
      %s29 = sshll.u32 %s0, 4
      %s30 = int_to_ptr.hbm [resolvable:$true] %s29
      %s31 = sshll.u32 [#allocation6], 4
      %s32 = int_to_ptr.vmem [resolvable:$true] %s31
      %37 = dma.hbm_to_vmem [thread:$0]  %s30, 256, %s32, [#allocation7], 128, 128, 8
    $region5: #{tpu_custom_call.1} parent=1 // pred_fallthru
      _
    // Predicated region
    $region6: #{tpu_custom_call.1} parent=1 // pred_check
      _
    $region7: #{tpu_custom_call.1} parent=1 // pred_check_branch
      %39 = sbr.rel (0) target = $region9
    $region8: #{tpu_custom_call.1} parent=1 // pred_region
      _
    $region9: #{tpu_custom_call.1} parent=1 // pred_fallthru
      _
    // Predicated region
    $region10: #{tpu_custom_call.1} parent=1 // pred_check
      _
    $region11: #{tpu_custom_call.1} parent=1 // pred_check_branch
      %41 = sbr.rel (0) target = $region13
    $region12: #{tpu_custom_call.1} parent=1 // pred_region
      %43 = vsyncadd [#allocation9], 0
      %s44 = sshll.u32 %s2, 4
      %s45 = int_to_ptr.hbm [resolvable:$true] %s44
      %s46 = sshll.u32 [#allocation8], 4
      %s47 = int_to_ptr.vmem [resolvable:$true] %s46
      %52 = dma.hbm_to_vmem [thread:$0]  %s45, 1024, %s47, [#allocation9], 128, 128, 8
    $region13: #{tpu_custom_call.1} parent=1 // pred_fallthru
      _
    // Predicated region
    $region14: #{tpu_custom_call.1} parent=1 // pred_check
      _
    $region15: #{tpu_custom_call.1} parent=1 // pred_check_branch
      %54 = sbr.rel (0) target = $region17
    $region16: #{tpu_custom_call.1} parent=1 // pred_region
      _
    $region17: #{tpu_custom_call.1} parent=1 // pred_fallthru
      _
    // Predicated region
    $region18: #{tpu_custom_call.1} parent=1 // pred_check
      _
    $region19: #{tpu_custom_call.1} parent=1 // pred_check_branch
      %56 = sbr.rel (0) target = $region21
    $region20: #{tpu_custom_call.1} parent=1 // pred_region
      _
    $region21: #{tpu_custom_call.1} parent=1 // pred_fallthru
      _
    // Predicated region
    $region22: #{tpu_custom_call.1} parent=1 // pred_check
      _
    $region23: #{tpu_custom_call.1} parent=1 // pred_check_branch
      %58 = sbr.rel (0) target = $region25
    $region24: #{tpu_custom_call.1} parent=1 // pred_region
      %60 = vsyncadd [#allocation9], 0
      %s61 = sshll.u32 %s5, 4
      %s62 = int_to_ptr.hbm [resolvable:$true] %s61
      %s63 = sshll.u32 [#allocation10], 4
      %s64 = int_to_ptr.vmem [resolvable:$true] %s63
      %69 = dma.hbm_to_vmem [thread:$0]  %s62, 1024, %s64, [#allocation9], 128, 128, 8
    $region25: #{tpu_custom_call.1} parent=1 // pred_fallthru
      _
    // Predicated region
    $region26: #{tpu_custom_call.1} parent=1 // pred_check
      _
    $region27: #{tpu_custom_call.1} parent=1 // pred_check_branch
      %71 = sbr.rel (0) target = $region29
    $region28: #{tpu_custom_call.1} parent=1 // pred_region
      _
    $region29: #{tpu_custom_call.1} parent=1 // pred_fallthru
      _
    // Predicated region
    $region30: #{tpu_custom_call.1} parent=1 // pred_check
      _
    $region31: #{tpu_custom_call.1} parent=1 // pred_check_branch
      %73 = sbr.rel (0) target = $region33
    $region32: #{tpu_custom_call.1} parent=1 // pred_region
      _
    $region33: #{tpu_custom_call.1} parent=1 // pred_fallthru
      _
    // Predicated region
    $region34: #{tpu_custom_call.1} parent=1 // pred_check
      _
    $region35: #{tpu_custom_call.1} parent=1 // pred_check_branch
      %75 = sbr.rel (0) target = $region37
    $region36: #{tpu_custom_call.1} parent=1 // pred_region
      _
    $region37: #{tpu_custom_call.1} parent=1 // pred_fallthru
      _
    // Predicated region
    $region38: #{tpu_custom_call.1} parent=1 // pred_check
      _
    $region39: #{tpu_custom_call.1} parent=1 // pred_check_branch
      %77 = sbr.rel (0) target = $region41
    $region40: #{tpu_custom_call.1} parent=1 // pred_region
      %79 = vsyncadd [#allocation12], 0
      %s80 = sshll.u32 %s9, 4
      %s81 = int_to_ptr.hbm [resolvable:$true] %s80
      %s82 = sshll.u32 [#allocation11], 4
      %s83 = int_to_ptr.vmem [resolvable:$true] %s82
      %88 = dma.hbm_to_vmem [thread:$0]  %s81, 1024, %s83, [#allocation12], 128, 128, 8
    $region41: #{tpu_custom_call.1} parent=1 // pred_fallthru
      _
    // Predicated region
    $region42: #{tpu_custom_call.1} parent=1 // pred_check
      _
    $region43: #{tpu_custom_call.1} parent=1 // pred_check_branch
      %90 = sbr.rel (0) target = $region45
    $region44: #{tpu_custom_call.1} parent=1 // pred_region
      _
    $region45: #{tpu_custom_call.1} parent=1 // pred_fallthru
      _
    // Predicated region
    $region46: #{tpu_custom_call.1} parent=1 // pred_check
      _
    $region47: #{tpu_custom_call.1} parent=1 // pred_check_branch
      %92 = sbr.rel (0) target = $region49
    $region48: #{tpu_custom_call.1} parent=1 // pred_region
      _
    $region49: #{tpu_custom_call.1} parent=1 // pred_fallthru
      _
    // Predicated region
    $region50: #{tpu_custom_call.1} parent=1 // pred_check
      _
    $region51: #{tpu_custom_call.1} parent=1 // pred_check_branch
      %94 = sbr.rel (0) target = $region53
    $region52: #{tpu_custom_call.1} parent=1 // pred_region
      _
    $region53: #{tpu_custom_call.1} parent=1 // pred_fallthru
      _
    // Predicated region
    $region54: #{tpu_custom_call.1} parent=1 // pred_check
      _
    $region55: #{tpu_custom_call.1} parent=1 // pred_check_branch
      %96 = sbr.rel (0) target = $region57
    $region56: #{tpu_custom_call.1} parent=1 // pred_region
      _
    $region57: #{tpu_custom_call.1} parent=1 // pred_fallthru
      _
    // Predicated region
    $region58: #{tpu_custom_call.1} parent=1 // pred_check
      _
    $region59: #{tpu_custom_call.1} parent=1 // pred_check_branch
      %98 = sbr.rel (0) target = $region61
    $region60: #{tpu_custom_call.1} parent=1 // pred_region
      _
    $region61: #{tpu_custom_call.1} parent=1 // pred_fallthru
      _
    // Predicated region
    $region62: #{tpu_custom_call.1} parent=1 // pred_check
      _
    $region63: #{tpu_custom_call.1} parent=1 // pred_check_branch
      %100 = sbr.rel (0) target = $region65
    $region64: #{tpu_custom_call.1} parent=1 // pred_region
      %102 = dma.done [#allocation7], 256
    $region65: #{tpu_custom_call.1} parent=1 // pred_fallthru
      _
    // Predicated region
    $region66: #{tpu_custom_call.1} parent=1 // pred_check
      _
    $region67: #{tpu_custom_call.1} parent=1 // pred_check_branch
      %104 = sbr.rel (0) target = $region69
    $region68: #{tpu_custom_call.1} parent=1 // pred_region
      %106 = dma.done [#allocation9], 1024
    $region69: #{tpu_custom_call.1} parent=1 // pred_fallthru
      _
    // Predicated region
    $region70: #{tpu_custom_call.1} parent=1 // pred_check
      _
    $region71: #{tpu_custom_call.1} parent=1 // pred_check_branch
      %108 = sbr.rel (0) target = $region73
    $region72: #{tpu_custom_call.1} parent=1 // pred_region
      %110 = dma.done [#allocation9], 1024
    $region73: #{tpu_custom_call.1} parent=1 // pred_fallthru
      _
    // Predicated region
    $region74: #{tpu_custom_call.1} parent=1 // pred_check
      _
    $region75: #{tpu_custom_call.1} parent=1 // pred_check_branch
      %112 = sbr.rel (0) target = $region77
    $region76: #{tpu_custom_call.1} parent=1 // pred_region
      %114 = dma.done [#allocation12], 1024
    $region77: #{tpu_custom_call.1} parent=1 // pred_fallthru
      _
    %v115 = vlaneseq
    %v116 = vand.u32 %v115, 127
    %vm117 = vcmp.ge.s32.totalorder %v116, 64
    %vm118 = vcmp.lt.s32.totalorder %v116, 96
    %vm119 = vmand %vm117, %vm118
    %v120 = vld [vmem:[#allocation6] sm:$0xff]
    %v121 = vld [vmem:[#allocation6 + $0x8] sm:$0xff]
    %v122 = vld [vmem:[%s1] sm:$0xff]
    %v123 = vld [vmem:[%s1 + $0x8] sm:$0xff]
    %v124 = vld [vmem:[%s1 + $0x10] sm:$0xff]
    %v125 = vld [vmem:[%s1 + $0x18] sm:$0xff]
    %v126 = vld [vmem:[%s3] sm:$0x3]
    %v128 = vperm.slane %v126, 0
    %v129 = vperm.slane %v126, 1
    %vm132 = vcmask 130048
    %v134 = vsel %vm132, %v120, 0
    %v137 = vsel %vm132, %v121, 0
    %139 = vmatpush.msra.mxu0 0.0
    %140 = vmatpush.msra.mxu0 0.0
    %141 = vmatpush.msra.mxu0 0.0
    %142 = vmatpush.msra.mxu0 0.0
    %143 = vmatpush.msra.mxu0 0.0
    %144 = vmatpush.msra.mxu0 0.0
    %145 = vmatpush.msra.mxu0 0.0
    %146 = vmatpush.msra.mxu0 0.0
    %147 = vmatpush.msra.mxu0 0.0
    %148 = vmatpush.msra.mxu0 0.0
    %149 = vmatpush.msra.mxu0 0.0
    %150 = vmatpush.msra.mxu0 0.0
    %151 = vmatpush.msra.mxu0 0.0
    %152 = vmatpush.msra.mxu0 0.0
    %153 = vmatpush.msra.mxu0 %v124
    %154 = vmatpush.msra.mxu0 %v122
    %155 = vmatmul.f32.gmra.mxu0 %v134
    %v156 = vpop.f32.mrf.mxu0
    %v157 = vadd.f32 %v128, %v156
    %158 = vmatmul.f32.gmra.mxu0 %v137
    %v159 = vpop.f32.mrf.mxu0
    %v160 = vadd.f32 %v128, %v159
    %161 = vdwg.mxu0
    %162 = vmatpush.msra.mxu0 0.0
    %163 = vmatpush.msra.mxu0 0.0
    %164 = vmatpush.msra.mxu0 0.0
    %165 = vmatpush.msra.mxu0 0.0
    %166 = vmatpush.msra.mxu0 0.0
    %167 = vmatpush.msra.mxu0 0.0
    %168 = vmatpush.msra.mxu0 0.0
    %169 = vmatpush.msra.mxu0 0.0
    %170 = vmatpush.msra.mxu0 0.0
    %171 = vmatpush.msra.mxu0 0.0
    %172 = vmatpush.msra.mxu0 0.0
    %173 = vmatpush.msra.mxu0 0.0
    %174 = vmatpush.msra.mxu0 0.0
    %175 = vmatpush.msra.mxu0 0.0
    %176 = vmatpush.msra.mxu0 %v125
    %177 = vmatpush.msra.mxu0 %v123
    %178 = vmatmul.f32.gmra.mxu0 %v134
    %v179 = vpop.f32.mrf.mxu0
    %v180 = vadd.f32 %v129, %v179
    %181 = vmatmul.f32.gmra.mxu0 %v137
    %v182 = vpop.f32.mrf.mxu0
    %v183 = vadd.f32 %v129, %v182
    %184 = vdwg.mxu0
    %185 = vst [vmem:[#allocation2] sm:$0xff] %v157
    %186 = vst [vmem:[#allocation2 + $0x8] sm:$0xff] %v180
    %187 = vst [vmem:[#allocation2 + $0x10] sm:$0xff] %v160
    %188 = vst [vmem:[#allocation2 + $0x18] sm:$0xff] %v183
    %v189 = vld [vmem:[#allocation8] sm:$0xff]
    %v190 = vld [vmem:[#allocation8 + $0x8] sm:$0xff]
    %v191 = vld [vmem:[#allocation8 + $0x10] sm:$0xff]
    %v192 = vld [vmem:[#allocation8 + $0x18] sm:$0xff]
    %v193 = vld [vmem:[#allocation8 + $0x20] sm:$0xff]
    %v194 = vld [vmem:[#allocation8 + $0x28] sm:$0xff]
    %v195 = vld [vmem:[#allocation8 + $0x30] sm:$0xff]
    %v196 = vld [vmem:[#allocation8 + $0x38] sm:$0xff]
    %v197 = vld [vmem:[#allocation2] sm:$0x3]
    %v198 = vld [vmem:[#allocation2 + $0x18] sm:$0xc0]
    %vm199 = vcmask 261120
    %v201 = vsel %vm199, 0.0, 0
    %203 = vmatpush.msra.mxu0 0.0
    %204 = vmatpush.msra.mxu0 0.0
    %205 = vmatpush.msra.mxu0 0.0
    %206 = vmatpush.msra.mxu0 0.0
    %207 = vmatpush.msra.mxu0 0.0
    %208 = vmatpush.msra.mxu0 0.0
    %209 = vmatpush.msra.mxu0 0.0
    %210 = vmatpush.msra.mxu0 0.0
    %211 = vmatpush.msra.mxu0 0.0
    %212 = vmatpush.msra.mxu0 0.0
    %213 = vmatpush.msra.mxu0 0.0
    %214 = vmatpush.msra.mxu0 0.0
    %215 = vmatpush.msra.mxu0 %v192
    %216 = vmatpush.msra.mxu0 %v191
    %217 = vmatpush.msra.mxu0 %v190
    %218 = vmatpush.msra.mxu0 %v189
    %219 = vmatmul.f32.gmra.mxu0 %v201
    %v220 = vpop.f32.mrf.mxu0
    %v221 = vadd.f32 0.0, %v220
    %222 = vdwg.mxu0
    %v223 = vadd.f32 %v197, %v221
    %224 = vmatpush.msra.mxu0 0.0
    %225 = vmatpush.msra.mxu0 0.0
    %226 = vmatpush.msra.mxu0 0.0
    %227 = vmatpush.msra.mxu0 0.0
    %228 = vmatpush.msra.mxu0 0.0
    %229 = vmatpush.msra.mxu0 0.0
    %230 = vmatpush.msra.mxu0 0.0
    %231 = vmatpush.msra.mxu0 0.0
    %232 = vmatpush.msra.mxu0 0.0
    %233 = vmatpush.msra.mxu0 0.0
    %234 = vmatpush.msra.mxu0 0.0
    %235 = vmatpush.msra.mxu0 0.0
    %236 = vmatpush.msra.mxu0 %v196
    %237 = vmatpush.msra.mxu0 %v195
    %238 = vmatpush.msra.mxu0 %v194
    %239 = vmatpush.msra.mxu0 %v193
    %240 = vmatmul.f32.gmra.mxu0 %v201
    %v241 = vpop.f32.mrf.mxu0
    %v242 = vadd.f32 0.0, %v241
    %243 = vdwg.mxu0
    %v245 = vrot.slane %v242, 2
    %v247 = vadd.f32 %v198, %v245
    %v248 = vxor.u32 %v223, 2147483648
    %v249 = vmul.f32 %v248, 1.442695
    %v250 = vpow.pop %v249
    %v251 = vadd.f32 %v250, 1.0
    %v252 = vrcp.pop %v251
    %v253 = vmul.f32 %v251, %v252
    %v254 = vsub.f32 1.0, %v253
    %v255 = vmul.f32 %v252, %v254
    %v256 = vadd.f32 %v252, %v255
    %vm257 = vweird.f32 %v251
    %vm258 = vweird.f32 %v252
    %vm259 = vmor %vm257, %vm258
    %v260 = vsel %vm259, %v252, %v256
    %v261 = vand.u32 2147483647, %v251
    %vm262 = vcmp.eq.f32.partialorder %v261, 8.507059e+37
    %v263 = vand.u32 %v251, 2147483648
    %v264 = vor.u32 1.1754944e-38, %v263
    %v265 = vsel %vm262, %v264, %v260
    %v266 = vmul.f32 1.0, %v265
    %v267 = vxor.u32 %v247, 2147483648
    %v268 = vmul.f32 %v267, 1.442695
    %v269 = vpow.pop %v268
    %v270 = vadd.f32 %v269, 1.0
    %v271 = vrcp.pop %v270
    %v272 = vmul.f32 %v270, %v271
    %v273 = vsub.f32 1.0, %v272
    %v274 = vmul.f32 %v271, %v273
    %v275 = vadd.f32 %v271, %v274
    %vm276 = vweird.f32 %v270
    %vm277 = vweird.f32 %v271
    %vm278 = vmor %vm276, %vm277
    %v279 = vsel %vm278, %v271, %v275
    %v280 = vand.u32 2147483647, %v270
    %vm281 = vcmp.eq.f32.partialorder %v280, 8.507059e+37
    %v282 = vand.u32 %v270, 2147483648
    %v283 = vor.u32 1.1754944e-38, %v282
    %v284 = vsel %vm281, %v283, %v279
    %v285 = vmul.f32 1.0, %v284
    %v286 = vmul.f32 %v266, 2.0
    %v287 = vsub.f32 %v286, 1.0
    %v288 = vsel %vm119, %v287, %v266
    %v289 = vmul.f32 %v285, 2.0
    %v290 = vsub.f32 %v289, 1.0
    %v291 = vsel %vm119, %v290, %v285
    %v292 = vmul.f32 %v288, 0.0
    %294 = vrot.lane.b32.xlu0 %v288, 64
    %v295 = vpop.permute.xlu0 %294
    %v297 = vmul.f32 %v288, %v295
    %299 = vrot.lane.b32.xlu0 %v297, 32
    %v300 = vpop.permute.xlu0 %299
    %v302 = vadd.f32 %v292, %v300
    %v303 = vmul.f32 %v291, 0.0
    %305 = vrot.lane.b32.xlu0 %v291, 64
    %v306 = vpop.permute.xlu0 %305
    %v308 = vmul.f32 %v291, %v306
    %310 = vrot.lane.b32.xlu0 %v308, 32
    %v311 = vpop.permute.xlu0 %310
    %v313 = vadd.f32 %v303, %v311
    %v314 = vtanh.pop %v302
    %316 = vrot.lane.b32.xlu0 %v314, 64
    %v317 = vpop.permute.xlu0 %316
    %v319 = vmul.f32 %v288, %v317
    %v320 = vtanh.pop %v313
    %322 = vrot.lane.b32.xlu0 %v320, 64
    %v323 = vpop.permute.xlu0 %322
    %v325 = vmul.f32 %v291, %v323
    %327 = vrot.lane.b32.xlu0 %v319, 32
    %v328 = vpop.permute.xlu0 %327
    %vm330 = vcmask 254976
    %331 = vst.msk [vmem:[#allocation3] sm:$0x3] %vm330, %v328
    %333 = vrot.lane.b32.xlu0 %v325, 64
    %v334 = vpop.permute.xlu0 %333
    %vm336 = vcmask 523526
    %337 = vst.msk [vmem:[#allocation3 + $0x8] sm:$0xc0] %vm336, %v334
    %v338 = vld [vmem:[#allocation2] sm:$0xc]
    %v339 = vld [vmem:[#allocation2 + $0x18] sm:$0x30]
    %v340 = vsel %vm199, %v328, 0
    %342 = vmatpush.msra.mxu0 0.0
    %343 = vmatpush.msra.mxu0 0.0
    %344 = vmatpush.msra.mxu0 0.0
    %345 = vmatpush.msra.mxu0 0.0
    %346 = vmatpush.msra.mxu0 0.0
    %347 = vmatpush.msra.mxu0 0.0
    %348 = vmatpush.msra.mxu0 0.0
    %349 = vmatpush.msra.mxu0 0.0
    %350 = vmatpush.msra.mxu0 0.0
    %351 = vmatpush.msra.mxu0 0.0
    %352 = vmatpush.msra.mxu0 0.0
    %353 = vmatpush.msra.mxu0 0.0
    %354 = vmatpush.msra.mxu0 %v192
    %355 = vmatpush.msra.mxu0 %v191
    %356 = vmatpush.msra.mxu0 %v190
    %357 = vmatpush.msra.mxu0 %v189
    %358 = vmatmul.f32.gmra.mxu0 %v340
    %v359 = vpop.f32.mrf.mxu0
    %v360 = vadd.f32 0.0, %v359
    %361 = vdwg.mxu0
    %v363 = vrot.slane %v360, 6
    %v365 = vadd.f32 %v338, %v363
    %v366 = vrot.slane %v325, 6
    %367 = vrot.lane.b32.xlu0 %v366, 32
    %v368 = vpop.permute.xlu0 %367
    %v369 = vsel %vm199, %v368, 0
    %371 = vmatpush.msra.mxu0 0.0
    %372 = vmatpush.msra.mxu0 0.0
    %373 = vmatpush.msra.mxu0 0.0
    %374 = vmatpush.msra.mxu0 0.0
    %375 = vmatpush.msra.mxu0 0.0
    %376 = vmatpush.msra.mxu0 0.0
    %377 = vmatpush.msra.mxu0 0.0
    %378 = vmatpush.msra.mxu0 0.0
    %379 = vmatpush.msra.mxu0 0.0
    %380 = vmatpush.msra.mxu0 0.0
    %381 = vmatpush.msra.mxu0 0.0
    %382 = vmatpush.msra.mxu0 0.0
    %383 = vmatpush.msra.mxu0 %v196
    %384 = vmatpush.msra.mxu0 %v195
    %385 = vmatpush.msra.mxu0 %v194
    %386 = vmatpush.msra.mxu0 %v193
    %387 = vmatmul.f32.gmra.mxu0 %v369
    %v388 = vpop.f32.mrf.mxu0
    %v389 = vadd.f32 0.0, %v388
    %390 = vdwg.mxu0
    %v392 = vrot.slane %v389, 4
    %v394 = vadd.f32 %v339, %v392
    %v395 = vxor.u32 %v365, 2147483648
    %v396 = vmul.f32 %v395, 1.442695
    %v397 = vpow.pop %v396
    %v398 = vadd.f32 %v397, 1.0
    %v399 = vrcp.pop %v398
    %v400 = vmul.f32 %v398, %v399
    %v401 = vsub.f32 1.0, %v400
    %v402 = vmul.f32 %v399, %v401
    %v403 = vadd.f32 %v399, %v402
    %vm404 = vweird.f32 %v398
    %vm405 = vweird.f32 %v399
    %vm406 = vmor %vm404, %vm405
    %v407 = vsel %vm406, %v399, %v403
    %v408 = vand.u32 2147483647, %v398
    %vm409 = vcmp.eq.f32.partialorder %v408, 8.507059e+37
    %v410 = vand.u32 %v398, 2147483648
    %v411 = vor.u32 1.1754944e-38, %v410
    %v412 = vsel %vm409, %v411, %v407
    %v413 = vmul.f32 1.0, %v412
    %v414 = vxor.u32 %v394, 2147483648
    %v415 = vmul.f32 %v414, 1.442695
    %v416 = vpow.pop %v415
    %v417 = vadd.f32 %v416, 1.0
    %v418 = vrcp.pop %v417
    %v419 = vmul.f32 %v417, %v418
    %v420 = vsub.f32 1.0, %v419
    %v421 = vmul.f32 %v418, %v420
    %v422 = vadd.f32 %v418, %v421
    %vm423 = vweird.f32 %v417
    %vm424 = vweird.f32 %v418
    %vm425 = vmor %vm423, %vm424
    %v426 = vsel %vm425, %v418, %v422
    %v427 = vand.u32 2147483647, %v417
    %vm428 = vcmp.eq.f32.partialorder %v427, 8.507059e+37
    %v429 = vand.u32 %v417, 2147483648
    %v430 = vor.u32 1.1754944e-38, %v429
    %v431 = vsel %vm428, %v430, %v426
    %v432 = vmul.f32 1.0, %v431
    %v433 = vmul.f32 %v413, 2.0
    %v434 = vsub.f32 %v433, 1.0
    %v435 = vsel %vm119, %v434, %v413
    %v436 = vmul.f32 %v432, 2.0
    %v437 = vsub.f32 %v436, 1.0
    %v438 = vsel %vm119, %v437, %v432
    %v440 = vrot.slane %v302, 6
    %v442 = vmul.f32 %v435, %v440
    %444 = vrot.lane.b32.xlu0 %v435, 64
    %v445 = vpop.permute.xlu0 %444
    %v447 = vmul.f32 %v435, %v445
    %449 = vrot.lane.b32.xlu0 %v447, 32
    %v450 = vpop.permute.xlu0 %449
    %v452 = vadd.f32 %v442, %v450
    %v454 = vrot.slane %v313, 2
    %v456 = vmul.f32 %v438, %v454
    %458 = vrot.lane.b32.xlu0 %v438, 64
    %v459 = vpop.permute.xlu0 %458
    %v461 = vmul.f32 %v438, %v459
    %463 = vrot.lane.b32.xlu0 %v461, 32
    %v464 = vpop.permute.xlu0 %463
    %v466 = vadd.f32 %v456, %v464
    %v467 = vtanh.pop %v452
    %469 = vrot.lane.b32.xlu0 %v467, 64
    %v470 = vpop.permute.xlu0 %469
    %v472 = vmul.f32 %v435, %v470
    %v473 = vtanh.pop %v466
    %475 = vrot.lane.b32.xlu0 %v473, 64
    %v476 = vpop.permute.xlu0 %475
    %v478 = vmul.f32 %v438, %v476
    %480 = vrot.lane.b32.xlu0 %v472, 32
    %v481 = vpop.permute.xlu0 %480
    %vm483 = vcmask 257026
    %484 = vst.msk [vmem:[#allocation3] sm:$0xc] %vm483, %v481
    %486 = vrot.lane.b32.xlu0 %v478, 64
    %v487 = vpop.permute.xlu0 %486
    %vm489 = vcmask 521476
    %490 = vst.msk [vmem:[#allocation3 + $0x8] sm:$0x30] %vm489, %v487
    %v491 = vld [vmem:[#allocation2] sm:$0x30]
    %v492 = vld [vmem:[#allocation2 + $0x18] sm:$0xc]
    %v493 = vrot.slane %v472, 2
    %494 = vrot.lane.b32.xlu0 %v493, 32
    %v495 = vpop.permute.xlu0 %494
    %v496 = vsel %vm199, %v495, 0
    %498 = vmatpush.msra.mxu0 0.0
    %499 = vmatpush.msra.mxu0 0.0
    %500 = vmatpush.msra.mxu0 0.0
    %501 = vmatpush.msra.mxu0 0.0
    %502 = vmatpush.msra.mxu0 0.0
    %503 = vmatpush.msra.mxu0 0.0
    %504 = vmatpush.msra.mxu0 0.0
    %505 = vmatpush.msra.mxu0 0.0
    %506 = vmatpush.msra.mxu0 0.0
    %507 = vmatpush.msra.mxu0 0.0
    %508 = vmatpush.msra.mxu0 0.0
    %509 = vmatpush.msra.mxu0 0.0
    %510 = vmatpush.msra.mxu0 %v192
    %511 = vmatpush.msra.mxu0 %v191
    %512 = vmatpush.msra.mxu0 %v190
    %513 = vmatpush.msra.mxu0 %v189
    %514 = vmatmul.f32.gmra.mxu0 %v496
    %v515 = vpop.f32.mrf.mxu0
    %v516 = vadd.f32 0.0, %v515
    %517 = vdwg.mxu0
    %v519 = vrot.slane %v516, 4
    %v521 = vadd.f32 %v491, %v519
    %v522 = vrot.slane %v478, 4
    %523 = vrot.lane.b32.xlu0 %v522, 32
    %v524 = vpop.permute.xlu0 %523
    %v525 = vsel %vm199, %v524, 0
    %527 = vmatpush.msra.mxu0 0.0
    %528 = vmatpush.msra.mxu0 0.0
    %529 = vmatpush.msra.mxu0 0.0
    %530 = vmatpush.msra.mxu0 0.0
    %531 = vmatpush.msra.mxu0 0.0
    %532 = vmatpush.msra.mxu0 0.0
    %533 = vmatpush.msra.mxu0 0.0
    %534 = vmatpush.msra.mxu0 0.0
    %535 = vmatpush.msra.mxu0 0.0
    %536 = vmatpush.msra.mxu0 0.0
    %537 = vmatpush.msra.mxu0 0.0
    %538 = vmatpush.msra.mxu0 0.0
    %539 = vmatpush.msra.mxu0 %v196
    %540 = vmatpush.msra.mxu0 %v195
    %541 = vmatpush.msra.mxu0 %v194
    %542 = vmatpush.msra.mxu0 %v193
    %543 = vmatmul.f32.gmra.mxu0 %v525
    %v544 = vpop.f32.mrf.mxu0
    %v545 = vadd.f32 0.0, %v544
    %546 = vdwg.mxu0
    %v548 = vrot.slane %v545, 6
    %v550 = vadd.f32 %v492, %v548
    %v551 = vxor.u32 %v521, 2147483648
    %v552 = vmul.f32 %v551, 1.442695
    %v553 = vpow.pop %v552
    %v554 = vadd.f32 %v553, 1.0
    %v555 = vrcp.pop %v554
    %v556 = vmul.f32 %v554, %v555
    %v557 = vsub.f32 1.0, %v556
    %v558 = vmul.f32 %v555, %v557
    %v559 = vadd.f32 %v555, %v558
    %vm560 = vweird.f32 %v554
    %vm561 = vweird.f32 %v555
    %vm562 = vmor %vm560, %vm561
    %v563 = vsel %vm562, %v555, %v559
    %v564 = vand.u32 2147483647, %v554
    %vm565 = vcmp.eq.f32.partialorder %v564, 8.507059e+37
    %v566 = vand.u32 %v554, 2147483648
    %v567 = vor.u32 1.1754944e-38, %v566
    %v568 = vsel %vm565, %v567, %v563
    %v569 = vmul.f32 1.0, %v568
    %v570 = vxor.u32 %v550, 2147483648
    %v571 = vmul.f32 %v570, 1.442695
    %v572 = vpow.pop %v571
    %v573 = vadd.f32 %v572, 1.0
    %v574 = vrcp.pop %v573
    %v575 = vmul.f32 %v573, %v574
    %v576 = vsub.f32 1.0, %v575
    %v577 = vmul.f32 %v574, %v576
    %v578 = vadd.f32 %v574, %v577
    %vm579 = vweird.f32 %v573
    %vm580 = vweird.f32 %v574
    %vm581 = vmor %vm579, %vm580
    %v582 = vsel %vm581, %v574, %v578
    %v583 = vand.u32 2147483647, %v573
    %vm584 = vcmp.eq.f32.partialorder %v583, 8.507059e+37
    %v585 = vand.u32 %v573, 2147483648
    %v586 = vor.u32 1.1754944e-38, %v585
    %v587 = vsel %vm584, %v586, %v582
    %v588 = vmul.f32 1.0, %v587
    %v589 = vmul.f32 %v569, 2.0
    %v590 = vsub.f32 %v589, 1.0
    %v591 = vsel %vm119, %v590, %v569
    %v592 = vmul.f32 %v588, 2.0
    %v593 = vsub.f32 %v592, 1.0
    %v594 = vsel %vm119, %v593, %v588
    %v596 = vrot.slane %v452, 6
    %v598 = vmul.f32 %v591, %v596
    %600 = vrot.lane.b32.xlu0 %v591, 64
    %v601 = vpop.permute.xlu0 %600
    %v603 = vmul.f32 %v591, %v601
    %605 = vrot.lane.b32.xlu0 %v603, 32
    %v606 = vpop.permute.xlu0 %605
    %v608 = vadd.f32 %v598, %v606
    %v610 = vrot.slane %v466, 2
    %v612 = vmul.f32 %v594, %v610
    %614 = vrot.lane.b32.xlu0 %v594, 64
    %v615 = vpop.permute.xlu0 %614
    %v617 = vmul.f32 %v594, %v615
    %619 = vrot.lane.b32.xlu0 %v617, 32
    %v620 = vpop.permute.xlu0 %619
    %v622 = vadd.f32 %v612, %v620
    %v623 = vtanh.pop %v608
    %625 = vrot.lane.b32.xlu0 %v623, 64
    %v626 = vpop.permute.xlu0 %625
    %v628 = vmul.f32 %v591, %v626
    %v629 = vtanh.pop %v622
    %631 = vrot.lane.b32.xlu0 %v629, 64
    %v632 = vpop.permute.xlu0 %631
    %v634 = vmul.f32 %v594, %v632
    %636 = vrot.lane.b32.xlu0 %v628, 32
    %v637 = vpop.permute.xlu0 %636
    %vm639 = vcmask 259076
    %640 = vst.msk [vmem:[#allocation3] sm:$0x30] %vm639, %v637
    %642 = vrot.lane.b32.xlu0 %v634, 64
    %v643 = vpop.permute.xlu0 %642
    %vm645 = vcmask 519426
    %646 = vst.msk [vmem:[#allocation3 + $0x8] sm:$0xc] %vm645, %v643
    %v647 = vld [vmem:[#allocation2] sm:$0xc0]
    %v648 = vld [vmem:[#allocation2 + $0x18] sm:$0x3]
    %v649 = vrot.slane %v628, 4
    %650 = vrot.lane.b32.xlu0 %v649, 32
    %v651 = vpop.permute.xlu0 %650
    %v652 = vsel %vm199, %v651, 0
    %654 = vmatpush.msra.mxu0 0.0
    %655 = vmatpush.msra.mxu0 0.0
    %656 = vmatpush.msra.mxu0 0.0
    %657 = vmatpush.msra.mxu0 0.0
    %658 = vmatpush.msra.mxu0 0.0
    %659 = vmatpush.msra.mxu0 0.0
    %660 = vmatpush.msra.mxu0 0.0
    %661 = vmatpush.msra.mxu0 0.0
    %662 = vmatpush.msra.mxu0 0.0
    %663 = vmatpush.msra.mxu0 0.0
    %664 = vmatpush.msra.mxu0 0.0
    %665 = vmatpush.msra.mxu0 0.0
    %666 = vmatpush.msra.mxu0 %v192
    %667 = vmatpush.msra.mxu0 %v191
    %668 = vmatpush.msra.mxu0 %v190
    %669 = vmatpush.msra.mxu0 %v189
    %670 = vmatmul.f32.gmra.mxu0 %v652
    %v671 = vpop.f32.mrf.mxu0
    %v672 = vadd.f32 0.0, %v671
    %673 = vdwg.mxu0
    %v675 = vrot.slane %v672, 2
    %v677 = vadd.f32 %v647, %v675
    %v678 = vrot.slane %v634, 2
    %679 = vrot.lane.b32.xlu0 %v678, 32
    %v680 = vpop.permute.xlu0 %679
    %v681 = vsel %vm199, %v680, 0
    %683 = vmatpush.msra.mxu0 0.0
    %684 = vmatpush.msra.mxu0 0.0
    %685 = vmatpush.msra.mxu0 0.0
    %686 = vmatpush.msra.mxu0 0.0
    %687 = vmatpush.msra.mxu0 0.0
    %688 = vmatpush.msra.mxu0 0.0
    %689 = vmatpush.msra.mxu0 0.0
    %690 = vmatpush.msra.mxu0 0.0
    %691 = vmatpush.msra.mxu0 0.0
    %692 = vmatpush.msra.mxu0 0.0
    %693 = vmatpush.msra.mxu0 0.0
    %694 = vmatpush.msra.mxu0 0.0
    %695 = vmatpush.msra.mxu0 %v196
    %696 = vmatpush.msra.mxu0 %v195
    %697 = vmatpush.msra.mxu0 %v194
    %698 = vmatpush.msra.mxu0 %v193
    %699 = vmatmul.f32.gmra.mxu0 %v681
    %v700 = vpop.f32.mrf.mxu0
    %v701 = vadd.f32 0.0, %v700
    %702 = vdwg.mxu0
    %v703 = vadd.f32 %v648, %v701
    %v704 = vxor.u32 %v677, 2147483648
    %v705 = vmul.f32 %v704, 1.442695
    %v706 = vpow.pop %v705
    %v707 = vadd.f32 %v706, 1.0
    %v708 = vrcp.pop %v707
    %v709 = vmul.f32 %v707, %v708
    %v710 = vsub.f32 1.0, %v709
    %v711 = vmul.f32 %v708, %v710
    %v712 = vadd.f32 %v708, %v711
    %vm713 = vweird.f32 %v707
    %vm714 = vweird.f32 %v708
    %vm715 = vmor %vm713, %vm714
    %v716 = vsel %vm715, %v708, %v712
    %v717 = vand.u32 2147483647, %v707
    %vm718 = vcmp.eq.f32.partialorder %v717, 8.507059e+37
    %v719 = vand.u32 %v707, 2147483648
    %v720 = vor.u32 1.1754944e-38, %v719
    %v721 = vsel %vm718, %v720, %v716
    %v722 = vmul.f32 1.0, %v721
    %v723 = vxor.u32 %v703, 2147483648
    %v724 = vmul.f32 %v723, 1.442695
    %v725 = vpow.pop %v724
    %v726 = vadd.f32 %v725, 1.0
    %v727 = vrcp.pop %v726
    %v728 = vmul.f32 %v726, %v727
    %v729 = vsub.f32 1.0, %v728
    %v730 = vmul.f32 %v727, %v729
    %v731 = vadd.f32 %v727, %v730
    %vm732 = vweird.f32 %v726
    %vm733 = vweird.f32 %v727
    %vm734 = vmor %vm732, %vm733
    %v735 = vsel %vm734, %v727, %v731
    %v736 = vand.u32 2147483647, %v726
    %vm737 = vcmp.eq.f32.partialorder %v736, 8.507059e+37
    %v738 = vand.u32 %v726, 2147483648
    %v739 = vor.u32 1.1754944e-38, %v738
    %v740 = vsel %vm737, %v739, %v735
    %v741 = vmul.f32 1.0, %v740
    %v742 = vmul.f32 %v722, 2.0
    %v743 = vsub.f32 %v742, 1.0
    %v744 = vsel %vm119, %v743, %v722
    %v745 = vmul.f32 %v741, 2.0
    %v746 = vsub.f32 %v745, 1.0
    %v747 = vsel %vm119, %v746, %v741
    %v749 = vrot.slane %v608, 6
    %v751 = vmul.f32 %v744, %v749
    %753 = vrot.lane.b32.xlu0 %v744, 64
    %v754 = vpop.permute.xlu0 %753
    %v756 = vmul.f32 %v744, %v754
    %758 = vrot.lane.b32.xlu0 %v756, 32
    %v759 = vpop.permute.xlu0 %758
    %v761 = vadd.f32 %v751, %v759
    %v763 = vrot.slane %v622, 2
    %v765 = vmul.f32 %v747, %v763
    %767 = vrot.lane.b32.xlu0 %v747, 64
    %v768 = vpop.permute.xlu0 %767
    %v770 = vmul.f32 %v747, %v768
    %772 = vrot.lane.b32.xlu0 %v770, 32
    %v773 = vpop.permute.xlu0 %772
    %v775 = vadd.f32 %v765, %v773
    %v776 = vtanh.pop %v761
    %778 = vrot.lane.b32.xlu0 %v776, 64
    %v779 = vpop.permute.xlu0 %778
    %v781 = vmul.f32 %v744, %v779
    %v782 = vtanh.pop %v775
    %784 = vrot.lane.b32.xlu0 %v782, 64
    %v785 = vpop.permute.xlu0 %784
    %v787 = vmul.f32 %v747, %v785
    %789 = vrot.lane.b32.xlu0 %v781, 32
    %v790 = vpop.permute.xlu0 %789
    %vm792 = vcmask 261126
    %793 = vst.msk [vmem:[#allocation3] sm:$0xc0] %vm792, %v790
    %795 = vrot.lane.b32.xlu0 %v787, 64
    %v796 = vpop.permute.xlu0 %795
    %vm798 = vcmask 517376
    %799 = vst.msk [vmem:[#allocation3 + $0x8] sm:$0x3] %vm798, %v796
    %v800 = vld [vmem:[#allocation2 + $0x10] sm:$0x3]
    %v801 = vld [vmem:[#allocation2 + $0x8] sm:$0xc0]
    %v802 = vrot.slane %v781, 6
    %803 = vrot.lane.b32.xlu0 %v802, 32
    %v804 = vpop.permute.xlu0 %803
    %v805 = vsel %vm199, %v804, 0
    %807 = vmatpush.msra.mxu0 0.0
    %808 = vmatpush.msra.mxu0 0.0
    %809 = vmatpush.msra.mxu0 0.0
    %810 = vmatpush.msra.mxu0 0.0
    %811 = vmatpush.msra.mxu0 0.0
    %812 = vmatpush.msra.mxu0 0.0
    %813 = vmatpush.msra.mxu0 0.0
    %814 = vmatpush.msra.mxu0 0.0
    %815 = vmatpush.msra.mxu0 0.0
    %816 = vmatpush.msra.mxu0 0.0
    %817 = vmatpush.msra.mxu0 0.0
    %818 = vmatpush.msra.mxu0 0.0
    %819 = vmatpush.msra.mxu0 %v192
    %820 = vmatpush.msra.mxu0 %v191
    %821 = vmatpush.msra.mxu0 %v190
    %822 = vmatpush.msra.mxu0 %v189
    %823 = vmatmul.f32.gmra.mxu0 %v805
    %v824 = vpop.f32.mrf.mxu0
    %v825 = vadd.f32 0.0, %v824
    %826 = vdwg.mxu0
    %v827 = vadd.f32 %v800, %v825
    %828 = vrot.lane.b32.xlu0 %v787, 32
    %v829 = vpop.permute.xlu0 %828
    %v830 = vsel %vm199, %v829, 0
    %832 = vmatpush.msra.mxu0 0.0
    %833 = vmatpush.msra.mxu0 0.0
    %834 = vmatpush.msra.mxu0 0.0
    %835 = vmatpush.msra.mxu0 0.0
    %836 = vmatpush.msra.mxu0 0.0
    %837 = vmatpush.msra.mxu0 0.0
    %838 = vmatpush.msra.mxu0 0.0
    %839 = vmatpush.msra.mxu0 0.0
    %840 = vmatpush.msra.mxu0 0.0
    %841 = vmatpush.msra.mxu0 0.0
    %842 = vmatpush.msra.mxu0 0.0
    %843 = vmatpush.msra.mxu0 0.0
    %844 = vmatpush.msra.mxu0 %v196
    %845 = vmatpush.msra.mxu0 %v195
    %846 = vmatpush.msra.mxu0 %v194
    %847 = vmatpush.msra.mxu0 %v193
    %848 = vmatmul.f32.gmra.mxu0 %v830
    %v849 = vpop.f32.mrf.mxu0
    %v850 = vadd.f32 0.0, %v849
    %851 = vdwg.mxu0
    %v853 = vrot.slane %v850, 2
    %v855 = vadd.f32 %v801, %v853
    %v856 = vxor.u32 %v827, 2147483648
    %v857 = vmul.f32 %v856, 1.442695
    %v858 = vpow.pop %v857
    %v859 = vadd.f32 %v858, 1.0
    %v860 = vrcp.pop %v859
    %v861 = vmul.f32 %v859, %v860
    %v862 = vsub.f32 1.0, %v861
    %v863 = vmul.f32 %v860, %v862
    %v864 = vadd.f32 %v860, %v863
    %vm865 = vweird.f32 %v859
    %vm866 = vweird.f32 %v860
    %vm867 = vmor %vm865, %vm866
    %v868 = vsel %vm867, %v860, %v864
    %v869 = vand.u32 2147483647, %v859
    %vm870 = vcmp.eq.f32.partialorder %v869, 8.507059e+37
    %v871 = vand.u32 %v859, 2147483648
    %v872 = vor.u32 1.1754944e-38, %v871
    %v873 = vsel %vm870, %v872, %v868
    %v874 = vmul.f32 1.0, %v873
    %v875 = vxor.u32 %v855, 2147483648
    %v876 = vmul.f32 %v875, 1.442695
    %v877 = vpow.pop %v876
    %v878 = vadd.f32 %v877, 1.0
    %v879 = vrcp.pop %v878
    %v880 = vmul.f32 %v878, %v879
    %v881 = vsub.f32 1.0, %v880
    %v882 = vmul.f32 %v879, %v881
    %v883 = vadd.f32 %v879, %v882
    %vm884 = vweird.f32 %v878
    %vm885 = vweird.f32 %v879
    %vm886 = vmor %vm884, %vm885
    %v887 = vsel %vm886, %v879, %v883
    %v888 = vand.u32 2147483647, %v878
    %vm889 = vcmp.eq.f32.partialorder %v888, 8.507059e+37
    %v890 = vand.u32 %v878, 2147483648
    %v891 = vor.u32 1.1754944e-38, %v890
    %v892 = vsel %vm889, %v891, %v887
    %v893 = vmul.f32 1.0, %v892
    %v894 = vmul.f32 %v874, 2.0
    %v895 = vsub.f32 %v894, 1.0
    %v896 = vsel %vm119, %v895, %v874
    %v897 = vmul.f32 %v893, 2.0
    %v898 = vsub.f32 %v897, 1.0
    %v899 = vsel %vm119, %v898, %v893
    %v901 = vrot.slane %v761, 6
    %v903 = vmul.f32 %v896, %v901
    %905 = vrot.lane.b32.xlu0 %v896, 64
    %v906 = vpop.permute.xlu0 %905
    %v908 = vmul.f32 %v896, %v906
    %910 = vrot.lane.b32.xlu0 %v908, 32
    %v911 = vpop.permute.xlu0 %910
    %v913 = vadd.f32 %v903, %v911
    %v915 = vrot.slane %v775, 2
    %v917 = vmul.f32 %v899, %v915
    %919 = vrot.lane.b32.xlu0 %v899, 64
    %v920 = vpop.permute.xlu0 %919
    %v922 = vmul.f32 %v899, %v920
    %924 = vrot.lane.b32.xlu0 %v922, 32
    %v925 = vpop.permute.xlu0 %924
    %v927 = vadd.f32 %v917, %v925
    %v928 = vtanh.pop %v913
    %930 = vrot.lane.b32.xlu0 %v928, 64
    %v931 = vpop.permute.xlu0 %930
    %v933 = vmul.f32 %v896, %v931
    %v934 = vtanh.pop %v927
    %936 = vrot.lane.b32.xlu0 %v934, 64
    %v937 = vpop.permute.xlu0 %936
    %v939 = vmul.f32 %v899, %v937
    %941 = vrot.lane.b32.xlu0 %v933, 32
    %v942 = vpop.permute.xlu0 %941
    %944 = vst.msk [vmem:[#allocation3 + $0x8] sm:$0x3] %vm330, %v942
    %946 = vrot.lane.b32.xlu0 %v939, 64
    %v947 = vpop.permute.xlu0 %946
    %949 = vst.msk [vmem:[#allocation3] sm:$0xc0] %vm336, %v947
    %v950 = vld [vmem:[#allocation2 + $0x10] sm:$0xc]
    %v951 = vld [vmem:[#allocation2 + $0x8] sm:$0x30]
    %v952 = vsel %vm199, %v942, 0
    %954 = vmatpush.msra.mxu0 0.0
    %955 = vmatpush.msra.mxu0 0.0
    %956 = vmatpush.msra.mxu0 0.0
    %957 = vmatpush.msra.mxu0 0.0
    %958 = vmatpush.msra.mxu0 0.0
    %959 = vmatpush.msra.mxu0 0.0
    %960 = vmatpush.msra.mxu0 0.0
    %961 = vmatpush.msra.mxu0 0.0
    %962 = vmatpush.msra.mxu0 0.0
    %963 = vmatpush.msra.mxu0 0.0
    %964 = vmatpush.msra.mxu0 0.0
    %965 = vmatpush.msra.mxu0 0.0
    %966 = vmatpush.msra.mxu0 %v192
    %967 = vmatpush.msra.mxu0 %v191
    %968 = vmatpush.msra.mxu0 %v190
    %969 = vmatpush.msra.mxu0 %v189
    %970 = vmatmul.f32.gmra.mxu0 %v952
    %v971 = vpop.f32.mrf.mxu0
    %v972 = vadd.f32 0.0, %v971
    %973 = vdwg.mxu0
    %v975 = vrot.slane %v972, 6
    %v977 = vadd.f32 %v950, %v975
    %v978 = vrot.slane %v939, 6
    %979 = vrot.lane.b32.xlu0 %v978, 32
    %v980 = vpop.permute.xlu0 %979
    %v981 = vsel %vm199, %v980, 0
    %983 = vmatpush.msra.mxu0 0.0
    %984 = vmatpush.msra.mxu0 0.0
    %985 = vmatpush.msra.mxu0 0.0
    %986 = vmatpush.msra.mxu0 0.0
    %987 = vmatpush.msra.mxu0 0.0
    %988 = vmatpush.msra.mxu0 0.0
    %989 = vmatpush.msra.mxu0 0.0
    %990 = vmatpush.msra.mxu0 0.0
    %991 = vmatpush.msra.mxu0 0.0
    %992 = vmatpush.msra.mxu0 0.0
    %993 = vmatpush.msra.mxu0 0.0
    %994 = vmatpush.msra.mxu0 0.0
    %995 = vmatpush.msra.mxu0 %v196
    %996 = vmatpush.msra.mxu0 %v195
    %997 = vmatpush.msra.mxu0 %v194
    %998 = vmatpush.msra.mxu0 %v193
    %999 = vmatmul.f32.gmra.mxu0 %v981
    %v1000 = vpop.f32.mrf.mxu0
    %v1001 = vadd.f32 0.0, %v1000
    %1002 = vdwg.mxu0
    %v1004 = vrot.slane %v1001, 4
    %v1006 = vadd.f32 %v951, %v1004
    %v1007 = vxor.u32 %v977, 2147483648
    %v1008 = vmul.f32 %v1007, 1.442695
    %v1009 = vpow.pop %v1008
    %v1010 = vadd.f32 %v1009, 1.0
    %v1011 = vrcp.pop %v1010
    %v1012 = vmul.f32 %v1010, %v1011
    %v1013 = vsub.f32 1.0, %v1012
    %v1014 = vmul.f32 %v1011, %v1013
    %v1015 = vadd.f32 %v1011, %v1014
    %vm1016 = vweird.f32 %v1010
    %vm1017 = vweird.f32 %v1011
    %vm1018 = vmor %vm1016, %vm1017
    %v1019 = vsel %vm1018, %v1011, %v1015
    %v1020 = vand.u32 2147483647, %v1010
    %vm1021 = vcmp.eq.f32.partialorder %v1020, 8.507059e+37
    %v1022 = vand.u32 %v1010, 2147483648
    %v1023 = vor.u32 1.1754944e-38, %v1022
    %v1024 = vsel %vm1021, %v1023, %v1019
    %v1025 = vmul.f32 1.0, %v1024
    %v1026 = vxor.u32 %v1006, 2147483648
    %v1027 = vmul.f32 %v1026, 1.442695
    %v1028 = vpow.pop %v1027
    %v1029 = vadd.f32 %v1028, 1.0
    %v1030 = vrcp.pop %v1029
    %v1031 = vmul.f32 %v1029, %v1030
    %v1032 = vsub.f32 1.0, %v1031
    %v1033 = vmul.f32 %v1030, %v1032
    %v1034 = vadd.f32 %v1030, %v1033
    %vm1035 = vweird.f32 %v1029
    %vm1036 = vweird.f32 %v1030
    %vm1037 = vmor %vm1035, %vm1036
    %v1038 = vsel %vm1037, %v1030, %v1034
    %v1039 = vand.u32 2147483647, %v1029
    %vm1040 = vcmp.eq.f32.partialorder %v1039, 8.507059e+37
    %v1041 = vand.u32 %v1029, 2147483648
    %v1042 = vor.u32 1.1754944e-38, %v1041
    %v1043 = vsel %vm1040, %v1042, %v1038
    %v1044 = vmul.f32 1.0, %v1043
    %v1045 = vmul.f32 %v1025, 2.0
    %v1046 = vsub.f32 %v1045, 1.0
    %v1047 = vsel %vm119, %v1046, %v1025
    %v1048 = vmul.f32 %v1044, 2.0
    %v1049 = vsub.f32 %v1048, 1.0
    %v1050 = vsel %vm119, %v1049, %v1044
    %v1052 = vrot.slane %v913, 6
    %v1054 = vmul.f32 %v1047, %v1052
    %1056 = vrot.lane.b32.xlu0 %v1047, 64
    %v1057 = vpop.permute.xlu0 %1056
    %v1059 = vmul.f32 %v1047, %v1057
    %1061 = vrot.lane.b32.xlu0 %v1059, 32
    %v1062 = vpop.permute.xlu0 %1061
    %v1064 = vadd.f32 %v1054, %v1062
    %v1066 = vrot.slane %v927, 2
    %v1068 = vmul.f32 %v1050, %v1066
    %1070 = vrot.lane.b32.xlu0 %v1050, 64
    %v1071 = vpop.permute.xlu0 %1070
    %v1073 = vmul.f32 %v1050, %v1071
    %1075 = vrot.lane.b32.xlu0 %v1073, 32
    %v1076 = vpop.permute.xlu0 %1075
    %v1078 = vadd.f32 %v1068, %v1076
    %v1079 = vtanh.pop %v1064
    %1081 = vrot.lane.b32.xlu0 %v1079, 64
    %v1082 = vpop.permute.xlu0 %1081
    %v1084 = vmul.f32 %v1047, %v1082
    %v1085 = vtanh.pop %v1078
    %1087 = vrot.lane.b32.xlu0 %v1085, 64
    %v1088 = vpop.permute.xlu0 %1087
    %v1090 = vmul.f32 %v1050, %v1088
    %1092 = vrot.lane.b32.xlu0 %v1084, 32
    %v1093 = vpop.permute.xlu0 %1092
    %1095 = vst.msk [vmem:[#allocation3 + $0x8] sm:$0xc] %vm483, %v1093
    %1097 = vrot.lane.b32.xlu0 %v1090, 64
    %v1098 = vpop.permute.xlu0 %1097
    %1100 = vst.msk [vmem:[#allocation3] sm:$0x30] %vm489, %v1098
    %v1101 = vld [vmem:[#allocation2 + $0x10] sm:$0x30]
    %v1102 = vld [vmem:[#allocation2 + $0x8] sm:$0xc]
    %v1103 = vrot.slane %v1084, 2
    %1104 = vrot.lane.b32.xlu0 %v1103, 32
    %v1105 = vpop.permute.xlu0 %1104
    %v1106 = vsel %vm199, %v1105, 0
    %1108 = vmatpush.msra.mxu0 0.0
    %1109 = vmatpush.msra.mxu0 0.0
    %1110 = vmatpush.msra.mxu0 0.0
    %1111 = vmatpush.msra.mxu0 0.0
    %1112 = vmatpush.msra.mxu0 0.0
    %1113 = vmatpush.msra.mxu0 0.0
    %1114 = vmatpush.msra.mxu0 0.0
    %1115 = vmatpush.msra.mxu0 0.0
    %1116 = vmatpush.msra.mxu0 0.0
    %1117 = vmatpush.msra.mxu0 0.0
    %1118 = vmatpush.msra.mxu0 0.0
    %1119 = vmatpush.msra.mxu0 0.0
    %1120 = vmatpush.msra.mxu0 %v192
    %1121 = vmatpush.msra.mxu0 %v191
    %1122 = vmatpush.msra.mxu0 %v190
    %1123 = vmatpush.msra.mxu0 %v189
    %1124 = vmatmul.f32.gmra.mxu0 %v1106
    %v1125 = vpop.f32.mrf.mxu0
    %v1126 = vadd.f32 0.0, %v1125
    %1127 = vdwg.mxu0
    %v1129 = vrot.slane %v1126, 4
    %v1131 = vadd.f32 %v1101, %v1129
    %v1132 = vrot.slane %v1090, 4
    %1133 = vrot.lane.b32.xlu0 %v1132, 32
    %v1134 = vpop.permute.xlu0 %1133
    %v1135 = vsel %vm199, %v1134, 0
    %1137 = vmatpush.msra.mxu0 0.0
    %1138 = vmatpush.msra.mxu0 0.0
    %1139 = vmatpush.msra.mxu0 0.0
    %1140 = vmatpush.msra.mxu0 0.0
    %1141 = vmatpush.msra.mxu0 0.0
    %1142 = vmatpush.msra.mxu0 0.0
    %1143 = vmatpush.msra.mxu0 0.0
    %1144 = vmatpush.msra.mxu0 0.0
    %1145 = vmatpush.msra.mxu0 0.0
    %1146 = vmatpush.msra.mxu0 0.0
    %1147 = vmatpush.msra.mxu0 0.0
    %1148 = vmatpush.msra.mxu0 0.0
    %1149 = vmatpush.msra.mxu0 %v196
    %1150 = vmatpush.msra.mxu0 %v195
    %1151 = vmatpush.msra.mxu0 %v194
    %1152 = vmatpush.msra.mxu0 %v193
    %1153 = vmatmul.f32.gmra.mxu0 %v1135
    %v1154 = vpop.f32.mrf.mxu0
    %v1155 = vadd.f32 0.0, %v1154
    %1156 = vdwg.mxu0
    %v1158 = vrot.slane %v1155, 6
    %v1160 = vadd.f32 %v1102, %v1158
    %v1161 = vxor.u32 %v1131, 2147483648
    %v1162 = vmul.f32 %v1161, 1.442695
    %v1163 = vpow.pop %v1162
    %v1164 = vadd.f32 %v1163, 1.0
    %v1165 = vrcp.pop %v1164
    %v1166 = vmul.f32 %v1164, %v1165
    %v1167 = vsub.f32 1.0, %v1166
    %v1168 = vmul.f32 %v1165, %v1167
    %v1169 = vadd.f32 %v1165, %v1168
    %vm1170 = vweird.f32 %v1164
    %vm1171 = vweird.f32 %v1165
    %vm1172 = vmor %vm1170, %vm1171
    %v1173 = vsel %vm1172, %v1165, %v1169
    %v1174 = vand.u32 2147483647, %v1164
    %vm1175 = vcmp.eq.f32.partialorder %v1174, 8.507059e+37
    %v1176 = vand.u32 %v1164, 2147483648
    %v1177 = vor.u32 1.1754944e-38, %v1176
    %v1178 = vsel %vm1175, %v1177, %v1173
    %v1179 = vmul.f32 1.0, %v1178
    %v1180 = vxor.u32 %v1160, 2147483648
    %v1181 = vmul.f32 %v1180, 1.442695
    %v1182 = vpow.pop %v1181
    %v1183 = vadd.f32 %v1182, 1.0
    %v1184 = vrcp.pop %v1183
    %v1185 = vmul.f32 %v1183, %v1184
    %v1186 = vsub.f32 1.0, %v1185
    %v1187 = vmul.f32 %v1184, %v1186
    %v1188 = vadd.f32 %v1184, %v1187
    %vm1189 = vweird.f32 %v1183
    %vm1190 = vweird.f32 %v1184
    %vm1191 = vmor %vm1189, %vm1190
    %v1192 = vsel %vm1191, %v1184, %v1188
    %v1193 = vand.u32 2147483647, %v1183
    %vm1194 = vcmp.eq.f32.partialorder %v1193, 8.507059e+37
    %v1195 = vand.u32 %v1183, 2147483648
    %v1196 = vor.u32 1.1754944e-38, %v1195
    %v1197 = vsel %vm1194, %v1196, %v1192
    %v1198 = vmul.f32 1.0, %v1197
    %v1199 = vmul.f32 %v1179, 2.0
    %v1200 = vsub.f32 %v1199, 1.0
    %v1201 = vsel %vm119, %v1200, %v1179
    %v1202 = vmul.f32 %v1198, 2.0
    %v1203 = vsub.f32 %v1202, 1.0
    %v1204 = vsel %vm119, %v1203, %v1198
    %v1206 = vrot.slane %v1064, 6
    %v1208 = vmul.f32 %v1201, %v1206
    %1210 = vrot.lane.b32.xlu0 %v1201, 64
    %v1211 = vpop.permute.xlu0 %1210
    %v1213 = vmul.f32 %v1201, %v1211
    %1215 = vrot.lane.b32.xlu0 %v1213, 32
    %v1216 = vpop.permute.xlu0 %1215
    %v1218 = vadd.f32 %v1208, %v1216
    %v1220 = vrot.slane %v1078, 2
    %v1222 = vmul.f32 %v1204, %v1220
    %1224 = vrot.lane.b32.xlu0 %v1204, 64
    %v1225 = vpop.permute.xlu0 %1224
    %v1227 = vmul.f32 %v1204, %v1225
    %1229 = vrot.lane.b32.xlu0 %v1227, 32
    %v1230 = vpop.permute.xlu0 %1229
    %v1232 = vadd.f32 %v1222, %v1230
    %v1233 = vtanh.pop %v1218
    %1235 = vrot.lane.b32.xlu0 %v1233, 64
    %v1236 = vpop.permute.xlu0 %1235
    %v1238 = vmul.f32 %v1201, %v1236
    %v1239 = vtanh.pop %v1232
    %1241 = vrot.lane.b32.xlu0 %v1239, 64
    %v1242 = vpop.permute.xlu0 %1241
    %v1244 = vmul.f32 %v1204, %v1242
    %1246 = vrot.lane.b32.xlu0 %v1238, 32
    %v1247 = vpop.permute.xlu0 %1246
    %1249 = vst.msk [vmem:[#allocation3 + $0x8] sm:$0x30] %vm639, %v1247
    %1251 = vrot.lane.b32.xlu0 %v1244, 64
    %v1252 = vpop.permute.xlu0 %1251
    %1254 = vst.msk [vmem:[#allocation3] sm:$0xc] %vm645, %v1252
    %v1255 = vld [vmem:[#allocation2 + $0x10] sm:$0xc0]
    %v1256 = vld [vmem:[#allocation2 + $0x8] sm:$0x3]
    %v1257 = vrot.slane %v1238, 4
    %1258 = vrot.lane.b32.xlu0 %v1257, 32
    %v1259 = vpop.permute.xlu0 %1258
    %v1260 = vsel %vm199, %v1259, 0
    %1262 = vmatpush.msra.mxu0 0.0
    %1263 = vmatpush.msra.mxu0 0.0
    %1264 = vmatpush.msra.mxu0 0.0
    %1265 = vmatpush.msra.mxu0 0.0
    %1266 = vmatpush.msra.mxu0 0.0
    %1267 = vmatpush.msra.mxu0 0.0
    %1268 = vmatpush.msra.mxu0 0.0
    %1269 = vmatpush.msra.mxu0 0.0
    %1270 = vmatpush.msra.mxu0 0.0
    %1271 = vmatpush.msra.mxu0 0.0
    %1272 = vmatpush.msra.mxu0 0.0
    %1273 = vmatpush.msra.mxu0 0.0
    %1274 = vmatpush.msra.mxu0 %v192
    %1275 = vmatpush.msra.mxu0 %v191
    %1276 = vmatpush.msra.mxu0 %v190
    %1277 = vmatpush.msra.mxu0 %v189
    %1278 = vmatmul.f32.gmra.mxu0 %v1260
    %v1279 = vpop.f32.mrf.mxu0
    %v1280 = vadd.f32 0.0, %v1279
    %1281 = vdwg.mxu0
    %v1283 = vrot.slane %v1280, 2
    %v1285 = vadd.f32 %v1255, %v1283
    %v1286 = vrot.slane %v1244, 2
    %1287 = vrot.lane.b32.xlu0 %v1286, 32
    %v1288 = vpop.permute.xlu0 %1287
    %v1289 = vsel %vm199, %v1288, 0
    %1291 = vmatpush.msra.mxu0 0.0
    %1292 = vmatpush.msra.mxu0 0.0
    %1293 = vmatpush.msra.mxu0 0.0
    %1294 = vmatpush.msra.mxu0 0.0
    %1295 = vmatpush.msra.mxu0 0.0
    %1296 = vmatpush.msra.mxu0 0.0
    %1297 = vmatpush.msra.mxu0 0.0
    %1298 = vmatpush.msra.mxu0 0.0
    %1299 = vmatpush.msra.mxu0 0.0
    %1300 = vmatpush.msra.mxu0 0.0
    %1301 = vmatpush.msra.mxu0 0.0
    %1302 = vmatpush.msra.mxu0 0.0
    %1303 = vmatpush.msra.mxu0 %v196
    %1304 = vmatpush.msra.mxu0 %v195
    %1305 = vmatpush.msra.mxu0 %v194
    %1306 = vmatpush.msra.mxu0 %v193
    %1307 = vmatmul.f32.gmra.mxu0 %v1289
    %v1308 = vpop.f32.mrf.mxu0
    %v1309 = vadd.f32 0.0, %v1308
    %1310 = vdwg.mxu0
    %v1311 = vadd.f32 %v1256, %v1309
    %v1312 = vxor.u32 %v1285, 2147483648
    %v1313 = vmul.f32 %v1312, 1.442695
    %v1314 = vpow.pop %v1313
    %v1315 = vadd.f32 %v1314, 1.0
    %v1316 = vrcp.pop %v1315
    %v1317 = vmul.f32 %v1315, %v1316
    %v1318 = vsub.f32 1.0, %v1317
    %v1319 = vmul.f32 %v1316, %v1318
    %v1320 = vadd.f32 %v1316, %v1319
    %vm1321 = vweird.f32 %v1315
    %vm1322 = vweird.f32 %v1316
    %vm1323 = vmor %vm1321, %vm1322
    %v1324 = vsel %vm1323, %v1316, %v1320
    %v1325 = vand.u32 2147483647, %v1315
    %vm1326 = vcmp.eq.f32.partialorder %v1325, 8.507059e+37
    %v1327 = vand.u32 %v1315, 2147483648
    %v1328 = vor.u32 1.1754944e-38, %v1327
    %v1329 = vsel %vm1326, %v1328, %v1324
    %v1330 = vmul.f32 1.0, %v1329
    %v1331 = vxor.u32 %v1311, 2147483648
    %v1332 = vmul.f32 %v1331, 1.442695
    %v1333 = vpow.pop %v1332
    %v1334 = vadd.f32 %v1333, 1.0
    %v1335 = vrcp.pop %v1334
    %v1336 = vmul.f32 %v1334, %v1335
    %v1337 = vsub.f32 1.0, %v1336
    %v1338 = vmul.f32 %v1335, %v1337
    %v1339 = vadd.f32 %v1335, %v1338
    %vm1340 = vweird.f32 %v1334
    %vm1341 = vweird.f32 %v1335
    %vm1342 = vmor %vm1340, %vm1341
    %v1343 = vsel %vm1342, %v1335, %v1339
    %v1344 = vand.u32 2147483647, %v1334
    %vm1345 = vcmp.eq.f32.partialorder %v1344, 8.507059e+37
    %v1346 = vand.u32 %v1334, 2147483648
    %v1347 = vor.u32 1.1754944e-38, %v1346
    %v1348 = vsel %vm1345, %v1347, %v1343
    %v1349 = vmul.f32 1.0, %v1348
    %v1350 = vmul.f32 %v1330, 2.0
    %v1351 = vsub.f32 %v1350, 1.0
    %v1352 = vsel %vm119, %v1351, %v1330
    %v1353 = vmul.f32 %v1349, 2.0
    %v1354 = vsub.f32 %v1353, 1.0
    %v1355 = vsel %vm119, %v1354, %v1349
    %v1357 = vrot.slane %v1218, 6
    %v1359 = vmul.f32 %v1352, %v1357
    %1361 = vrot.lane.b32.xlu0 %v1352, 64
    %v1362 = vpop.permute.xlu0 %1361
    %v1364 = vmul.f32 %v1352, %v1362
    %1366 = vrot.lane.b32.xlu0 %v1364, 32
    %v1367 = vpop.permute.xlu0 %1366
    %v1369 = vadd.f32 %v1359, %v1367
    %v1371 = vrot.slane %v1232, 2
    %v1373 = vmul.f32 %v1355, %v1371
    %1375 = vrot.lane.b32.xlu0 %v1355, 64
    %v1376 = vpop.permute.xlu0 %1375
    %v1378 = vmul.f32 %v1355, %v1376
    %1380 = vrot.lane.b32.xlu0 %v1378, 32
    %v1381 = vpop.permute.xlu0 %1380
    %v1383 = vadd.f32 %v1373, %v1381
    %v1384 = vtanh.pop %v1369
    %1386 = vrot.lane.b32.xlu0 %v1384, 64
    %v1387 = vpop.permute.xlu0 %1386
    %v1389 = vmul.f32 %v1352, %v1387
    %v1390 = vtanh.pop %v1383
    %1392 = vrot.lane.b32.xlu0 %v1390, 64
    %v1393 = vpop.permute.xlu0 %1392
    %v1395 = vmul.f32 %v1355, %v1393
    %1397 = vrot.lane.b32.xlu0 %v1389, 32
    %v1398 = vpop.permute.xlu0 %1397
    %1400 = vst.msk [vmem:[#allocation3 + $0x8] sm:$0xc0] %vm792, %v1398
    %1402 = vrot.lane.b32.xlu0 %v1395, 64
    %v1403 = vpop.permute.xlu0 %1402
    %1405 = vst.msk [vmem:[#allocation3] sm:$0x3] %vm798, %v1403
    %v1406 = vld [vmem:[#allocation3] sm:$0xff]
    %v1407 = vld [vmem:[#allocation3 + $0x8] sm:$0xff]
    %v1408 = vld [vmem:[%s4] sm:$0xff]
    %v1409 = vld [vmem:[%s4 + $0x8] sm:$0xff]
    %v1410 = vld [vmem:[%s4 + $0x10] sm:$0xff]
    %v1411 = vld [vmem:[%s4 + $0x18] sm:$0xff]
    %v1412 = vld [vmem:[%s4 + $0x20] sm:$0xff]
    %v1413 = vld [vmem:[%s4 + $0x28] sm:$0xff]
    %v1414 = vld [vmem:[%s4 + $0x30] sm:$0xff]
    %v1415 = vld [vmem:[%s4 + $0x38] sm:$0xff]
    %v1416 = vld [vmem:[%s4 + $0x40] sm:$0xff]
    %v1417 = vld [vmem:[%s4 + $0x48] sm:$0xff]
    %v1418 = vld [vmem:[%s4 + $0x50] sm:$0xff]
    %v1419 = vld [vmem:[%s4 + $0x58] sm:$0xff]
    %v1420 = vld [vmem:[%s4 + $0x60] sm:$0xff]
    %v1421 = vld [vmem:[%s4 + $0x68] sm:$0xff]
    %v1422 = vld [vmem:[%s4 + $0x70] sm:$0xff]
    %v1423 = vld [vmem:[%s4 + $0x78] sm:$0xff]
    %v1424 = vld [vmem:[%s6] sm:$0x3]
    %v1426 = vperm.slane %v1424, 0
    %v1427 = vperm.slane %v1424, 1
    %vm1430 = vcmask 523264
    %v1432 = vsel %vm1430, %v1406, 0
    %v1435 = vsel %vm1430, %v1407, 0
    %1437 = vmatpush.msra.mxu0 0.0
    %1438 = vmatpush.msra.mxu0 0.0
    %1439 = vmatpush.msra.mxu0 0.0
    %1440 = vmatpush.msra.mxu0 0.0
    %1441 = vmatpush.msra.mxu0 0.0
    %1442 = vmatpush.msra.mxu0 0.0
    %1443 = vmatpush.msra.mxu0 0.0
    %1444 = vmatpush.msra.mxu0 0.0
    %1445 = vmatpush.msra.mxu0 %v1422
    %1446 = vmatpush.msra.mxu0 %v1420
    %1447 = vmatpush.msra.mxu0 %v1418
    %1448 = vmatpush.msra.mxu0 %v1416
    %1449 = vmatpush.msra.mxu0 %v1414
    %1450 = vmatpush.msra.mxu0 %v1412
    %1451 = vmatpush.msra.mxu0 %v1410
    %1452 = vmatpush.msra.mxu0 %v1408
    %1453 = vmatmul.f32.gmra.mxu0 %v1432
    %v1454 = vpop.f32.mrf.mxu0
    %v1455 = vadd.f32 %v1426, %v1454
    %1456 = vmatmul.f32.gmra.mxu0 %v1435
    %v1457 = vpop.f32.mrf.mxu0
    %v1458 = vadd.f32 %v1426, %v1457
    %1459 = vdwg.mxu0
    %1460 = vmatpush.msra.mxu0 0.0
    %1461 = vmatpush.msra.mxu0 0.0
    %1462 = vmatpush.msra.mxu0 0.0
    %1463 = vmatpush.msra.mxu0 0.0
    %1464 = vmatpush.msra.mxu0 0.0
    %1465 = vmatpush.msra.mxu0 0.0
    %1466 = vmatpush.msra.mxu0 0.0
    %1467 = vmatpush.msra.mxu0 0.0
    %1468 = vmatpush.msra.mxu0 %v1423
    %1469 = vmatpush.msra.mxu0 %v1421
    %1470 = vmatpush.msra.mxu0 %v1419
    %1471 = vmatpush.msra.mxu0 %v1417
    %1472 = vmatpush.msra.mxu0 %v1415
    %1473 = vmatpush.msra.mxu0 %v1413
    %1474 = vmatpush.msra.mxu0 %v1411
    %1475 = vmatpush.msra.mxu0 %v1409
    %1476 = vmatmul.f32.gmra.mxu0 %v1432
    %v1477 = vpop.f32.mrf.mxu0
    %v1478 = vadd.f32 %v1427, %v1477
    %1479 = vmatmul.f32.gmra.mxu0 %v1435
    %v1480 = vpop.f32.mrf.mxu0
    %v1481 = vadd.f32 %v1427, %v1480
    %1482 = vdwg.mxu0
    %1483 = vst [vmem:[#allocation2] sm:$0xff] %v1455
    %1484 = vst [vmem:[#allocation2 + $0x8] sm:$0xff] %v1478
    %1485 = vst [vmem:[#allocation2 + $0x10] sm:$0xff] %v1458
    %1486 = vst [vmem:[#allocation2 + $0x18] sm:$0xff] %v1481
    %v1487 = vld [vmem:[#allocation10] sm:$0xff]
    %v1488 = vld [vmem:[#allocation10 + $0x8] sm:$0xff]
    %v1489 = vld [vmem:[#allocation10 + $0x10] sm:$0xff]
    %v1490 = vld [vmem:[#allocation10 + $0x18] sm:$0xff]
    %v1491 = vld [vmem:[#allocation10 + $0x20] sm:$0xff]
    %v1492 = vld [vmem:[#allocation10 + $0x28] sm:$0xff]
    %v1493 = vld [vmem:[#allocation10 + $0x30] sm:$0xff]
    %v1494 = vld [vmem:[#allocation10 + $0x38] sm:$0xff]
    %v1495 = vld [vmem:[#allocation2] sm:$0x3]
    %v1496 = vld [vmem:[#allocation2 + $0x18] sm:$0xc0]
    %1497 = vmatpush.msra.mxu0 0.0
    %1498 = vmatpush.msra.mxu0 0.0
    %1499 = vmatpush.msra.mxu0 0.0
    %1500 = vmatpush.msra.mxu0 0.0
    %1501 = vmatpush.msra.mxu0 0.0
    %1502 = vmatpush.msra.mxu0 0.0
    %1503 = vmatpush.msra.mxu0 0.0
    %1504 = vmatpush.msra.mxu0 0.0
    %1505 = vmatpush.msra.mxu0 0.0
    %1506 = vmatpush.msra.mxu0 0.0
    %1507 = vmatpush.msra.mxu0 0.0
    %1508 = vmatpush.msra.mxu0 0.0
    %1509 = vmatpush.msra.mxu0 %v1490
    %1510 = vmatpush.msra.mxu0 %v1489
    %1511 = vmatpush.msra.mxu0 %v1488
    %1512 = vmatpush.msra.mxu0 %v1487
    %1513 = vmatmul.f32.gmra.mxu0 %v201
    %v1514 = vpop.f32.mrf.mxu0
    %v1515 = vadd.f32 0.0, %v1514
    %1516 = vdwg.mxu0
    %v1517 = vadd.f32 %v1495, %v1515
    %1518 = vmatpush.msra.mxu0 0.0
    %1519 = vmatpush.msra.mxu0 0.0
    %1520 = vmatpush.msra.mxu0 0.0
    %1521 = vmatpush.msra.mxu0 0.0
    %1522 = vmatpush.msra.mxu0 0.0
    %1523 = vmatpush.msra.mxu0 0.0
    %1524 = vmatpush.msra.mxu0 0.0
    %1525 = vmatpush.msra.mxu0 0.0
    %1526 = vmatpush.msra.mxu0 0.0
    %1527 = vmatpush.msra.mxu0 0.0
    %1528 = vmatpush.msra.mxu0 0.0
    %1529 = vmatpush.msra.mxu0 0.0
    %1530 = vmatpush.msra.mxu0 %v1494
    %1531 = vmatpush.msra.mxu0 %v1493
    %1532 = vmatpush.msra.mxu0 %v1492
    %1533 = vmatpush.msra.mxu0 %v1491
    %1534 = vmatmul.f32.gmra.mxu0 %v201
    %v1535 = vpop.f32.mrf.mxu0
    %v1536 = vadd.f32 0.0, %v1535
    %1537 = vdwg.mxu0
    %v1539 = vrot.slane %v1536, 2
    %v1541 = vadd.f32 %v1496, %v1539
    %v1542 = vxor.u32 %v1517, 2147483648
    %v1543 = vmul.f32 %v1542, 1.442695
    %v1544 = vpow.pop %v1543
    %v1545 = vadd.f32 %v1544, 1.0
    %v1546 = vrcp.pop %v1545
    %v1547 = vmul.f32 %v1545, %v1546
    %v1548 = vsub.f32 1.0, %v1547
    %v1549 = vmul.f32 %v1546, %v1548
    %v1550 = vadd.f32 %v1546, %v1549
    %vm1551 = vweird.f32 %v1545
    %vm1552 = vweird.f32 %v1546
    %vm1553 = vmor %vm1551, %vm1552
    %v1554 = vsel %vm1553, %v1546, %v1550
    %v1555 = vand.u32 2147483647, %v1545
    %vm1556 = vcmp.eq.f32.partialorder %v1555, 8.507059e+37
    %v1557 = vand.u32 %v1545, 2147483648
    %v1558 = vor.u32 1.1754944e-38, %v1557
    %v1559 = vsel %vm1556, %v1558, %v1554
    %v1560 = vmul.f32 1.0, %v1559
    %v1561 = vxor.u32 %v1541, 2147483648
    %v1562 = vmul.f32 %v1561, 1.442695
    %v1563 = vpow.pop %v1562
    %v1564 = vadd.f32 %v1563, 1.0
    %v1565 = vrcp.pop %v1564
    %v1566 = vmul.f32 %v1564, %v1565
    %v1567 = vsub.f32 1.0, %v1566
    %v1568 = vmul.f32 %v1565, %v1567
    %v1569 = vadd.f32 %v1565, %v1568
    %vm1570 = vweird.f32 %v1564
    %vm1571 = vweird.f32 %v1565
    %vm1572 = vmor %vm1570, %vm1571
    %v1573 = vsel %vm1572, %v1565, %v1569
    %v1574 = vand.u32 2147483647, %v1564
    %vm1575 = vcmp.eq.f32.partialorder %v1574, 8.507059e+37
    %v1576 = vand.u32 %v1564, 2147483648
    %v1577 = vor.u32 1.1754944e-38, %v1576
    %v1578 = vsel %vm1575, %v1577, %v1573
    %v1579 = vmul.f32 1.0, %v1578
    %v1580 = vmul.f32 %v1560, 2.0
    %v1581 = vsub.f32 %v1580, 1.0
    %v1582 = vsel %vm119, %v1581, %v1560
    %v1583 = vmul.f32 %v1579, 2.0
    %v1584 = vsub.f32 %v1583, 1.0
    %v1585 = vsel %vm119, %v1584, %v1579
    %v1586 = vmul.f32 %v1582, 0.0
    %1588 = vrot.lane.b32.xlu0 %v1582, 64
    %v1589 = vpop.permute.xlu0 %1588
    %v1591 = vmul.f32 %v1582, %v1589
    %1593 = vrot.lane.b32.xlu0 %v1591, 32
    %v1594 = vpop.permute.xlu0 %1593
    %v1596 = vadd.f32 %v1586, %v1594
    %v1597 = vmul.f32 %v1585, 0.0
    %1599 = vrot.lane.b32.xlu0 %v1585, 64
    %v1600 = vpop.permute.xlu0 %1599
    %v1602 = vmul.f32 %v1585, %v1600
    %1604 = vrot.lane.b32.xlu0 %v1602, 32
    %v1605 = vpop.permute.xlu0 %1604
    %v1607 = vadd.f32 %v1597, %v1605
    %v1608 = vtanh.pop %v1596
    %1610 = vrot.lane.b32.xlu0 %v1608, 64
    %v1611 = vpop.permute.xlu0 %1610
    %v1613 = vmul.f32 %v1582, %v1611
    %v1614 = vtanh.pop %v1607
    %1616 = vrot.lane.b32.xlu0 %v1614, 64
    %v1617 = vpop.permute.xlu0 %1616
    %v1619 = vmul.f32 %v1585, %v1617
    %1621 = vrot.lane.b32.xlu0 %v1613, 32
    %v1622 = vpop.permute.xlu0 %1621
    %1624 = vst.msk [vmem:[#allocation4] sm:$0x3] %vm330, %v1622
    %1626 = vrot.lane.b32.xlu0 %v1619, 64
    %v1627 = vpop.permute.xlu0 %1626
    %1629 = vst.msk [vmem:[#allocation4 + $0x8] sm:$0xc0] %vm336, %v1627
    %v1630 = vld [vmem:[#allocation2] sm:$0xc]
    %v1631 = vld [vmem:[#allocation2 + $0x18] sm:$0x30]
    %v1632 = vsel %vm199, %v1622, 0
    %1634 = vmatpush.msra.mxu0 0.0
    %1635 = vmatpush.msra.mxu0 0.0
    %1636 = vmatpush.msra.mxu0 0.0
    %1637 = vmatpush.msra.mxu0 0.0
    %1638 = vmatpush.msra.mxu0 0.0
    %1639 = vmatpush.msra.mxu0 0.0
    %1640 = vmatpush.msra.mxu0 0.0
    %1641 = vmatpush.msra.mxu0 0.0
    %1642 = vmatpush.msra.mxu0 0.0
    %1643 = vmatpush.msra.mxu0 0.0
    %1644 = vmatpush.msra.mxu0 0.0
    %1645 = vmatpush.msra.mxu0 0.0
    %1646 = vmatpush.msra.mxu0 %v1490
    %1647 = vmatpush.msra.mxu0 %v1489
    %1648 = vmatpush.msra.mxu0 %v1488
    %1649 = vmatpush.msra.mxu0 %v1487
    %1650 = vmatmul.f32.gmra.mxu0 %v1632
    %v1651 = vpop.f32.mrf.mxu0
    %v1652 = vadd.f32 0.0, %v1651
    %1653 = vdwg.mxu0
    %v1655 = vrot.slane %v1652, 6
    %v1657 = vadd.f32 %v1630, %v1655
    %v1658 = vrot.slane %v1619, 6
    %1659 = vrot.lane.b32.xlu0 %v1658, 32
    %v1660 = vpop.permute.xlu0 %1659
    %v1661 = vsel %vm199, %v1660, 0
    %1663 = vmatpush.msra.mxu0 0.0
    %1664 = vmatpush.msra.mxu0 0.0
    %1665 = vmatpush.msra.mxu0 0.0
    %1666 = vmatpush.msra.mxu0 0.0
    %1667 = vmatpush.msra.mxu0 0.0
    %1668 = vmatpush.msra.mxu0 0.0
    %1669 = vmatpush.msra.mxu0 0.0
    %1670 = vmatpush.msra.mxu0 0.0
    %1671 = vmatpush.msra.mxu0 0.0
    %1672 = vmatpush.msra.mxu0 0.0
    %1673 = vmatpush.msra.mxu0 0.0
    %1674 = vmatpush.msra.mxu0 0.0
    %1675 = vmatpush.msra.mxu0 %v1494
    %1676 = vmatpush.msra.mxu0 %v1493
    %1677 = vmatpush.msra.mxu0 %v1492
    %1678 = vmatpush.msra.mxu0 %v1491
    %1679 = vmatmul.f32.gmra.mxu0 %v1661
    %v1680 = vpop.f32.mrf.mxu0
    %v1681 = vadd.f32 0.0, %v1680
    %1682 = vdwg.mxu0
    %v1684 = vrot.slane %v1681, 4
    %v1686 = vadd.f32 %v1631, %v1684
    %v1687 = vxor.u32 %v1657, 2147483648
    %v1688 = vmul.f32 %v1687, 1.442695
    %v1689 = vpow.pop %v1688
    %v1690 = vadd.f32 %v1689, 1.0
    %v1691 = vrcp.pop %v1690
    %v1692 = vmul.f32 %v1690, %v1691
    %v1693 = vsub.f32 1.0, %v1692
    %v1694 = vmul.f32 %v1691, %v1693
    %v1695 = vadd.f32 %v1691, %v1694
    %vm1696 = vweird.f32 %v1690
    %vm1697 = vweird.f32 %v1691
    %vm1698 = vmor %vm1696, %vm1697
    %v1699 = vsel %vm1698, %v1691, %v1695
    %v1700 = vand.u32 2147483647, %v1690
    %vm1701 = vcmp.eq.f32.partialorder %v1700, 8.507059e+37
    %v1702 = vand.u32 %v1690, 2147483648
    %v1703 = vor.u32 1.1754944e-38, %v1702
    %v1704 = vsel %vm1701, %v1703, %v1699
    %v1705 = vmul.f32 1.0, %v1704
    %v1706 = vxor.u32 %v1686, 2147483648
    %v1707 = vmul.f32 %v1706, 1.442695
    %v1708 = vpow.pop %v1707
    %v1709 = vadd.f32 %v1708, 1.0
    %v1710 = vrcp.pop %v1709
    %v1711 = vmul.f32 %v1709, %v1710
    %v1712 = vsub.f32 1.0, %v1711
    %v1713 = vmul.f32 %v1710, %v1712
    %v1714 = vadd.f32 %v1710, %v1713
    %vm1715 = vweird.f32 %v1709
    %vm1716 = vweird.f32 %v1710
    %vm1717 = vmor %vm1715, %vm1716
    %v1718 = vsel %vm1717, %v1710, %v1714
    %v1719 = vand.u32 2147483647, %v1709
    %vm1720 = vcmp.eq.f32.partialorder %v1719, 8.507059e+37
    %v1721 = vand.u32 %v1709, 2147483648
    %v1722 = vor.u32 1.1754944e-38, %v1721
    %v1723 = vsel %vm1720, %v1722, %v1718
    %v1724 = vmul.f32 1.0, %v1723
    %v1725 = vmul.f32 %v1705, 2.0
    %v1726 = vsub.f32 %v1725, 1.0
    %v1727 = vsel %vm119, %v1726, %v1705
    %v1728 = vmul.f32 %v1724, 2.0
    %v1729 = vsub.f32 %v1728, 1.0
    %v1730 = vsel %vm119, %v1729, %v1724
    %v1732 = vrot.slane %v1596, 6
    %v1734 = vmul.f32 %v1727, %v1732
    %1736 = vrot.lane.b32.xlu0 %v1727, 64
    %v1737 = vpop.permute.xlu0 %1736
    %v1739 = vmul.f32 %v1727, %v1737
    %1741 = vrot.lane.b32.xlu0 %v1739, 32
    %v1742 = vpop.permute.xlu0 %1741
    %v1744 = vadd.f32 %v1734, %v1742
    %v1746 = vrot.slane %v1607, 2
    %v1748 = vmul.f32 %v1730, %v1746
    %1750 = vrot.lane.b32.xlu0 %v1730, 64
    %v1751 = vpop.permute.xlu0 %1750
    %v1753 = vmul.f32 %v1730, %v1751
    %1755 = vrot.lane.b32.xlu0 %v1753, 32
    %v1756 = vpop.permute.xlu0 %1755
    %v1758 = vadd.f32 %v1748, %v1756
    %v1759 = vtanh.pop %v1744
    %1761 = vrot.lane.b32.xlu0 %v1759, 64
    %v1762 = vpop.permute.xlu0 %1761
    %v1764 = vmul.f32 %v1727, %v1762
    %v1765 = vtanh.pop %v1758
    %1767 = vrot.lane.b32.xlu0 %v1765, 64
    %v1768 = vpop.permute.xlu0 %1767
    %v1770 = vmul.f32 %v1730, %v1768
    %1772 = vrot.lane.b32.xlu0 %v1764, 32
    %v1773 = vpop.permute.xlu0 %1772
    %1775 = vst.msk [vmem:[#allocation4] sm:$0xc] %vm483, %v1773
    %1777 = vrot.lane.b32.xlu0 %v1770, 64
    %v1778 = vpop.permute.xlu0 %1777
    %1780 = vst.msk [vmem:[#allocation4 + $0x8] sm:$0x30] %vm489, %v1778
    %v1781 = vld [vmem:[#allocation2] sm:$0x30]
    %v1782 = vld [vmem:[#allocation2 + $0x18] sm:$0xc]
    %v1783 = vrot.slane %v1764, 2
    %1784 = vrot.lane.b32.xlu0 %v1783, 32
    %v1785 = vpop.permute.xlu0 %1784
    %v1786 = vsel %vm199, %v1785, 0
    %1788 = vmatpush.msra.mxu0 0.0
    %1789 = vmatpush.msra.mxu0 0.0
    %1790 = vmatpush.msra.mxu0 0.0
    %1791 = vmatpush.msra.mxu0 0.0
    %1792 = vmatpush.msra.mxu0 0.0
    %1793 = vmatpush.msra.mxu0 0.0
    %1794 = vmatpush.msra.mxu0 0.0
    %1795 = vmatpush.msra.mxu0 0.0
    %1796 = vmatpush.msra.mxu0 0.0
    %1797 = vmatpush.msra.mxu0 0.0
    %1798 = vmatpush.msra.mxu0 0.0
    %1799 = vmatpush.msra.mxu0 0.0
    %1800 = vmatpush.msra.mxu0 %v1490
    %1801 = vmatpush.msra.mxu0 %v1489
    %1802 = vmatpush.msra.mxu0 %v1488
    %1803 = vmatpush.msra.mxu0 %v1487
    %1804 = vmatmul.f32.gmra.mxu0 %v1786
    %v1805 = vpop.f32.mrf.mxu0
    %v1806 = vadd.f32 0.0, %v1805
    %1807 = vdwg.mxu0
    %v1809 = vrot.slane %v1806, 4
    %v1811 = vadd.f32 %v1781, %v1809
    %v1812 = vrot.slane %v1770, 4
    %1813 = vrot.lane.b32.xlu0 %v1812, 32
    %v1814 = vpop.permute.xlu0 %1813
    %v1815 = vsel %vm199, %v1814, 0
    %1817 = vmatpush.msra.mxu0 0.0
    %1818 = vmatpush.msra.mxu0 0.0
    %1819 = vmatpush.msra.mxu0 0.0
    %1820 = vmatpush.msra.mxu0 0.0
    %1821 = vmatpush.msra.mxu0 0.0
    %1822 = vmatpush.msra.mxu0 0.0
    %1823 = vmatpush.msra.mxu0 0.0
    %1824 = vmatpush.msra.mxu0 0.0
    %1825 = vmatpush.msra.mxu0 0.0
    %1826 = vmatpush.msra.mxu0 0.0
    %1827 = vmatpush.msra.mxu0 0.0
    %1828 = vmatpush.msra.mxu0 0.0
    %1829 = vmatpush.msra.mxu0 %v1494
    %1830 = vmatpush.msra.mxu0 %v1493
    %1831 = vmatpush.msra.mxu0 %v1492
    %1832 = vmatpush.msra.mxu0 %v1491
    %1833 = vmatmul.f32.gmra.mxu0 %v1815
    %v1834 = vpop.f32.mrf.mxu0
    %v1835 = vadd.f32 0.0, %v1834
    %1836 = vdwg.mxu0
    %v1838 = vrot.slane %v1835, 6
    %v1840 = vadd.f32 %v1782, %v1838
    %v1841 = vxor.u32 %v1811, 2147483648
    %v1842 = vmul.f32 %v1841, 1.442695
    %v1843 = vpow.pop %v1842
    %v1844 = vadd.f32 %v1843, 1.0
    %v1845 = vrcp.pop %v1844
    %v1846 = vmul.f32 %v1844, %v1845
    %v1847 = vsub.f32 1.0, %v1846
    %v1848 = vmul.f32 %v1845, %v1847
    %v1849 = vadd.f32 %v1845, %v1848
    %vm1850 = vweird.f32 %v1844
    %vm1851 = vweird.f32 %v1845
    %vm1852 = vmor %vm1850, %vm1851
    %v1853 = vsel %vm1852, %v1845, %v1849
    %v1854 = vand.u32 2147483647, %v1844
    %vm1855 = vcmp.eq.f32.partialorder %v1854, 8.507059e+37
    %v1856 = vand.u32 %v1844, 2147483648
    %v1857 = vor.u32 1.1754944e-38, %v1856
    %v1858 = vsel %vm1855, %v1857, %v1853
    %v1859 = vmul.f32 1.0, %v1858
    %v1860 = vxor.u32 %v1840, 2147483648
    %v1861 = vmul.f32 %v1860, 1.442695
    %v1862 = vpow.pop %v1861
    %v1863 = vadd.f32 %v1862, 1.0
    %v1864 = vrcp.pop %v1863
    %v1865 = vmul.f32 %v1863, %v1864
    %v1866 = vsub.f32 1.0, %v1865
    %v1867 = vmul.f32 %v1864, %v1866
    %v1868 = vadd.f32 %v1864, %v1867
    %vm1869 = vweird.f32 %v1863
    %vm1870 = vweird.f32 %v1864
    %vm1871 = vmor %vm1869, %vm1870
    %v1872 = vsel %vm1871, %v1864, %v1868
    %v1873 = vand.u32 2147483647, %v1863
    %vm1874 = vcmp.eq.f32.partialorder %v1873, 8.507059e+37
    %v1875 = vand.u32 %v1863, 2147483648
    %v1876 = vor.u32 1.1754944e-38, %v1875
    %v1877 = vsel %vm1874, %v1876, %v1872
    %v1878 = vmul.f32 1.0, %v1877
    %v1879 = vmul.f32 %v1859, 2.0
    %v1880 = vsub.f32 %v1879, 1.0
    %v1881 = vsel %vm119, %v1880, %v1859
    %v1882 = vmul.f32 %v1878, 2.0
    %v1883 = vsub.f32 %v1882, 1.0
    %v1884 = vsel %vm119, %v1883, %v1878
    %v1886 = vrot.slane %v1744, 6
    %v1888 = vmul.f32 %v1881, %v1886
    %1890 = vrot.lane.b32.xlu0 %v1881, 64
    %v1891 = vpop.permute.xlu0 %1890
    %v1893 = vmul.f32 %v1881, %v1891
    %1895 = vrot.lane.b32.xlu0 %v1893, 32
    %v1896 = vpop.permute.xlu0 %1895
    %v1898 = vadd.f32 %v1888, %v1896
    %v1900 = vrot.slane %v1758, 2
    %v1902 = vmul.f32 %v1884, %v1900
    %1904 = vrot.lane.b32.xlu0 %v1884, 64
    %v1905 = vpop.permute.xlu0 %1904
    %v1907 = vmul.f32 %v1884, %v1905
    %1909 = vrot.lane.b32.xlu0 %v1907, 32
    %v1910 = vpop.permute.xlu0 %1909
    %v1912 = vadd.f32 %v1902, %v1910
    %v1913 = vtanh.pop %v1898
    %1915 = vrot.lane.b32.xlu0 %v1913, 64
    %v1916 = vpop.permute.xlu0 %1915
    %v1918 = vmul.f32 %v1881, %v1916
    %v1919 = vtanh.pop %v1912
    %1921 = vrot.lane.b32.xlu0 %v1919, 64
    %v1922 = vpop.permute.xlu0 %1921
    %v1924 = vmul.f32 %v1884, %v1922
    %1926 = vrot.lane.b32.xlu0 %v1918, 32
    %v1927 = vpop.permute.xlu0 %1926
    %1929 = vst.msk [vmem:[#allocation4] sm:$0x30] %vm639, %v1927
    %1931 = vrot.lane.b32.xlu0 %v1924, 64
    %v1932 = vpop.permute.xlu0 %1931
    %1934 = vst.msk [vmem:[#allocation4 + $0x8] sm:$0xc] %vm645, %v1932
    %v1935 = vld [vmem:[#allocation2] sm:$0xc0]
    %v1936 = vld [vmem:[#allocation2 + $0x18] sm:$0x3]
    %v1937 = vrot.slane %v1918, 4
    %1938 = vrot.lane.b32.xlu0 %v1937, 32
    %v1939 = vpop.permute.xlu0 %1938
    %v1940 = vsel %vm199, %v1939, 0
    %1942 = vmatpush.msra.mxu0 0.0
    %1943 = vmatpush.msra.mxu0 0.0
    %1944 = vmatpush.msra.mxu0 0.0
    %1945 = vmatpush.msra.mxu0 0.0
    %1946 = vmatpush.msra.mxu0 0.0
    %1947 = vmatpush.msra.mxu0 0.0
    %1948 = vmatpush.msra.mxu0 0.0
    %1949 = vmatpush.msra.mxu0 0.0
    %1950 = vmatpush.msra.mxu0 0.0
    %1951 = vmatpush.msra.mxu0 0.0
    %1952 = vmatpush.msra.mxu0 0.0
    %1953 = vmatpush.msra.mxu0 0.0
    %1954 = vmatpush.msra.mxu0 %v1490
    %1955 = vmatpush.msra.mxu0 %v1489
    %1956 = vmatpush.msra.mxu0 %v1488
    %1957 = vmatpush.msra.mxu0 %v1487
    %1958 = vmatmul.f32.gmra.mxu0 %v1940
    %v1959 = vpop.f32.mrf.mxu0
    %v1960 = vadd.f32 0.0, %v1959
    %1961 = vdwg.mxu0
    %v1963 = vrot.slane %v1960, 2
    %v1965 = vadd.f32 %v1935, %v1963
    %v1966 = vrot.slane %v1924, 2
    %1967 = vrot.lane.b32.xlu0 %v1966, 32
    %v1968 = vpop.permute.xlu0 %1967
    %v1969 = vsel %vm199, %v1968, 0
    %1971 = vmatpush.msra.mxu0 0.0
    %1972 = vmatpush.msra.mxu0 0.0
    %1973 = vmatpush.msra.mxu0 0.0
    %1974 = vmatpush.msra.mxu0 0.0
    %1975 = vmatpush.msra.mxu0 0.0
    %1976 = vmatpush.msra.mxu0 0.0
    %1977 = vmatpush.msra.mxu0 0.0
    %1978 = vmatpush.msra.mxu0 0.0
    %1979 = vmatpush.msra.mxu0 0.0
    %1980 = vmatpush.msra.mxu0 0.0
    %1981 = vmatpush.msra.mxu0 0.0
    %1982 = vmatpush.msra.mxu0 0.0
    %1983 = vmatpush.msra.mxu0 %v1494
    %1984 = vmatpush.msra.mxu0 %v1493
    %1985 = vmatpush.msra.mxu0 %v1492
    %1986 = vmatpush.msra.mxu0 %v1491
    %1987 = vmatmul.f32.gmra.mxu0 %v1969
    %v1988 = vpop.f32.mrf.mxu0
    %v1989 = vadd.f32 0.0, %v1988
    %1990 = vdwg.mxu0
    %v1991 = vadd.f32 %v1936, %v1989
    %v1992 = vxor.u32 %v1965, 2147483648
    %v1993 = vmul.f32 %v1992, 1.442695
    %v1994 = vpow.pop %v1993
    %v1995 = vadd.f32 %v1994, 1.0
    %v1996 = vrcp.pop %v1995
    %v1997 = vmul.f32 %v1995, %v1996
    %v1998 = vsub.f32 1.0, %v1997
    %v1999 = vmul.f32 %v1996, %v1998
    %v2000 = vadd.f32 %v1996, %v1999
    %vm2001 = vweird.f32 %v1995
    %vm2002 = vweird.f32 %v1996
    %vm2003 = vmor %vm2001, %vm2002
    %v2004 = vsel %vm2003, %v1996, %v2000
    %v2005 = vand.u32 2147483647, %v1995
    %vm2006 = vcmp.eq.f32.partialorder %v2005, 8.507059e+37
    %v2007 = vand.u32 %v1995, 2147483648
    %v2008 = vor.u32 1.1754944e-38, %v2007
    %v2009 = vsel %vm2006, %v2008, %v2004
    %v2010 = vmul.f32 1.0, %v2009
    %v2011 = vxor.u32 %v1991, 2147483648
    %v2012 = vmul.f32 %v2011, 1.442695
    %v2013 = vpow.pop %v2012
    %v2014 = vadd.f32 %v2013, 1.0
    %v2015 = vrcp.pop %v2014
    %v2016 = vmul.f32 %v2014, %v2015
    %v2017 = vsub.f32 1.0, %v2016
    %v2018 = vmul.f32 %v2015, %v2017
    %v2019 = vadd.f32 %v2015, %v2018
    %vm2020 = vweird.f32 %v2014
    %vm2021 = vweird.f32 %v2015
    %vm2022 = vmor %vm2020, %vm2021
    %v2023 = vsel %vm2022, %v2015, %v2019
    %v2024 = vand.u32 2147483647, %v2014
    %vm2025 = vcmp.eq.f32.partialorder %v2024, 8.507059e+37
    %v2026 = vand.u32 %v2014, 2147483648
    %v2027 = vor.u32 1.1754944e-38, %v2026
    %v2028 = vsel %vm2025, %v2027, %v2023
    %v2029 = vmul.f32 1.0, %v2028
    %v2030 = vmul.f32 %v2010, 2.0
    %v2031 = vsub.f32 %v2030, 1.0
    %v2032 = vsel %vm119, %v2031, %v2010
    %v2033 = vmul.f32 %v2029, 2.0
    %v2034 = vsub.f32 %v2033, 1.0
    %v2035 = vsel %vm119, %v2034, %v2029
    %v2037 = vrot.slane %v1898, 6
    %v2039 = vmul.f32 %v2032, %v2037
    %2041 = vrot.lane.b32.xlu0 %v2032, 64
    %v2042 = vpop.permute.xlu0 %2041
    %v2044 = vmul.f32 %v2032, %v2042
    %2046 = vrot.lane.b32.xlu0 %v2044, 32
    %v2047 = vpop.permute.xlu0 %2046
    %v2049 = vadd.f32 %v2039, %v2047
    %v2051 = vrot.slane %v1912, 2
    %v2053 = vmul.f32 %v2035, %v2051
    %2055 = vrot.lane.b32.xlu0 %v2035, 64
    %v2056 = vpop.permute.xlu0 %2055
    %v2058 = vmul.f32 %v2035, %v2056
    %2060 = vrot.lane.b32.xlu0 %v2058, 32
    %v2061 = vpop.permute.xlu0 %2060
    %v2063 = vadd.f32 %v2053, %v2061
    %v2064 = vtanh.pop %v2049
    %2066 = vrot.lane.b32.xlu0 %v2064, 64
    %v2067 = vpop.permute.xlu0 %2066
    %v2069 = vmul.f32 %v2032, %v2067
    %v2070 = vtanh.pop %v2063
    %2072 = vrot.lane.b32.xlu0 %v2070, 64
    %v2073 = vpop.permute.xlu0 %2072
    %v2075 = vmul.f32 %v2035, %v2073
    %2077 = vrot.lane.b32.xlu0 %v2069, 32
    %v2078 = vpop.permute.xlu0 %2077
    %2080 = vst.msk [vmem:[#allocation4] sm:$0xc0] %vm792, %v2078
    %2082 = vrot.lane.b32.xlu0 %v2075, 64
    %v2083 = vpop.permute.xlu0 %2082
    %2085 = vst.msk [vmem:[#allocation4 + $0x8] sm:$0x3] %vm798, %v2083
    %v2086 = vld [vmem:[#allocation2 + $0x10] sm:$0x3]
    %v2087 = vld [vmem:[#allocation2 + $0x8] sm:$0xc0]
    %v2088 = vrot.slane %v2069, 6
    %2089 = vrot.lane.b32.xlu0 %v2088, 32
    %v2090 = vpop.permute.xlu0 %2089
    %v2091 = vsel %vm199, %v2090, 0
    %2093 = vmatpush.msra.mxu0 0.0
    %2094 = vmatpush.msra.mxu0 0.0
    %2095 = vmatpush.msra.mxu0 0.0
    %2096 = vmatpush.msra.mxu0 0.0
    %2097 = vmatpush.msra.mxu0 0.0
    %2098 = vmatpush.msra.mxu0 0.0
    %2099 = vmatpush.msra.mxu0 0.0
    %2100 = vmatpush.msra.mxu0 0.0
    %2101 = vmatpush.msra.mxu0 0.0
    %2102 = vmatpush.msra.mxu0 0.0
    %2103 = vmatpush.msra.mxu0 0.0
    %2104 = vmatpush.msra.mxu0 0.0
    %2105 = vmatpush.msra.mxu0 %v1490
    %2106 = vmatpush.msra.mxu0 %v1489
    %2107 = vmatpush.msra.mxu0 %v1488
    %2108 = vmatpush.msra.mxu0 %v1487
    %2109 = vmatmul.f32.gmra.mxu0 %v2091
    %v2110 = vpop.f32.mrf.mxu0
    %v2111 = vadd.f32 0.0, %v2110
    %2112 = vdwg.mxu0
    %v2113 = vadd.f32 %v2086, %v2111
    %2114 = vrot.lane.b32.xlu0 %v2075, 32
    %v2115 = vpop.permute.xlu0 %2114
    %v2116 = vsel %vm199, %v2115, 0
    %2118 = vmatpush.msra.mxu0 0.0
    %2119 = vmatpush.msra.mxu0 0.0
    %2120 = vmatpush.msra.mxu0 0.0
    %2121 = vmatpush.msra.mxu0 0.0
    %2122 = vmatpush.msra.mxu0 0.0
    %2123 = vmatpush.msra.mxu0 0.0
    %2124 = vmatpush.msra.mxu0 0.0
    %2125 = vmatpush.msra.mxu0 0.0
    %2126 = vmatpush.msra.mxu0 0.0
    %2127 = vmatpush.msra.mxu0 0.0
    %2128 = vmatpush.msra.mxu0 0.0
    %2129 = vmatpush.msra.mxu0 0.0
    %2130 = vmatpush.msra.mxu0 %v1494
    %2131 = vmatpush.msra.mxu0 %v1493
    %2132 = vmatpush.msra.mxu0 %v1492
    %2133 = vmatpush.msra.mxu0 %v1491
    %2134 = vmatmul.f32.gmra.mxu0 %v2116
    %v2135 = vpop.f32.mrf.mxu0
    %v2136 = vadd.f32 0.0, %v2135
    %2137 = vdwg.mxu0
    %v2139 = vrot.slane %v2136, 2
    %v2141 = vadd.f32 %v2087, %v2139
    %v2142 = vxor.u32 %v2113, 2147483648
    %v2143 = vmul.f32 %v2142, 1.442695
    %v2144 = vpow.pop %v2143
    %v2145 = vadd.f32 %v2144, 1.0
    %v2146 = vrcp.pop %v2145
    %v2147 = vmul.f32 %v2145, %v2146
    %v2148 = vsub.f32 1.0, %v2147
    %v2149 = vmul.f32 %v2146, %v2148
    %v2150 = vadd.f32 %v2146, %v2149
    %vm2151 = vweird.f32 %v2145
    %vm2152 = vweird.f32 %v2146
    %vm2153 = vmor %vm2151, %vm2152
    %v2154 = vsel %vm2153, %v2146, %v2150
    %v2155 = vand.u32 2147483647, %v2145
    %vm2156 = vcmp.eq.f32.partialorder %v2155, 8.507059e+37
    %v2157 = vand.u32 %v2145, 2147483648
    %v2158 = vor.u32 1.1754944e-38, %v2157
    %v2159 = vsel %vm2156, %v2158, %v2154
    %v2160 = vmul.f32 1.0, %v2159
    %v2161 = vxor.u32 %v2141, 2147483648
    %v2162 = vmul.f32 %v2161, 1.442695
    %v2163 = vpow.pop %v2162
    %v2164 = vadd.f32 %v2163, 1.0
    %v2165 = vrcp.pop %v2164
    %v2166 = vmul.f32 %v2164, %v2165
    %v2167 = vsub.f32 1.0, %v2166
    %v2168 = vmul.f32 %v2165, %v2167
    %v2169 = vadd.f32 %v2165, %v2168
    %vm2170 = vweird.f32 %v2164
    %vm2171 = vweird.f32 %v2165
    %vm2172 = vmor %vm2170, %vm2171
    %v2173 = vsel %vm2172, %v2165, %v2169
    %v2174 = vand.u32 2147483647, %v2164
    %vm2175 = vcmp.eq.f32.partialorder %v2174, 8.507059e+37
    %v2176 = vand.u32 %v2164, 2147483648
    %v2177 = vor.u32 1.1754944e-38, %v2176
    %v2178 = vsel %vm2175, %v2177, %v2173
    %v2179 = vmul.f32 1.0, %v2178
    %v2180 = vmul.f32 %v2160, 2.0
    %v2181 = vsub.f32 %v2180, 1.0
    %v2182 = vsel %vm119, %v2181, %v2160
    %v2183 = vmul.f32 %v2179, 2.0
    %v2184 = vsub.f32 %v2183, 1.0
    %v2185 = vsel %vm119, %v2184, %v2179
    %v2187 = vrot.slane %v2049, 6
    %v2189 = vmul.f32 %v2182, %v2187
    %2191 = vrot.lane.b32.xlu0 %v2182, 64
    %v2192 = vpop.permute.xlu0 %2191
    %v2194 = vmul.f32 %v2182, %v2192
    %2196 = vrot.lane.b32.xlu0 %v2194, 32
    %v2197 = vpop.permute.xlu0 %2196
    %v2199 = vadd.f32 %v2189, %v2197
    %v2201 = vrot.slane %v2063, 2
    %v2203 = vmul.f32 %v2185, %v2201
    %2205 = vrot.lane.b32.xlu0 %v2185, 64
    %v2206 = vpop.permute.xlu0 %2205
    %v2208 = vmul.f32 %v2185, %v2206
    %2210 = vrot.lane.b32.xlu0 %v2208, 32
    %v2211 = vpop.permute.xlu0 %2210
    %v2213 = vadd.f32 %v2203, %v2211
    %v2214 = vtanh.pop %v2199
    %2216 = vrot.lane.b32.xlu0 %v2214, 64
    %v2217 = vpop.permute.xlu0 %2216
    %v2219 = vmul.f32 %v2182, %v2217
    %v2220 = vtanh.pop %v2213
    %2222 = vrot.lane.b32.xlu0 %v2220, 64
    %v2223 = vpop.permute.xlu0 %2222
    %v2225 = vmul.f32 %v2185, %v2223
    %2227 = vrot.lane.b32.xlu0 %v2219, 32
    %v2228 = vpop.permute.xlu0 %2227
    %2230 = vst.msk [vmem:[#allocation4 + $0x8] sm:$0x3] %vm330, %v2228
    %2232 = vrot.lane.b32.xlu0 %v2225, 64
    %v2233 = vpop.permute.xlu0 %2232
    %2235 = vst.msk [vmem:[#allocation4] sm:$0xc0] %vm336, %v2233
    %v2236 = vld [vmem:[#allocation2 + $0x10] sm:$0xc]
    %v2237 = vld [vmem:[#allocation2 + $0x8] sm:$0x30]
    %v2238 = vsel %vm199, %v2228, 0
    %2240 = vmatpush.msra.mxu0 0.0
    %2241 = vmatpush.msra.mxu0 0.0
    %2242 = vmatpush.msra.mxu0 0.0
    %2243 = vmatpush.msra.mxu0 0.0
    %2244 = vmatpush.msra.mxu0 0.0
    %2245 = vmatpush.msra.mxu0 0.0
    %2246 = vmatpush.msra.mxu0 0.0
    %2247 = vmatpush.msra.mxu0 0.0
    %2248 = vmatpush.msra.mxu0 0.0
    %2249 = vmatpush.msra.mxu0 0.0
    %2250 = vmatpush.msra.mxu0 0.0
    %2251 = vmatpush.msra.mxu0 0.0
    %2252 = vmatpush.msra.mxu0 %v1490
    %2253 = vmatpush.msra.mxu0 %v1489
    %2254 = vmatpush.msra.mxu0 %v1488
    %2255 = vmatpush.msra.mxu0 %v1487
    %2256 = vmatmul.f32.gmra.mxu0 %v2238
    %v2257 = vpop.f32.mrf.mxu0
    %v2258 = vadd.f32 0.0, %v2257
    %2259 = vdwg.mxu0
    %v2261 = vrot.slane %v2258, 6
    %v2263 = vadd.f32 %v2236, %v2261
    %v2264 = vrot.slane %v2225, 6
    %2265 = vrot.lane.b32.xlu0 %v2264, 32
    %v2266 = vpop.permute.xlu0 %2265
    %v2267 = vsel %vm199, %v2266, 0
    %2269 = vmatpush.msra.mxu0 0.0
    %2270 = vmatpush.msra.mxu0 0.0
    %2271 = vmatpush.msra.mxu0 0.0
    %2272 = vmatpush.msra.mxu0 0.0
    %2273 = vmatpush.msra.mxu0 0.0
    %2274 = vmatpush.msra.mxu0 0.0
    %2275 = vmatpush.msra.mxu0 0.0
    %2276 = vmatpush.msra.mxu0 0.0
    %2277 = vmatpush.msra.mxu0 0.0
    %2278 = vmatpush.msra.mxu0 0.0
    %2279 = vmatpush.msra.mxu0 0.0
    %2280 = vmatpush.msra.mxu0 0.0
    %2281 = vmatpush.msra.mxu0 %v1494
    %2282 = vmatpush.msra.mxu0 %v1493
    %2283 = vmatpush.msra.mxu0 %v1492
    %2284 = vmatpush.msra.mxu0 %v1491
    %2285 = vmatmul.f32.gmra.mxu0 %v2267
    %v2286 = vpop.f32.mrf.mxu0
    %v2287 = vadd.f32 0.0, %v2286
    %2288 = vdwg.mxu0
    %v2290 = vrot.slane %v2287, 4
    %v2292 = vadd.f32 %v2237, %v2290
    %v2293 = vxor.u32 %v2263, 2147483648
    %v2294 = vmul.f32 %v2293, 1.442695
    %v2295 = vpow.pop %v2294
    %v2296 = vadd.f32 %v2295, 1.0
    %v2297 = vrcp.pop %v2296
    %v2298 = vmul.f32 %v2296, %v2297
    %v2299 = vsub.f32 1.0, %v2298
    %v2300 = vmul.f32 %v2297, %v2299
    %v2301 = vadd.f32 %v2297, %v2300
    %vm2302 = vweird.f32 %v2296
    %vm2303 = vweird.f32 %v2297
    %vm2304 = vmor %vm2302, %vm2303
    %v2305 = vsel %vm2304, %v2297, %v2301
    %v2306 = vand.u32 2147483647, %v2296
    %vm2307 = vcmp.eq.f32.partialorder %v2306, 8.507059e+37
    %v2308 = vand.u32 %v2296, 2147483648
    %v2309 = vor.u32 1.1754944e-38, %v2308
    %v2310 = vsel %vm2307, %v2309, %v2305
    %v2311 = vmul.f32 1.0, %v2310
    %v2312 = vxor.u32 %v2292, 2147483648
    %v2313 = vmul.f32 %v2312, 1.442695
    %v2314 = vpow.pop %v2313
    %v2315 = vadd.f32 %v2314, 1.0
    %v2316 = vrcp.pop %v2315
    %v2317 = vmul.f32 %v2315, %v2316
    %v2318 = vsub.f32 1.0, %v2317
    %v2319 = vmul.f32 %v2316, %v2318
    %v2320 = vadd.f32 %v2316, %v2319
    %vm2321 = vweird.f32 %v2315
    %vm2322 = vweird.f32 %v2316
    %vm2323 = vmor %vm2321, %vm2322
    %v2324 = vsel %vm2323, %v2316, %v2320
    %v2325 = vand.u32 2147483647, %v2315
    %vm2326 = vcmp.eq.f32.partialorder %v2325, 8.507059e+37
    %v2327 = vand.u32 %v2315, 2147483648
    %v2328 = vor.u32 1.1754944e-38, %v2327
    %v2329 = vsel %vm2326, %v2328, %v2324
    %v2330 = vmul.f32 1.0, %v2329
    %v2331 = vmul.f32 %v2311, 2.0
    %v2332 = vsub.f32 %v2331, 1.0
    %v2333 = vsel %vm119, %v2332, %v2311
    %v2334 = vmul.f32 %v2330, 2.0
    %v2335 = vsub.f32 %v2334, 1.0
    %v2336 = vsel %vm119, %v2335, %v2330
    %v2338 = vrot.slane %v2199, 6
    %v2340 = vmul.f32 %v2333, %v2338
    %2342 = vrot.lane.b32.xlu0 %v2333, 64
    %v2343 = vpop.permute.xlu0 %2342
    %v2345 = vmul.f32 %v2333, %v2343
    %2347 = vrot.lane.b32.xlu0 %v2345, 32
    %v2348 = vpop.permute.xlu0 %2347
    %v2350 = vadd.f32 %v2340, %v2348
    %v2352 = vrot.slane %v2213, 2
    %v2354 = vmul.f32 %v2336, %v2352
    %2356 = vrot.lane.b32.xlu0 %v2336, 64
    %v2357 = vpop.permute.xlu0 %2356
    %v2359 = vmul.f32 %v2336, %v2357
    %2361 = vrot.lane.b32.xlu0 %v2359, 32
    %v2362 = vpop.permute.xlu0 %2361
    %v2364 = vadd.f32 %v2354, %v2362
    %v2365 = vtanh.pop %v2350
    %2367 = vrot.lane.b32.xlu0 %v2365, 64
    %v2368 = vpop.permute.xlu0 %2367
    %v2370 = vmul.f32 %v2333, %v2368
    %v2371 = vtanh.pop %v2364
    %2373 = vrot.lane.b32.xlu0 %v2371, 64
    %v2374 = vpop.permute.xlu0 %2373
    %v2376 = vmul.f32 %v2336, %v2374
    %2378 = vrot.lane.b32.xlu0 %v2370, 32
    %v2379 = vpop.permute.xlu0 %2378
    %2381 = vst.msk [vmem:[#allocation4 + $0x8] sm:$0xc] %vm483, %v2379
    %2383 = vrot.lane.b32.xlu0 %v2376, 64
    %v2384 = vpop.permute.xlu0 %2383
    %2386 = vst.msk [vmem:[#allocation4] sm:$0x30] %vm489, %v2384
    %v2387 = vld [vmem:[#allocation2 + $0x10] sm:$0x30]
    %v2388 = vld [vmem:[#allocation2 + $0x8] sm:$0xc]
    %v2389 = vrot.slane %v2370, 2
    %2390 = vrot.lane.b32.xlu0 %v2389, 32
    %v2391 = vpop.permute.xlu0 %2390
    %v2392 = vsel %vm199, %v2391, 0
    %2394 = vmatpush.msra.mxu0 0.0
    %2395 = vmatpush.msra.mxu0 0.0
    %2396 = vmatpush.msra.mxu0 0.0
    %2397 = vmatpush.msra.mxu0 0.0
    %2398 = vmatpush.msra.mxu0 0.0
    %2399 = vmatpush.msra.mxu0 0.0
    %2400 = vmatpush.msra.mxu0 0.0
    %2401 = vmatpush.msra.mxu0 0.0
    %2402 = vmatpush.msra.mxu0 0.0
    %2403 = vmatpush.msra.mxu0 0.0
    %2404 = vmatpush.msra.mxu0 0.0
    %2405 = vmatpush.msra.mxu0 0.0
    %2406 = vmatpush.msra.mxu0 %v1490
    %2407 = vmatpush.msra.mxu0 %v1489
    %2408 = vmatpush.msra.mxu0 %v1488
    %2409 = vmatpush.msra.mxu0 %v1487
    %2410 = vmatmul.f32.gmra.mxu0 %v2392
    %v2411 = vpop.f32.mrf.mxu0
    %v2412 = vadd.f32 0.0, %v2411
    %2413 = vdwg.mxu0
    %v2415 = vrot.slane %v2412, 4
    %v2417 = vadd.f32 %v2387, %v2415
    %v2418 = vrot.slane %v2376, 4
    %2419 = vrot.lane.b32.xlu0 %v2418, 32
    %v2420 = vpop.permute.xlu0 %2419
    %v2421 = vsel %vm199, %v2420, 0
    %2423 = vmatpush.msra.mxu0 0.0
    %2424 = vmatpush.msra.mxu0 0.0
    %2425 = vmatpush.msra.mxu0 0.0
    %2426 = vmatpush.msra.mxu0 0.0
    %2427 = vmatpush.msra.mxu0 0.0
    %2428 = vmatpush.msra.mxu0 0.0
    %2429 = vmatpush.msra.mxu0 0.0
    %2430 = vmatpush.msra.mxu0 0.0
    %2431 = vmatpush.msra.mxu0 0.0
    %2432 = vmatpush.msra.mxu0 0.0
    %2433 = vmatpush.msra.mxu0 0.0
    %2434 = vmatpush.msra.mxu0 0.0
    %2435 = vmatpush.msra.mxu0 %v1494
    %2436 = vmatpush.msra.mxu0 %v1493
    %2437 = vmatpush.msra.mxu0 %v1492
    %2438 = vmatpush.msra.mxu0 %v1491
    %2439 = vmatmul.f32.gmra.mxu0 %v2421
    %v2440 = vpop.f32.mrf.mxu0
    %v2441 = vadd.f32 0.0, %v2440
    %2442 = vdwg.mxu0
    %v2444 = vrot.slane %v2441, 6
    %v2446 = vadd.f32 %v2388, %v2444
    %v2447 = vxor.u32 %v2417, 2147483648
    %v2448 = vmul.f32 %v2447, 1.442695
    %v2449 = vpow.pop %v2448
    %v2450 = vadd.f32 %v2449, 1.0
    %v2451 = vrcp.pop %v2450
    %v2452 = vmul.f32 %v2450, %v2451
    %v2453 = vsub.f32 1.0, %v2452
    %v2454 = vmul.f32 %v2451, %v2453
    %v2455 = vadd.f32 %v2451, %v2454
    %vm2456 = vweird.f32 %v2450
    %vm2457 = vweird.f32 %v2451
    %vm2458 = vmor %vm2456, %vm2457
    %v2459 = vsel %vm2458, %v2451, %v2455
    %v2460 = vand.u32 2147483647, %v2450
    %vm2461 = vcmp.eq.f32.partialorder %v2460, 8.507059e+37
    %v2462 = vand.u32 %v2450, 2147483648
    %v2463 = vor.u32 1.1754944e-38, %v2462
    %v2464 = vsel %vm2461, %v2463, %v2459
    %v2465 = vmul.f32 1.0, %v2464
    %v2466 = vxor.u32 %v2446, 2147483648
    %v2467 = vmul.f32 %v2466, 1.442695
    %v2468 = vpow.pop %v2467
    %v2469 = vadd.f32 %v2468, 1.0
    %v2470 = vrcp.pop %v2469
    %v2471 = vmul.f32 %v2469, %v2470
    %v2472 = vsub.f32 1.0, %v2471
    %v2473 = vmul.f32 %v2470, %v2472
    %v2474 = vadd.f32 %v2470, %v2473
    %vm2475 = vweird.f32 %v2469
    %vm2476 = vweird.f32 %v2470
    %vm2477 = vmor %vm2475, %vm2476
    %v2478 = vsel %vm2477, %v2470, %v2474
    %v2479 = vand.u32 2147483647, %v2469
    %vm2480 = vcmp.eq.f32.partialorder %v2479, 8.507059e+37
    %v2481 = vand.u32 %v2469, 2147483648
    %v2482 = vor.u32 1.1754944e-38, %v2481
    %v2483 = vsel %vm2480, %v2482, %v2478
    %v2484 = vmul.f32 1.0, %v2483
    %v2485 = vmul.f32 %v2465, 2.0
    %v2486 = vsub.f32 %v2485, 1.0
    %v2487 = vsel %vm119, %v2486, %v2465
    %v2488 = vmul.f32 %v2484, 2.0
    %v2489 = vsub.f32 %v2488, 1.0
    %v2490 = vsel %vm119, %v2489, %v2484
    %v2492 = vrot.slane %v2350, 6
    %v2494 = vmul.f32 %v2487, %v2492
    %2496 = vrot.lane.b32.xlu0 %v2487, 64
    %v2497 = vpop.permute.xlu0 %2496
    %v2499 = vmul.f32 %v2487, %v2497
    %2501 = vrot.lane.b32.xlu0 %v2499, 32
    %v2502 = vpop.permute.xlu0 %2501
    %v2504 = vadd.f32 %v2494, %v2502
    %v2506 = vrot.slane %v2364, 2
    %v2508 = vmul.f32 %v2490, %v2506
    %2510 = vrot.lane.b32.xlu0 %v2490, 64
    %v2511 = vpop.permute.xlu0 %2510
    %v2513 = vmul.f32 %v2490, %v2511
    %2515 = vrot.lane.b32.xlu0 %v2513, 32
    %v2516 = vpop.permute.xlu0 %2515
    %v2518 = vadd.f32 %v2508, %v2516
    %v2519 = vtanh.pop %v2504
    %2521 = vrot.lane.b32.xlu0 %v2519, 64
    %v2522 = vpop.permute.xlu0 %2521
    %v2524 = vmul.f32 %v2487, %v2522
    %v2525 = vtanh.pop %v2518
    %2527 = vrot.lane.b32.xlu0 %v2525, 64
    %v2528 = vpop.permute.xlu0 %2527
    %v2530 = vmul.f32 %v2490, %v2528
    %2532 = vrot.lane.b32.xlu0 %v2524, 32
    %v2533 = vpop.permute.xlu0 %2532
    %2535 = vst.msk [vmem:[#allocation4 + $0x8] sm:$0x30] %vm639, %v2533
    %2537 = vrot.lane.b32.xlu0 %v2530, 64
    %v2538 = vpop.permute.xlu0 %2537
    %2540 = vst.msk [vmem:[#allocation4] sm:$0xc] %vm645, %v2538
    %v2541 = vld [vmem:[#allocation2 + $0x10] sm:$0xc0]
    %v2542 = vld [vmem:[#allocation2 + $0x8] sm:$0x3]
    %v2543 = vrot.slane %v2524, 4
    %2544 = vrot.lane.b32.xlu0 %v2543, 32
    %v2545 = vpop.permute.xlu0 %2544
    %v2546 = vsel %vm199, %v2545, 0
    %2548 = vmatpush.msra.mxu0 0.0
    %2549 = vmatpush.msra.mxu0 0.0
    %2550 = vmatpush.msra.mxu0 0.0
    %2551 = vmatpush.msra.mxu0 0.0
    %2552 = vmatpush.msra.mxu0 0.0
    %2553 = vmatpush.msra.mxu0 0.0
    %2554 = vmatpush.msra.mxu0 0.0
    %2555 = vmatpush.msra.mxu0 0.0
    %2556 = vmatpush.msra.mxu0 0.0
    %2557 = vmatpush.msra.mxu0 0.0
    %2558 = vmatpush.msra.mxu0 0.0
    %2559 = vmatpush.msra.mxu0 0.0
    %2560 = vmatpush.msra.mxu0 %v1490
    %2561 = vmatpush.msra.mxu0 %v1489
    %2562 = vmatpush.msra.mxu0 %v1488
    %2563 = vmatpush.msra.mxu0 %v1487
    %2564 = vmatmul.f32.gmra.mxu0 %v2546
    %v2565 = vpop.f32.mrf.mxu0
    %v2566 = vadd.f32 0.0, %v2565
    %2567 = vdwg.mxu0
    %v2569 = vrot.slane %v2566, 2
    %v2571 = vadd.f32 %v2541, %v2569
    %v2572 = vrot.slane %v2530, 2
    %2573 = vrot.lane.b32.xlu0 %v2572, 32
    %v2574 = vpop.permute.xlu0 %2573
    %v2575 = vsel %vm199, %v2574, 0
    %2577 = vmatpush.msra.mxu0 0.0
    %2578 = vmatpush.msra.mxu0 0.0
    %2579 = vmatpush.msra.mxu0 0.0
    %2580 = vmatpush.msra.mxu0 0.0
    %2581 = vmatpush.msra.mxu0 0.0
    %2582 = vmatpush.msra.mxu0 0.0
    %2583 = vmatpush.msra.mxu0 0.0
    %2584 = vmatpush.msra.mxu0 0.0
    %2585 = vmatpush.msra.mxu0 0.0
    %2586 = vmatpush.msra.mxu0 0.0
    %2587 = vmatpush.msra.mxu0 0.0
    %2588 = vmatpush.msra.mxu0 0.0
    %2589 = vmatpush.msra.mxu0 %v1494
    %2590 = vmatpush.msra.mxu0 %v1493
    %2591 = vmatpush.msra.mxu0 %v1492
    %2592 = vmatpush.msra.mxu0 %v1491
    %2593 = vmatmul.f32.gmra.mxu0 %v2575
    %v2594 = vpop.f32.mrf.mxu0
    %v2595 = vadd.f32 0.0, %v2594
    %2596 = vdwg.mxu0
    %v2597 = vadd.f32 %v2542, %v2595
    %v2598 = vxor.u32 %v2571, 2147483648
    %v2599 = vmul.f32 %v2598, 1.442695
    %v2600 = vpow.pop %v2599
    %v2601 = vadd.f32 %v2600, 1.0
    %v2602 = vrcp.pop %v2601
    %v2603 = vmul.f32 %v2601, %v2602
    %v2604 = vsub.f32 1.0, %v2603
    %v2605 = vmul.f32 %v2602, %v2604
    %v2606 = vadd.f32 %v2602, %v2605
    %vm2607 = vweird.f32 %v2601
    %vm2608 = vweird.f32 %v2602
    %vm2609 = vmor %vm2607, %vm2608
    %v2610 = vsel %vm2609, %v2602, %v2606
    %v2611 = vand.u32 2147483647, %v2601
    %vm2612 = vcmp.eq.f32.partialorder %v2611, 8.507059e+37
    %v2613 = vand.u32 %v2601, 2147483648
    %v2614 = vor.u32 1.1754944e-38, %v2613
    %v2615 = vsel %vm2612, %v2614, %v2610
    %v2616 = vmul.f32 1.0, %v2615
    %v2617 = vxor.u32 %v2597, 2147483648
    %v2618 = vmul.f32 %v2617, 1.442695
    %v2619 = vpow.pop %v2618
    %v2620 = vadd.f32 %v2619, 1.0
    %v2621 = vrcp.pop %v2620
    %v2622 = vmul.f32 %v2620, %v2621
    %v2623 = vsub.f32 1.0, %v2622
    %v2624 = vmul.f32 %v2621, %v2623
    %v2625 = vadd.f32 %v2621, %v2624
    %vm2626 = vweird.f32 %v2620
    %vm2627 = vweird.f32 %v2621
    %vm2628 = vmor %vm2626, %vm2627
    %v2629 = vsel %vm2628, %v2621, %v2625
    %v2630 = vand.u32 2147483647, %v2620
    %vm2631 = vcmp.eq.f32.partialorder %v2630, 8.507059e+37
    %v2632 = vand.u32 %v2620, 2147483648
    %v2633 = vor.u32 1.1754944e-38, %v2632
    %v2634 = vsel %vm2631, %v2633, %v2629
    %v2635 = vmul.f32 1.0, %v2634
    %v2636 = vmul.f32 %v2616, 2.0
    %v2637 = vsub.f32 %v2636, 1.0
    %v2638 = vsel %vm119, %v2637, %v2616
    %v2639 = vmul.f32 %v2635, 2.0
    %v2640 = vsub.f32 %v2639, 1.0
    %v2641 = vsel %vm119, %v2640, %v2635
    %v2643 = vrot.slane %v2504, 6
    %v2645 = vmul.f32 %v2638, %v2643
    %2647 = vrot.lane.b32.xlu0 %v2638, 64
    %v2648 = vpop.permute.xlu0 %2647
    %v2650 = vmul.f32 %v2638, %v2648
    %2652 = vrot.lane.b32.xlu0 %v2650, 32
    %v2653 = vpop.permute.xlu0 %2652
    %v2655 = vadd.f32 %v2645, %v2653
    %v2657 = vrot.slane %v2518, 2
    %v2659 = vmul.f32 %v2641, %v2657
    %2661 = vrot.lane.b32.xlu0 %v2641, 64
    %v2662 = vpop.permute.xlu0 %2661
    %v2664 = vmul.f32 %v2641, %v2662
    %2666 = vrot.lane.b32.xlu0 %v2664, 32
    %v2667 = vpop.permute.xlu0 %2666
    %v2669 = vadd.f32 %v2659, %v2667
    %v2670 = vtanh.pop %v2655
    %2672 = vrot.lane.b32.xlu0 %v2670, 64
    %v2673 = vpop.permute.xlu0 %2672
    %v2675 = vmul.f32 %v2638, %v2673
    %v2676 = vtanh.pop %v2669
    %2678 = vrot.lane.b32.xlu0 %v2676, 64
    %v2679 = vpop.permute.xlu0 %2678
    %v2681 = vmul.f32 %v2641, %v2679
    %2683 = vrot.lane.b32.xlu0 %v2675, 32
    %v2684 = vpop.permute.xlu0 %2683
    %2686 = vst.msk [vmem:[#allocation4 + $0x8] sm:$0xc0] %vm792, %v2684
    %2688 = vrot.lane.b32.xlu0 %v2681, 64
    %v2689 = vpop.permute.xlu0 %2688
    %2691 = vst.msk [vmem:[#allocation4] sm:$0x3] %vm798, %v2689
    %v2692 = vld [vmem:[#allocation4] sm:$0xff]
    %v2693 = vld [vmem:[#allocation4 + $0x8] sm:$0xff]
    %v2694 = vsel %vm1430, %v2692, 0.0
    %2695 = vadd.xlane.f32.xlu0 %v2694
    %v2696 = vpop.xlane.xlu0 %2695
    %v2697 = vsel %vm1430, %v2693, 0.0
    %2698 = vadd.xlane.f32.xlu0 %v2697
    %v2699 = vpop.xlane.xlu0 %2698
    %v2700 = vmul.f32 %v2696, 0.015625
    %v2701 = vmul.f32 %v2699, 0.015625
    %v2702 = vsub.f32 %v2692, %v2700
    %v2703 = vsub.f32 %v2693, %v2701
    %v2704 = vmul.f32 %v2702, %v2702
    %v2705 = vmul.f32 %v2703, %v2703
    %v2706 = vsel %vm1430, %v2704, 0.0
    %2707 = vadd.xlane.f32.xlu0 %v2706
    %v2708 = vpop.xlane.xlu0 %2707
    %v2709 = vsel %vm1430, %v2705, 0.0
    %2710 = vadd.xlane.f32.xlu0 %v2709
    %v2711 = vpop.xlane.xlu0 %2710
    %v2712 = vmul.f32 %v2708, 0.015625
    %v2713 = vmul.f32 %v2711, 0.015625
    %v2714 = vadd.f32 %v2712, 1e-05
    %v2715 = vadd.f32 %v2713, 1e-05
    %v2716 = vrsqrt.pop %v2714
    %v2717 = vmul.f32 %v2716, %v2714
    %v2718 = vmul.f32 %v2717, %v2716
    %v2719 = vmul.f32 0.5, %v2718
    %v2720 = vsub.f32 1.5, %v2719
    %v2721 = vmul.f32 %v2716, %v2720
    %vm2722 = vweird.f32 %v2714
    %vm2723 = vweird.f32 %v2716
    %vm2724 = vmor %vm2722, %vm2723
    %v2725 = vsel %vm2724, %v2716, %v2721
    %v2726 = vrsqrt.pop %v2715
    %v2727 = vmul.f32 %v2726, %v2715
    %v2728 = vmul.f32 %v2727, %v2726
    %v2729 = vmul.f32 0.5, %v2728
    %v2730 = vsub.f32 1.5, %v2729
    %v2731 = vmul.f32 %v2726, %v2730
    %vm2732 = vweird.f32 %v2715
    %vm2733 = vweird.f32 %v2726
    %vm2734 = vmor %vm2732, %vm2733
    %v2735 = vsel %vm2734, %v2726, %v2731
    %v2736 = vmul.f32 %v2702, %v2725
    %v2737 = vmul.f32 %v2703, %v2735
    %v2738 = vld [vmem:[%s7] sm:$0x1]
    %v2740 = vperm.slane %v2738, 0
    %v2742 = vmul.f32 %v2736, %v2740
    %v2743 = vmul.f32 %v2737, %v2740
    %v2744 = vld [vmem:[%s8] sm:$0x1]
    %v2746 = vperm.slane %v2744, 0
    %v2748 = vadd.f32 %v2742, %v2746
    %v2749 = vadd.f32 %v2743, %v2746
    %v2750 = vld [vmem:[#allocation11] sm:$0xff]
    %v2751 = vld [vmem:[#allocation11 + $0x8] sm:$0xff]
    %v2752 = vld [vmem:[#allocation11 + $0x10] sm:$0xff]
    %v2753 = vld [vmem:[#allocation11 + $0x18] sm:$0xff]
    %v2754 = vld [vmem:[#allocation11 + $0x20] sm:$0xff]
    %v2755 = vld [vmem:[#allocation11 + $0x28] sm:$0xff]
    %v2756 = vld [vmem:[#allocation11 + $0x30] sm:$0xff]
    %v2757 = vld [vmem:[#allocation11 + $0x38] sm:$0xff]
    %v2758 = vld [vmem:[%s10] sm:$0x1]
    %v2760 = vperm.slane %v2758, 0
    %v2763 = vsel %vm1430, %v2748, 0
    %v2766 = vsel %vm1430, %v2749, 0
    %2768 = vmatpush.msra.mxu0 0.0
    %2769 = vmatpush.msra.mxu0 0.0
    %2770 = vmatpush.msra.mxu0 0.0
    %2771 = vmatpush.msra.mxu0 0.0
    %2772 = vmatpush.msra.mxu0 0.0
    %2773 = vmatpush.msra.mxu0 0.0
    %2774 = vmatpush.msra.mxu0 0.0
    %2775 = vmatpush.msra.mxu0 0.0
    %2776 = vmatpush.msra.mxu0 %v2757
    %2777 = vmatpush.msra.mxu0 %v2756
    %2778 = vmatpush.msra.mxu0 %v2755
    %2779 = vmatpush.msra.mxu0 %v2754
    %2780 = vmatpush.msra.mxu0 %v2753
    %2781 = vmatpush.msra.mxu0 %v2752
    %2782 = vmatpush.msra.mxu0 %v2751
    %2783 = vmatpush.msra.mxu0 %v2750
    %2784 = vmatmul.f32.gmra.mxu0 %v2763
    %v2785 = vpop.f32.mrf.mxu0
    %v2786 = vadd.f32 %v2760, %v2785
    %2787 = vmatmul.f32.gmra.mxu0 %v2766
    %v2788 = vpop.f32.mrf.mxu0
    %v2789 = vadd.f32 %v2760, %v2788
    %2790 = vdwg.mxu0
    %v2791 = vmul.f32 %v2786, 0.5
    %v2792 = vmul.f32 %v2789, 0.5
    %v2793 = vmul.f32 %v2786, 0.70710677
    %v2794 = vmul.f32 %v2789, 0.70710677
    %vm2795 = vcmp.ge.f32.partialorder %v2793, 0.0
    %vm2796 = vcmp.ge.f32.partialorder %v2794, 0.0
    %v2797 = vsel %vm2795, 1.0, -1.0
    %v2798 = vsel %vm2796, 1.0, -1.0
    %v2799 = vand.u32 2147483647, %v2793
    %v2800 = vand.u32 2147483647, %v2794
    %v2801 = vmul.f32 %v2799, 0.3275911
    %v2802 = vmul.f32 %v2800, 0.3275911
    %v2803 = vadd.f32 %v2801, 1.0
    %v2804 = vadd.f32 %v2802, 1.0
    %v2805 = vrcp.pop %v2803
    %v2806 = vmul.f32 %v2803, %v2805
    %v2807 = vsub.f32 1.0, %v2806
    %v2808 = vmul.f32 %v2805, %v2807
    %v2809 = vadd.f32 %v2805, %v2808
    %vm2810 = vweird.f32 %v2803
    %vm2811 = vweird.f32 %v2805
    %vm2812 = vmor %vm2810, %vm2811
    %v2813 = vsel %vm2812, %v2805, %v2809
    %v2814 = vand.u32 2147483647, %v2803
    %vm2815 = vcmp.eq.f32.partialorder %v2814, 8.507059e+37
    %v2816 = vand.u32 %v2803, 2147483648
    %v2817 = vor.u32 1.1754944e-38, %v2816
    %v2818 = vsel %vm2815, %v2817, %v2813
    %v2819 = vmul.f32 1.0, %v2818
    %v2820 = vrcp.pop %v2804
    %v2821 = vmul.f32 %v2804, %v2820
    %v2822 = vsub.f32 1.0, %v2821
    %v2823 = vmul.f32 %v2820, %v2822
    %v2824 = vadd.f32 %v2820, %v2823
    %vm2825 = vweird.f32 %v2804
    %vm2826 = vweird.f32 %v2820
    %vm2827 = vmor %vm2825, %vm2826
    %v2828 = vsel %vm2827, %v2820, %v2824
    %v2829 = vand.u32 2147483647, %v2804
    %vm2830 = vcmp.eq.f32.partialorder %v2829, 8.507059e+37
    %v2831 = vand.u32 %v2804, 2147483648
    %v2832 = vor.u32 1.1754944e-38, %v2831
    %v2833 = vsel %vm2830, %v2832, %v2828
    %v2834 = vmul.f32 1.0, %v2833
    %v2835 = vmul.f32 %v2819, 1.0614054
    %v2836 = vmul.f32 %v2834, 1.0614054
    %v2837 = vadd.f32 %v2835, -1.4531521
    %v2838 = vadd.f32 %v2836, -1.4531521
    %v2839 = vmul.f32 %v2819, %v2837
    %v2840 = vmul.f32 %v2834, %v2838
    %v2841 = vadd.f32 %v2839, 1.4214138
    %v2842 = vadd.f32 %v2840, 1.4214138
    %v2843 = vmul.f32 %v2819, %v2841
    %v2844 = vmul.f32 %v2834, %v2842
    %v2845 = vadd.f32 %v2843, -0.28449672
    %v2846 = vadd.f32 %v2844, -0.28449672
    %v2847 = vmul.f32 %v2819, %v2845
    %v2848 = vmul.f32 %v2834, %v2846
    %v2849 = vadd.f32 %v2847, 0.2548296
    %v2850 = vadd.f32 %v2848, 0.2548296
    %v2851 = vmul.f32 %v2819, %v2849
    %v2852 = vmul.f32 %v2834, %v2850
    %v2853 = vsub.f32 0.0, %v2799
    %v2854 = vsub.f32 0.0, %v2800
    %v2855 = vmul.f32 %v2853, %v2799
    %v2856 = vmul.f32 %v2854, %v2800
    %v2857 = vmul.f32 %v2855, 1.442695
    %v2858 = vpow.pop %v2857
    %v2859 = vmul.f32 %v2856, 1.442695
    %v2860 = vpow.pop %v2859
    %v2861 = vmul.f32 %v2851, %v2858
    %v2862 = vmul.f32 %v2852, %v2860
    %v2863 = vsub.f32 1.0, %v2861
    %v2864 = vsub.f32 1.0, %v2862
    %v2865 = vmul.f32 %v2797, %v2863
    %v2866 = vmul.f32 %v2798, %v2864
    %v2867 = vadd.f32 %v2865, 1.0
    %v2868 = vadd.f32 %v2866, 1.0
    %v2869 = vmul.f32 %v2791, %v2867
    %v2870 = vmul.f32 %v2792, %v2868
    %v2871 = vld [vmem:[%s11] sm:$0xff]
    %v2872 = vld [vmem:[%s11 + $0x8] sm:$0xff]
    %v2873 = vld [vmem:[%s11 + $0x10] sm:$0xff]
    %v2874 = vld [vmem:[%s11 + $0x18] sm:$0xff]
    %v2875 = vld [vmem:[%s11 + $0x20] sm:$0xff]
    %v2876 = vld [vmem:[%s11 + $0x28] sm:$0xff]
    %v2877 = vld [vmem:[%s11 + $0x30] sm:$0xff]
    %v2878 = vld [vmem:[%s11 + $0x38] sm:$0xff]
    %v2879 = vld [vmem:[%s11 + $0x40] sm:$0xff]
    %v2880 = vld [vmem:[%s11 + $0x48] sm:$0xff]
    %v2881 = vld [vmem:[%s11 + $0x50] sm:$0xff]
    %v2882 = vld [vmem:[%s11 + $0x58] sm:$0xff]
    %v2883 = vld [vmem:[%s11 + $0x60] sm:$0xff]
    %v2884 = vld [vmem:[%s11 + $0x68] sm:$0xff]
    %v2885 = vld [vmem:[%s11 + $0x70] sm:$0xff]
    %v2886 = vld [vmem:[%s11 + $0x78] sm:$0xff]
    %v2887 = vld [vmem:[%s12] sm:$0x1]
    %v2889 = vperm.slane %v2887, 0
    %2891 = vmatpush.msra.mxu0 %v2886
    %2892 = vmatpush.msra.mxu0 %v2885
    %2893 = vmatpush.msra.mxu0 %v2884
    %2894 = vmatpush.msra.mxu0 %v2883
    %2895 = vmatpush.msra.mxu0 %v2882
    %2896 = vmatpush.msra.mxu0 %v2881
    %2897 = vmatpush.msra.mxu0 %v2880
    %2898 = vmatpush.msra.mxu0 %v2879
    %2899 = vmatpush.msra.mxu0 %v2878
    %2900 = vmatpush.msra.mxu0 %v2877
    %2901 = vmatpush.msra.mxu0 %v2876
    %2902 = vmatpush.msra.mxu0 %v2875
    %2903 = vmatpush.msra.mxu0 %v2874
    %2904 = vmatpush.msra.mxu0 %v2873
    %2905 = vmatpush.msra.mxu0 %v2872
    %2906 = vmatpush.msra.mxu0 %v2871
    %2907 = vmatmul.f32.gmra.mxu0 %v2869
    %v2908 = vpop.f32.mrf.mxu0
    %v2909 = vadd.f32 %v2889, %v2908
    %2910 = vmatmul.f32.gmra.mxu0 %v2870
    %v2911 = vpop.f32.mrf.mxu0
    %v2912 = vadd.f32 %v2889, %v2911
    %2913 = vdwg.mxu0
    %v2914 = vmul.f32 %v2909, 0.5
    %v2915 = vmul.f32 %v2912, 0.5
    %v2916 = vmul.f32 %v2909, 0.70710677
    %v2917 = vmul.f32 %v2912, 0.70710677
    %vm2918 = vcmp.ge.f32.partialorder %v2916, 0.0
    %vm2919 = vcmp.ge.f32.partialorder %v2917, 0.0
    %v2920 = vsel %vm2918, 1.0, -1.0
    %v2921 = vsel %vm2919, 1.0, -1.0
    %v2922 = vand.u32 2147483647, %v2916
    %v2923 = vand.u32 2147483647, %v2917
    %v2924 = vmul.f32 %v2922, 0.3275911
    %v2925 = vmul.f32 %v2923, 0.3275911
    %v2926 = vadd.f32 %v2924, 1.0
    %v2927 = vadd.f32 %v2925, 1.0
    %v2928 = vrcp.pop %v2926
    %v2929 = vmul.f32 %v2926, %v2928
    %v2930 = vsub.f32 1.0, %v2929
    %v2931 = vmul.f32 %v2928, %v2930
    %v2932 = vadd.f32 %v2928, %v2931
    %vm2933 = vweird.f32 %v2926
    %vm2934 = vweird.f32 %v2928
    %vm2935 = vmor %vm2933, %vm2934
    %v2936 = vsel %vm2935, %v2928, %v2932
    %v2937 = vand.u32 2147483647, %v2926
    %vm2938 = vcmp.eq.f32.partialorder %v2937, 8.507059e+37
    %v2939 = vand.u32 %v2926, 2147483648
    %v2940 = vor.u32 1.1754944e-38, %v2939
    %v2941 = vsel %vm2938, %v2940, %v2936
    %v2942 = vmul.f32 1.0, %v2941
    %v2943 = vrcp.pop %v2927
    %v2944 = vmul.f32 %v2927, %v2943
    %v2945 = vsub.f32 1.0, %v2944
    %v2946 = vmul.f32 %v2943, %v2945
    %v2947 = vadd.f32 %v2943, %v2946
    %vm2948 = vweird.f32 %v2927
    %vm2949 = vweird.f32 %v2943
    %vm2950 = vmor %vm2948, %vm2949
    %v2951 = vsel %vm2950, %v2943, %v2947
    %v2952 = vand.u32 2147483647, %v2927
    %vm2953 = vcmp.eq.f32.partialorder %v2952, 8.507059e+37
    %v2954 = vand.u32 %v2927, 2147483648
    %v2955 = vor.u32 1.1754944e-38, %v2954
    %v2956 = vsel %vm2953, %v2955, %v2951
    %v2957 = vmul.f32 1.0, %v2956
    %v2958 = vmul.f32 %v2942, 1.0614054
    %v2959 = vmul.f32 %v2957, 1.0614054
    %v2960 = vadd.f32 %v2958, -1.4531521
    %v2961 = vadd.f32 %v2959, -1.4531521
    %v2962 = vmul.f32 %v2942, %v2960
    %v2963 = vmul.f32 %v2957, %v2961
    %v2964 = vadd.f32 %v2962, 1.4214138
    %v2965 = vadd.f32 %v2963, 1.4214138
    %v2966 = vmul.f32 %v2942, %v2964
    %v2967 = vmul.f32 %v2957, %v2965
    %v2968 = vadd.f32 %v2966, -0.28449672
    %v2969 = vadd.f32 %v2967, -0.28449672
    %v2970 = vmul.f32 %v2942, %v2968
    %v2971 = vmul.f32 %v2957, %v2969
    %v2972 = vadd.f32 %v2970, 0.2548296
    %v2973 = vadd.f32 %v2971, 0.2548296
    %v2974 = vmul.f32 %v2942, %v2972
    %v2975 = vmul.f32 %v2957, %v2973
    %v2976 = vsub.f32 0.0, %v2922
    %v2977 = vsub.f32 0.0, %v2923
    %v2978 = vmul.f32 %v2976, %v2922
    %v2979 = vmul.f32 %v2977, %v2923
    %v2980 = vmul.f32 %v2978, 1.442695
    %v2981 = vpow.pop %v2980
    %v2982 = vmul.f32 %v2979, 1.442695
    %v2983 = vpow.pop %v2982
    %v2984 = vmul.f32 %v2974, %v2981
    %v2985 = vmul.f32 %v2975, %v2983
    %v2986 = vsub.f32 1.0, %v2984
    %v2987 = vsub.f32 1.0, %v2985
    %v2988 = vmul.f32 %v2920, %v2986
    %v2989 = vmul.f32 %v2921, %v2987
    %v2990 = vadd.f32 %v2988, 1.0
    %v2991 = vadd.f32 %v2989, 1.0
    %v2992 = vmul.f32 %v2914, %v2990
    %v2993 = vmul.f32 %v2915, %v2991
    %v2994 = vld [vmem:[%s13] sm:$0x1]
    %v2996 = vperm.slane %v2994, 0
    %v2998 = vmul.f32 %v2992, %v2996
    %v2999 = vmul.f32 %v2993, %v2996
    %v3000 = vsel %vm199, %v2998, 0.0
    %3001 = vadd.xlane.f32.xlu0 %v3000
    %v3002 = vpop.xlane.xlu0 %3001
    %v3003 = vsel %vm199, %v2999, 0.0
    %3004 = vadd.xlane.f32.xlu0 %v3003
    %v3005 = vpop.xlane.xlu0 %3004
    %v3006 = vld [vmem:[#allocation5] sm:$0x1]
    %v3008 = vperm.slane %v3006, 0
    %v3010 = vadd.f32 %v3002, %v3008
    %v3011 = vadd.f32 %v3005, %v3008
    %v3012 = vxor.u32 %v3010, 2147483648
    %v3013 = vxor.u32 %v3011, 2147483648
    %v3014 = vmul.f32 %v3012, 1.442695
    %v3015 = vpow.pop %v3014
    %v3016 = vmul.f32 %v3013, 1.442695
    %v3017 = vpow.pop %v3016
    %v3018 = vadd.f32 %v3015, 1.0
    %v3019 = vadd.f32 %v3017, 1.0
    %v3020 = vrcp.pop %v3018
    %v3021 = vmul.f32 %v3018, %v3020
    %v3022 = vsub.f32 1.0, %v3021
    %v3023 = vmul.f32 %v3020, %v3022
    %v3024 = vadd.f32 %v3020, %v3023
    %vm3025 = vweird.f32 %v3018
    %vm3026 = vweird.f32 %v3020
    %vm3027 = vmor %vm3025, %vm3026
    %v3028 = vsel %vm3027, %v3020, %v3024
    %v3029 = vand.u32 2147483647, %v3018
    %vm3030 = vcmp.eq.f32.partialorder %v3029, 8.507059e+37
    %v3031 = vand.u32 %v3018, 2147483648
    %v3032 = vor.u32 1.1754944e-38, %v3031
    %v3033 = vsel %vm3030, %v3032, %v3028
    %v3034 = vmul.f32 1.0, %v3033
    %v3035 = vrcp.pop %v3019
    %v3036 = vmul.f32 %v3019, %v3035
    %v3037 = vsub.f32 1.0, %v3036
    %v3038 = vmul.f32 %v3035, %v3037
    %v3039 = vadd.f32 %v3035, %v3038
    %vm3040 = vweird.f32 %v3019
    %vm3041 = vweird.f32 %v3035
    %vm3042 = vmor %vm3040, %vm3041
    %v3043 = vsel %vm3042, %v3035, %v3039
    %v3044 = vand.u32 2147483647, %v3019
    %vm3045 = vcmp.eq.f32.partialorder %v3044, 8.507059e+37
    %v3046 = vand.u32 %v3019, 2147483648
    %v3047 = vor.u32 1.1754944e-38, %v3046
    %v3048 = vsel %vm3045, %v3047, %v3043
    %v3049 = vmul.f32 1.0, %v3048
    %vm3050 = vcmask 7168
    %3051 = vst.msk [vmem:[%s15] sm:$0xff] %vm3050, %v3034
    %3052 = vst.msk [vmem:[%s15 + $0x8] sm:$0xff] %vm3050, %v3049
    // Predicated region
    $region78: #{tpu_custom_call.1} parent=1 // pred_check
      _
    $region79: #{tpu_custom_call.1} parent=1 // pred_check_branch
      %3054 = sbr.rel (0) target = $region81
    $region80: #{tpu_custom_call.1} parent=1 // pred_region
      _
    $region81: #{tpu_custom_call.1} parent=1 // pred_fallthru
      _
    // Predicated region
    $region82: #{tpu_custom_call.1} parent=1 // pred_check
      _
    $region83: #{tpu_custom_call.1} parent=1 // pred_check_branch
      %3056 = sbr.rel (0) target = $region85
    $region84: #{tpu_custom_call.1} parent=1 // pred_region
      _
    $region85: #{tpu_custom_call.1} parent=1 // pred_fallthru
      _
    %3057 = vsyncpa [#allocation7], 1
    %3058 = vsyncpa [#allocation9], 1
    %3059 = vsyncpa [#allocation12], 1

</llo_original>
